<compile_context>
chip_gen: v5e
topology: v5e:2x2
jax: 0.10.0
libtpu: 0.0.40
codegen_flags: <defaults>
</compile_context>

<pallas_src>
import functools

import jax
import jax.numpy as jnp
import numpy as np
from jax import lax
from jax.experimental import pallas as pl
from jax.experimental.pallas import tpu as pltpu


def _silu(x):
    return x * jax.nn.sigmoid(x)


# ----------------------------------------------------------------------------
# In-kernel building blocks (channel-major, spatially-flat values)
# ----------------------------------------------------------------------------
def _conv3x3_bn_silu(x, wk_ref, s_ref, b_ref, H, W):
    """3x3 'same' conv + folded BN + SiLU in channel-major flat layout.

    x      : (Cin, H*W) f32 -- spatial positions flattened row-major on lanes
    wk_ref : (3, Cout, 3*Cin) bf16 -- per-kernel-row weights, the 3 column taps
             folded into the contraction axis: wk[dy][co, dx*Cin+ci] = w[dy,dx,ci,co]
    s_ref, b_ref : (Cout, 1) f32 -- folded BatchNorm scale / bias
    returns: (Cout, H*W) f32
    """
    Cin, L = x.shape
    Cout = wk_ref.shape[1]

    # column index of every flattened spatial position (for zero-pad masks)
    col = lax.broadcasted_iota(jnp.int32, (1, L), 1) % W

    zc = jnp.zeros((Cin, 1), x.dtype)
    # left neighbour (kernel column 0): zero where col == 0
    x_l = jnp.where(col >= 1,
                    jnp.concatenate([zc, x[:, :L - 1]], axis=1), 0.0)
    # right neighbour (kernel column 2): zero where col == W-1
    x_r = jnp.where(col <= W - 2,
                    jnp.concatenate([x[:, 1:], zc], axis=1), 0.0)
    # fold the three column taps into K = 3*Cin
    stack = jnp.concatenate([x_l, x, x_r], axis=0)               # (3*Cin, L)

    zr = jnp.zeros((3 * Cin, W), x.dtype)
    acc = jnp.zeros((Cout, L), jnp.float32)
    for dy in range(3):                                          # kernel rows
        if dy == 0:      # needs the row above: shift down one row, zero row 0
            st = jnp.concatenate([zr, stack[:, :L - W]], axis=1)
        elif dy == 2:    # needs the row below: shift up one row, zero row H-1
            st = jnp.concatenate([stack[:, W:], zr], axis=1)
        else:
            st = stack
        acc = acc + jnp.dot(wk_ref[dy], st.astype(jnp.bfloat16),
                            preferred_element_type=jnp.float32)

    y = acc * s_ref[...] + b_ref[...]
    return _silu(y)


def _proto_kernel(x_ref, wk1_ref, s1_ref, b1_ref, up_ref,
                  wk2_ref, s2_ref, b2_ref, w3t_ref, s3_ref, b3_ref,
                  o_ref, *, H, W):
    # cv1: 3x3 conv + BN + SiLU                     (C1, H*W) -> (C_, H*W)
    x = x_ref[0].astype(jnp.float32)
    y1 = _conv3x3_bn_silu(x, wk1_ref, s1_ref, b1_ref, H, W)

    # 2x nearest upsample = one MXU matmul against a constant 0/1 matrix
    #                                               (C_, H*W) -> (C_, 4*H*W)
    y1u = jnp.dot(y1.astype(jnp.bfloat16), up_ref[...],
                  preferred_element_type=jnp.float32)

    # cv2: 3x3 conv + BN + SiLU on the upsampled grid
    y2 = _conv3x3_bn_silu(y1u, wk2_ref, s2_ref, b2_ref, 2 * H, 2 * W)

    # cv3: 1x1 conv + BN + SiLU                     (C_, 4HW) -> (C2, 4HW)
    y3 = jnp.dot(w3t_ref[...], y2.astype(jnp.bfloat16),
                 preferred_element_type=jnp.float32)
    y3 = _silu(y3 * s3_ref[...] + b3_ref[...])

    o_ref[0] = y3.astype(o_ref.dtype)


# ----------------------------------------------------------------------------
# Host-side helpers / wrapper
# ----------------------------------------------------------------------------
def _upsample2x_matrix(H, W):
    """(H*W, 4*H*W) 0/1 matrix doing 2x nearest upsampling on the flat axis."""
    j = np.arange(4 * H * W)
    src = (j // (2 * W) // 2) * W + (j % (2 * W)) // 2
    u = np.zeros((H * W, 4 * H * W), np.float32)
    u[src, j] = 1.0
    return u


def proto_forward(x_nchw, p):
    N, C1, H, W = x_nchw.shape
    C_ = p["w1"].shape[-1]
    C2 = p["w3"].shape[-1]
    H2, W2 = 2 * H, 2 * W
    L1, L2 = H * W, H2 * W2

    # --- tiny one-time parameter prep (pre-folded once in deployment) ---
    # per-kernel-row (Cout, 3*Cin) slabs: [dy, co, dx*Cin + ci] = w[dy, dx, ci, co]
    wk1 = jnp.transpose(p["w1"], (0, 3, 1, 2)).reshape(3, C_, 3 * C1)
    wk2 = jnp.transpose(p["w2"], (0, 3, 1, 2)).reshape(3, C_, 3 * C_)
    wk1 = wk1.astype(jnp.bfloat16)
    wk2 = wk2.astype(jnp.bfloat16)
    w3t = jnp.transpose(p["w3"]).astype(jnp.bfloat16)            # (C2, C_)
    s1, b1 = p["s1"].reshape(C_, 1), p["b1"].reshape(C_, 1)
    s2, b2 = p["s2"].reshape(C_, 1), p["b2"].reshape(C_, 1)
    s3, b3 = p["s3"].reshape(C2, 1), p["b3"].reshape(C2, 1)
    up = jnp.asarray(_upsample2x_matrix(H, W), jnp.bfloat16)     # (L1, L2)

    x_flat = x_nchw.reshape(N, C1, L1)                           # NCHW, flat HW

    out = pl.pallas_call(
        functools.partial(_proto_kernel, H=H, W=W),
        out_shape=jax.ShapeDtypeStruct((N, C2, L2), x_nchw.dtype),
        grid=(N,),
        in_specs=[
            pl.BlockSpec((1, C1, L1), lambda n: (n, 0, 0)),      # x
            pl.BlockSpec((3, C_, 3 * C1), lambda n: (0, 0, 0)),  # cv1 weights
            pl.BlockSpec((C_, 1), lambda n: (0, 0)),             # cv1 BN scale
            pl.BlockSpec((C_, 1), lambda n: (0, 0)),             # cv1 BN bias
            pl.BlockSpec((L1, L2), lambda n: (0, 0)),            # upsample mat
            pl.BlockSpec((3, C_, 3 * C_), lambda n: (0, 0, 0)),  # cv2 weights
            pl.BlockSpec((C_, 1), lambda n: (0, 0)),             # cv2 BN scale
            pl.BlockSpec((C_, 1), lambda n: (0, 0)),             # cv2 BN bias
            pl.BlockSpec((C2, C_), lambda n: (0, 0)),            # cv3 weights
            pl.BlockSpec((C2, 1), lambda n: (0, 0)),             # cv3 BN scale
            pl.BlockSpec((C2, 1), lambda n: (0, 0)),             # cv3 BN bias
        ],
        out_specs=pl.BlockSpec((1, C2, L2), lambda n: (n, 0, 0)),
        compiler_params=pltpu.CompilerParams(
            dimension_semantics=("parallel",)),
    )(x_flat, wk1, s1, b1, up, wk2, s2, b2, w3t, s3, b3)

    return out.reshape(N, C2, H2, W2)                            # NCHW


# ----------------------------------------------------------------------------
# Pure-JAX reference (same numerics: bf16 matmul operands, f32 accum/epilogue)
# ----------------------------------------------------------------------------
def reference_forward(x_nchw, p):
    x = jnp.transpose(x_nchw, (0, 2, 3, 1))                      # NCHW -> NHWC

    def conv_bn_silu(x, w, s, b):
        y = lax.conv_general_dilated(
            x.astype(jnp.bfloat16), w.astype(jnp.bfloat16),
            window_strides=(1, 1), padding="SAME",
            dimension_numbers=("NHWC", "HWIO", "NHWC"),
            preferred_element_type=jnp.float32)
        return _silu(y * s + b)

    y = conv_bn_silu(x, p["w1"], p["s1"], p["b1"])
    y = jnp.repeat(jnp.repeat(y, 2, axis=1), 2, axis=2)          # nearest 2x
    y = conv_bn_silu(y, p["w2"], p["s2"], p["b2"])
    w3 = p["w3"].reshape(1, 1, *p["w3"].shape)
    y = conv_bn_silu(y, w3, p["s3"], p["b3"])
    return jnp.transpose(y, (0, 3, 1, 2))


# ----------------------------------------------------------------------------
# Main
# ----------------------------------------------------------------------------
if __name__ == "__main__":
    key = jax.random.PRNGKey(0)
    N, C1, H, W = 2, 4, 16, 16          # input NCHW
    C_, C2 = 32, 16                     # small hidden / proto channel counts

    ks = jax.random.split(key, 16)
    x = jax.random.normal(ks[0], (N, C1, H, W), jnp.float32)

    def init_bn_folded(kg, kb, km, kv, c, eps=1e-5):
        gamma = 1.0 + 0.1 * jax.random.normal(kg, (c,), jnp.float32)
        beta = 0.1 * jax.random.normal(kb, (c,), jnp.float32)
        mean = 0.1 * jax.random.normal(km, (c,), jnp.float32)
        var = jnp.abs(jax.random.normal(kv, (c,), jnp.float32)) + 0.5
        scale = gamma / jnp.sqrt(var + eps)
        bias = beta - mean * scale
        return scale, bias

    w1 = 0.1 * jax.random.normal(ks[1], (3, 3, C1, C_), jnp.float32)   # cv1 HWIO
    s1, b1 = init_bn_folded(ks[2], ks[3], ks[4], ks[5], C_)
    w2 = 0.1 * jax.random.normal(ks[6], (3, 3, C_, C_), jnp.float32)   # cv2 HWIO
    s2, b2 = init_bn_folded(ks[7], ks[8], ks[9], ks[10], C_)
    w3 = 0.1 * jax.random.normal(ks[11], (C_, C2), jnp.float32)        # cv3 (1x1)
    s3, b3 = init_bn_folded(ks[12], ks[13], ks[14], ks[15], C2)

    params = dict(w1=w1, s1=s1, b1=b1,
                  w2=w2, s2=s2, b2=b2,
                  w3=w3, s3=s3, b3=b3)

    out = jax.block_until_ready(jax.jit(proto_forward)(x, params))
    assert out.shape == (N, C2, 2 * H, 2 * W), out.shape

    ref = jax.block_until_ready(reference_forward(x, params))
    np.testing.assert_allclose(np.asarray(out), np.asarray(ref),
                               rtol=1e-2, atol=1e-2)

    print("KERNEL_OK")
</pallas_src>

<mosaic_0001>
module attributes {stable_mosaic.version = 11 : i64} {
  func.func @_proto_kernel(%arg0: i32, %arg1: memref<1x4x256xf32, #tpu.memory_space<vmem>>, %arg2: memref<3x32x12xbf16, #tpu.memory_space<vmem>>, %arg3: memref<32x1xf32, #tpu.memory_space<vmem>>, %arg4: memref<32x1xf32, #tpu.memory_space<vmem>>, %arg5: memref<256x1024xbf16, #tpu.memory_space<vmem>>, %arg6: memref<3x32x96xbf16, #tpu.memory_space<vmem>>, %arg7: memref<32x1xf32, #tpu.memory_space<vmem>>, %arg8: memref<32x1xf32, #tpu.memory_space<vmem>>, %arg9: memref<16x32xbf16, #tpu.memory_space<vmem>>, %arg10: memref<16x1xf32, #tpu.memory_space<vmem>>, %arg11: memref<16x1xf32, #tpu.memory_space<vmem>>, %arg12: memref<1x16x1024xf32, #tpu.memory_space<vmem>>) attributes {dimension_semantics = [#tpu.dimension_semantics<parallel>], iteration_bounds = array<i64: 2>, scalar_prefetch = 0 : i64, scratch_operands = 0 : i64, tpu.core_type = #tpu.core_type<tc>, window_params = [{transform_indices = @transform_0, window_bounds = array<i64: 1, 4, 256>}, {pipeline_mode = #tpu.pipeline_mode<synchronous>, transform_indices = @transform_1, window_bounds = array<i64: 3, 32, 12>}, {pipeline_mode = #tpu.pipeline_mode<synchronous>, transform_indices = @transform_2, window_bounds = array<i64: 32, 1>}, {pipeline_mode = #tpu.pipeline_mode<synchronous>, transform_indices = @transform_3, window_bounds = array<i64: 32, 1>}, {pipeline_mode = #tpu.pipeline_mode<synchronous>, transform_indices = @transform_4, window_bounds = array<i64: 256, 1024>}, {pipeline_mode = #tpu.pipeline_mode<synchronous>, transform_indices = @transform_5, window_bounds = array<i64: 3, 32, 96>}, {pipeline_mode = #tpu.pipeline_mode<synchronous>, transform_indices = @transform_6, window_bounds = array<i64: 32, 1>}, {pipeline_mode = #tpu.pipeline_mode<synchronous>, transform_indices = @transform_7, window_bounds = array<i64: 32, 1>}, {pipeline_mode = #tpu.pipeline_mode<synchronous>, transform_indices = @transform_8, window_bounds = array<i64: 16, 32>}, {pipeline_mode = #tpu.pipeline_mode<synchronous>, transform_indices = @transform_9, window_bounds = array<i64: 16, 1>}, {pipeline_mode = #tpu.pipeline_mode<synchronous>, transform_indices = @transform_10, window_bounds = array<i64: 16, 1>}, {transform_indices = @transform_11, window_bounds = array<i64: 1, 16, 1024>}]} {
    %c0 = arith.constant 0 : index
    %c0_0 = arith.constant 0 : index
    %c0_1 = arith.constant 0 : index
    %0 = vector.load %arg1[%c0, %c0_0, %c0_1] : memref<1x4x256xf32, #tpu.memory_space<vmem>>, vector<1x4x256xf32>
    %1 = vector.shape_cast %0 : vector<1x4x256xf32> to vector<4x256xf32>
    %2 = tpu.iota {dimensions = array<i32: 1>} : vector<1x256xi32>
    %c16_i32 = arith.constant 16 : i32
    %c0_i32 = arith.constant 0 : i32
    %3 = arith.cmpi eq, %c16_i32, %c0_i32 : i32
    %c1_i32 = arith.constant 1 : i32
    %4 = arith.select %3, %c1_i32, %c16_i32 : i32
    %5 = vector.broadcast %4 : i32 to vector<1x256xi32>
    %6 = arith.remsi %2, %5 : vector<1x256xi32>
    %c0_i32_2 = arith.constant 0 : i32
    %7 = vector.broadcast %c0_i32_2 : i32 to vector<1x256xi32>
    %8 = arith.cmpi ne, %6, %7 : vector<1x256xi32>
    %c0_i32_3 = arith.constant 0 : i32
    %9 = vector.broadcast %c0_i32_3 : i32 to vector<1x256xi32>
    %10 = arith.cmpi slt, %6, %9 : vector<1x256xi32>
    %c0_i32_4 = arith.constant 0 : i32
    %11 = arith.cmpi slt, %4, %c0_i32_4 : i32
    %12 = vector.broadcast %11 : i1 to vector<1x256xi1>
    %13 = vector.broadcast %12 : vector<1x256xi1> to vector<1x256xi1>
    %14 = arith.xori %10, %13 : vector<1x256xi1>
    %15 = arith.andi %14, %8 : vector<1x256xi1>
    %16 = vector.broadcast %4 : i32 to vector<1x256xi32>
    %17 = arith.addi %6, %16 : vector<1x256xi32>
    %18 = arith.select %15, %17, %6 : vector<1x256xi1>, vector<1x256xi32>
    %cst = arith.constant 0.000000e+00 : f32
    %19 = vector.broadcast %cst : f32 to vector<4x1xf32>
    %c1_i32_5 = arith.constant 1 : i32
    %20 = vector.broadcast %c1_i32_5 : i32 to vector<1x256xi32>
    %21 = arith.cmpi sge, %18, %20 : vector<1x256xi32>
    %22 = vector.extract_strided_slice %1 {offsets = [0, 0], sizes = [4, 255], strides = [1, 1]} : vector<4x256xf32> to vector<4x255xf32>
    %23 = tpu.concatenate %19, %22 in 1 : vector<4x1xf32>, vector<4x255xf32> -> vector<4x256xf32>
    %cst_6 = arith.constant 0.000000e+00 : f32
    %24 = vector.shape_cast %21 : vector<1x256xi1> to vector<1x256xi1>
    %25 = vector.broadcast %24 : vector<1x256xi1> to vector<4x256xi1>
    %26 = vector.broadcast %cst_6 : f32 to vector<4x256xf32>
    %27 = arith.select %25, %23, %26 : vector<4x256xi1>, vector<4x256xf32>
    %c14_i32 = arith.constant 14 : i32
    %28 = vector.broadcast %c14_i32 : i32 to vector<1x256xi32>
    %29 = arith.cmpi sle, %18, %28 : vector<1x256xi32>
    %30 = vector.extract_strided_slice %1 {offsets = [0, 1], sizes = [4, 255], strides = [1, 1]} : vector<4x256xf32> to vector<4x255xf32>
    %31 = tpu.concatenate %30, %19 in 1 : vector<4x255xf32>, vector<4x1xf32> -> vector<4x256xf32>
    %cst_7 = arith.constant 0.000000e+00 : f32
    %32 = vector.shape_cast %29 : vector<1x256xi1> to vector<1x256xi1>
    %33 = vector.broadcast %32 : vector<1x256xi1> to vector<4x256xi1>
    %34 = vector.broadcast %cst_7 : f32 to vector<4x256xf32>
    %35 = arith.select %33, %31, %34 : vector<4x256xi1>, vector<4x256xf32>
    %36 = tpu.concatenate %27, %1, %35 in 0 : vector<4x256xf32>, vector<4x256xf32>, vector<4x256xf32> -> vector<12x256xf32>
    %cst_8 = arith.constant 0.000000e+00 : f32
    %37 = vector.broadcast %cst_8 : f32 to vector<12x16xf32>
    %cst_9 = arith.constant 0.000000e+00 : f32
    %38 = vector.broadcast %cst_9 : f32 to vector<32x256xf32>
    %39 = vector.extract_strided_slice %36 {offsets = [0, 0], sizes = [12, 240], strides = [1, 1]} : vector<12x256xf32> to vector<12x240xf32>
    %40 = tpu.concatenate %37, %39 in 1 : vector<12x16xf32>, vector<12x240xf32> -> vector<12x256xf32>
    %c0_10 = arith.constant 0 : index
    %c0_11 = arith.constant 0 : index
    %c0_12 = arith.constant 0 : index
    %41 = vector.load %arg2[%c0_10, %c0_11, %c0_12] : memref<3x32x12xbf16, #tpu.memory_space<vmem>>, vector<1x32x12xbf16>
    %42 = vector.shape_cast %41 : vector<1x32x12xbf16> to vector<32x12xbf16>
    %43 = arith.truncf %40 : vector<12x256xf32> to vector<12x256xbf16>
    %cst_13 = arith.constant dense<0.000000e+00> : vector<32x256xf32>
    %44 = tpu.matmul %42, %43, %cst_13 {dimension_numbers = #tpu.dot_dimension_numbers<[1], [0], [0], [1], [0, 0, 1, 1], [], []>} : vector<32x12xbf16>, vector<12x256xbf16>, vector<32x256xf32> -> vector<32x256xf32>
    %45 = arith.addf %38, %44 : vector<32x256xf32>
    %c1 = arith.constant 1 : index
    %c0_14 = arith.constant 0 : index
    %c0_15 = arith.constant 0 : index
    %46 = vector.load %arg2[%c1, %c0_14, %c0_15] : memref<3x32x12xbf16, #tpu.memory_space<vmem>>, vector<1x32x12xbf16>
    %47 = vector.shape_cast %46 : vector<1x32x12xbf16> to vector<32x12xbf16>
    %48 = arith.truncf %36 : vector<12x256xf32> to vector<12x256xbf16>
    %cst_16 = arith.constant dense<0.000000e+00> : vector<32x256xf32>
    %49 = tpu.matmul %47, %48, %cst_16 {dimension_numbers = #tpu.dot_dimension_numbers<[1], [0], [0], [1], [0, 0, 1, 1], [], []>} : vector<32x12xbf16>, vector<12x256xbf16>, vector<32x256xf32> -> vector<32x256xf32>
    %50 = arith.addf %45, %49 : vector<32x256xf32>
    %51 = vector.extract_strided_slice %36 {offsets = [0, 16], sizes = [12, 240], strides = [1, 1]} : vector<12x256xf32> to vector<12x240xf32>
    %52 = tpu.concatenate %51, %37 in 1 : vector<12x240xf32>, vector<12x16xf32> -> vector<12x256xf32>
    %c2 = arith.constant 2 : index
    %c0_17 = arith.constant 0 : index
    %c0_18 = arith.constant 0 : index
    %53 = vector.load %arg2[%c2, %c0_17, %c0_18] : memref<3x32x12xbf16, #tpu.memory_space<vmem>>, vector<1x32x12xbf16>
    %54 = vector.shape_cast %53 : vector<1x32x12xbf16> to vector<32x12xbf16>
    %55 = arith.truncf %52 : vector<12x256xf32> to vector<12x256xbf16>
    %cst_19 = arith.constant dense<0.000000e+00> : vector<32x256xf32>
    %56 = tpu.matmul %54, %55, %cst_19 {dimension_numbers = #tpu.dot_dimension_numbers<[1], [0], [0], [1], [0, 0, 1, 1], [], []>} : vector<32x12xbf16>, vector<12x256xbf16>, vector<32x256xf32> -> vector<32x256xf32>
    %57 = arith.addf %50, %56 : vector<32x256xf32>
    %c0_20 = arith.constant 0 : index
    %c0_21 = arith.constant 0 : index
    %58 = vector.load %arg3[%c0_20, %c0_21] : memref<32x1xf32, #tpu.memory_space<vmem>>, vector<32x1xf32>
    %59 = vector.broadcast %58 : vector<32x1xf32> to vector<32x256xf32>
    %60 = arith.mulf %57, %59 : vector<32x256xf32>
    %c0_22 = arith.constant 0 : index
    %c0_23 = arith.constant 0 : index
    %61 = vector.load %arg4[%c0_22, %c0_23] : memref<32x1xf32, #tpu.memory_space<vmem>>, vector<32x1xf32>
    %62 = vector.broadcast %61 : vector<32x1xf32> to vector<32x256xf32>
    %63 = arith.addf %60, %62 : vector<32x256xf32>
    %64 = arith.negf %63 : vector<32x256xf32>
    %65 = math.exp %64 : vector<32x256xf32>
    %cst_24 = arith.constant 1.000000e+00 : f32
    %66 = vector.broadcast %cst_24 : f32 to vector<32x256xf32>
    %67 = arith.addf %66, %65 : vector<32x256xf32>
    %68 = arith.divf %66, %67 : vector<32x256xf32>
    %69 = arith.mulf %63, %68 : vector<32x256xf32>
    %70 = arith.truncf %69 : vector<32x256xf32> to vector<32x256xbf16>
    %c0_25 = arith.constant 0 : index
    %c0_26 = arith.constant 0 : index
    %71 = vector.load %arg5[%c0_25, %c0_26] : memref<256x1024xbf16, #tpu.memory_space<vmem>>, vector<256x1024xbf16>
    %cst_27 = arith.constant dense<0.000000e+00> : vector<32x1024xf32>
    %72 = tpu.matmul %70, %71, %cst_27 {dimension_numbers = #tpu.dot_dimension_numbers<[1], [0], [0], [1], [0, 0, 1, 1], [], []>} : vector<32x256xbf16>, vector<256x1024xbf16>, vector<32x1024xf32> -> vector<32x1024xf32>
    %73 = tpu.iota {dimensions = array<i32: 1>} : vector<1x1024xi32>
    %c32_i32 = arith.constant 32 : i32
    %c0_i32_28 = arith.constant 0 : i32
    %74 = arith.cmpi eq, %c32_i32, %c0_i32_28 : i32
    %c1_i32_29 = arith.constant 1 : i32
    %75 = arith.select %74, %c1_i32_29, %c32_i32 : i32
    %76 = vector.broadcast %75 : i32 to vector<1x1024xi32>
    %77 = arith.remsi %73, %76 : vector<1x1024xi32>
    %c0_i32_30 = arith.constant 0 : i32
    %78 = vector.broadcast %c0_i32_30 : i32 to vector<1x1024xi32>
    %79 = arith.cmpi ne, %77, %78 : vector<1x1024xi32>
    %c0_i32_31 = arith.constant 0 : i32
    %80 = vector.broadcast %c0_i32_31 : i32 to vector<1x1024xi32>
    %81 = arith.cmpi slt, %77, %80 : vector<1x1024xi32>
    %c0_i32_32 = arith.constant 0 : i32
    %82 = arith.cmpi slt, %75, %c0_i32_32 : i32
    %83 = vector.broadcast %82 : i1 to vector<1x1024xi1>
    %84 = vector.broadcast %83 : vector<1x1024xi1> to vector<1x1024xi1>
    %85 = arith.xori %81, %84 : vector<1x1024xi1>
    %86 = arith.andi %85, %79 : vector<1x1024xi1>
    %87 = vector.broadcast %75 : i32 to vector<1x1024xi32>
    %88 = arith.addi %77, %87 : vector<1x1024xi32>
    %89 = arith.select %86, %88, %77 : vector<1x1024xi1>, vector<1x1024xi32>
    %cst_33 = arith.constant 0.000000e+00 : f32
    %90 = vector.broadcast %cst_33 : f32 to vector<32x1xf32>
    %c1_i32_34 = arith.constant 1 : i32
    %91 = vector.broadcast %c1_i32_34 : i32 to vector<1x1024xi32>
    %92 = arith.cmpi sge, %89, %91 : vector<1x1024xi32>
    %93 = vector.extract_strided_slice %72 {offsets = [0, 0], sizes = [32, 1023], strides = [1, 1]} : vector<32x1024xf32> to vector<32x1023xf32>
    %94 = tpu.concatenate %90, %93 in 1 : vector<32x1xf32>, vector<32x1023xf32> -> vector<32x1024xf32>
    %cst_35 = arith.constant 0.000000e+00 : f32
    %95 = vector.shape_cast %92 : vector<1x1024xi1> to vector<1x1024xi1>
    %96 = vector.broadcast %95 : vector<1x1024xi1> to vector<32x1024xi1>
    %97 = vector.broadcast %cst_35 : f32 to vector<32x1024xf32>
    %98 = arith.select %96, %94, %97 : vector<32x1024xi1>, vector<32x1024xf32>
    %c30_i32 = arith.constant 30 : i32
    %99 = vector.broadcast %c30_i32 : i32 to vector<1x1024xi32>
    %100 = arith.cmpi sle, %89, %99 : vector<1x1024xi32>
    %101 = vector.extract_strided_slice %72 {offsets = [0, 1], sizes = [32, 1023], strides = [1, 1]} : vector<32x1024xf32> to vector<32x1023xf32>
    %102 = tpu.concatenate %101, %90 in 1 : vector<32x1023xf32>, vector<32x1xf32> -> vector<32x1024xf32>
    %cst_36 = arith.constant 0.000000e+00 : f32
    %103 = vector.shape_cast %100 : vector<1x1024xi1> to vector<1x1024xi1>
    %104 = vector.broadcast %103 : vector<1x1024xi1> to vector<32x1024xi1>
    %105 = vector.broadcast %cst_36 : f32 to vector<32x1024xf32>
    %106 = arith.select %104, %102, %105 : vector<32x1024xi1>, vector<32x1024xf32>
    %107 = tpu.concatenate %98, %72, %106 in 0 : vector<32x1024xf32>, vector<32x1024xf32>, vector<32x1024xf32> -> vector<96x1024xf32>
    %cst_37 = arith.constant 0.000000e+00 : f32
    %108 = vector.broadcast %cst_37 : f32 to vector<96x32xf32>
    %cst_38 = arith.constant 0.000000e+00 : f32
    %109 = vector.broadcast %cst_38 : f32 to vector<32x1024xf32>
    %110 = vector.extract_strided_slice %107 {offsets = [0, 0], sizes = [96, 992], strides = [1, 1]} : vector<96x1024xf32> to vector<96x992xf32>
    %111 = tpu.concatenate %108, %110 in 1 : vector<96x32xf32>, vector<96x992xf32> -> vector<96x1024xf32>
    %c0_39 = arith.constant 0 : index
    %c0_40 = arith.constant 0 : index
    %c0_41 = arith.constant 0 : index
    %112 = vector.load %arg6[%c0_39, %c0_40, %c0_41] : memref<3x32x96xbf16, #tpu.memory_space<vmem>>, vector<1x32x96xbf16>
    %113 = vector.shape_cast %112 : vector<1x32x96xbf16> to vector<32x96xbf16>
    %114 = arith.truncf %111 : vector<96x1024xf32> to vector<96x1024xbf16>
    %cst_42 = arith.constant dense<0.000000e+00> : vector<32x1024xf32>
    %115 = tpu.matmul %113, %114, %cst_42 {dimension_numbers = #tpu.dot_dimension_numbers<[1], [0], [0], [1], [0, 0, 1, 1], [], []>} : vector<32x96xbf16>, vector<96x1024xbf16>, vector<32x1024xf32> -> vector<32x1024xf32>
    %116 = arith.addf %109, %115 : vector<32x1024xf32>
    %c1_43 = arith.constant 1 : index
    %c0_44 = arith.constant 0 : index
    %c0_45 = arith.constant 0 : index
    %117 = vector.load %arg6[%c1_43, %c0_44, %c0_45] : memref<3x32x96xbf16, #tpu.memory_space<vmem>>, vector<1x32x96xbf16>
    %118 = vector.shape_cast %117 : vector<1x32x96xbf16> to vector<32x96xbf16>
    %119 = arith.truncf %107 : vector<96x1024xf32> to vector<96x1024xbf16>
    %cst_46 = arith.constant dense<0.000000e+00> : vector<32x1024xf32>
    %120 = tpu.matmul %118, %119, %cst_46 {dimension_numbers = #tpu.dot_dimension_numbers<[1], [0], [0], [1], [0, 0, 1, 1], [], []>} : vector<32x96xbf16>, vector<96x1024xbf16>, vector<32x1024xf32> -> vector<32x1024xf32>
    %121 = arith.addf %116, %120 : vector<32x1024xf32>
    %122 = vector.extract_strided_slice %107 {offsets = [0, 32], sizes = [96, 992], strides = [1, 1]} : vector<96x1024xf32> to vector<96x992xf32>
    %123 = tpu.concatenate %122, %108 in 1 : vector<96x992xf32>, vector<96x32xf32> -> vector<96x1024xf32>
    %c2_47 = arith.constant 2 : index
    %c0_48 = arith.constant 0 : index
    %c0_49 = arith.constant 0 : index
    %124 = vector.load %arg6[%c2_47, %c0_48, %c0_49] : memref<3x32x96xbf16, #tpu.memory_space<vmem>>, vector<1x32x96xbf16>
    %125 = vector.shape_cast %124 : vector<1x32x96xbf16> to vector<32x96xbf16>
    %126 = arith.truncf %123 : vector<96x1024xf32> to vector<96x1024xbf16>
    %cst_50 = arith.constant dense<0.000000e+00> : vector<32x1024xf32>
    %127 = tpu.matmul %125, %126, %cst_50 {dimension_numbers = #tpu.dot_dimension_numbers<[1], [0], [0], [1], [0, 0, 1, 1], [], []>} : vector<32x96xbf16>, vector<96x1024xbf16>, vector<32x1024xf32> -> vector<32x1024xf32>
    %128 = arith.addf %121, %127 : vector<32x1024xf32>
    %c0_51 = arith.constant 0 : index
    %c0_52 = arith.constant 0 : index
    %129 = vector.load %arg7[%c0_51, %c0_52] : memref<32x1xf32, #tpu.memory_space<vmem>>, vector<32x1xf32>
    %130 = vector.broadcast %129 : vector<32x1xf32> to vector<32x1024xf32>
    %131 = arith.mulf %128, %130 : vector<32x1024xf32>
    %c0_53 = arith.constant 0 : index
    %c0_54 = arith.constant 0 : index
    %132 = vector.load %arg8[%c0_53, %c0_54] : memref<32x1xf32, #tpu.memory_space<vmem>>, vector<32x1xf32>
    %133 = vector.broadcast %132 : vector<32x1xf32> to vector<32x1024xf32>
    %134 = arith.addf %131, %133 : vector<32x1024xf32>
    %135 = arith.negf %134 : vector<32x1024xf32>
    %136 = math.exp %135 : vector<32x1024xf32>
    %cst_55 = arith.constant 1.000000e+00 : f32
    %137 = vector.broadcast %cst_55 : f32 to vector<32x1024xf32>
    %138 = arith.addf %137, %136 : vector<32x1024xf32>
    %139 = arith.divf %137, %138 : vector<32x1024xf32>
    %140 = arith.mulf %134, %139 : vector<32x1024xf32>
    %c0_56 = arith.constant 0 : index
    %c0_57 = arith.constant 0 : index
    %141 = vector.load %arg9[%c0_56, %c0_57] : memref<16x32xbf16, #tpu.memory_space<vmem>>, vector<16x32xbf16>
    %142 = arith.truncf %140 : vector<32x1024xf32> to vector<32x1024xbf16>
    %cst_58 = arith.constant dense<0.000000e+00> : vector<16x1024xf32>
    %143 = tpu.matmul %141, %142, %cst_58 {dimension_numbers = #tpu.dot_dimension_numbers<[1], [0], [0], [1], [0, 0, 1, 1], [], []>} : vector<16x32xbf16>, vector<32x1024xbf16>, vector<16x1024xf32> -> vector<16x1024xf32>
    %c0_59 = arith.constant 0 : index
    %c0_60 = arith.constant 0 : index
    %144 = vector.load %arg10[%c0_59, %c0_60] : memref<16x1xf32, #tpu.memory_space<vmem>>, vector<16x1xf32>
    %145 = vector.broadcast %144 : vector<16x1xf32> to vector<16x1024xf32>
    %146 = arith.mulf %143, %145 : vector<16x1024xf32>
    %c0_61 = arith.constant 0 : index
    %c0_62 = arith.constant 0 : index
    %147 = vector.load %arg11[%c0_61, %c0_62] : memref<16x1xf32, #tpu.memory_space<vmem>>, vector<16x1xf32>
    %148 = vector.broadcast %147 : vector<16x1xf32> to vector<16x1024xf32>
    %149 = arith.addf %146, %148 : vector<16x1024xf32>
    %150 = arith.negf %149 : vector<16x1024xf32>
    %151 = math.exp %150 : vector<16x1024xf32>
    %cst_63 = arith.constant 1.000000e+00 : f32
    %152 = vector.broadcast %cst_63 : f32 to vector<16x1024xf32>
    %153 = arith.addf %152, %151 : vector<16x1024xf32>
    %154 = arith.divf %152, %153 : vector<16x1024xf32>
    %155 = arith.mulf %149, %154 : vector<16x1024xf32>
    %c0_64 = arith.constant 0 : index
    %c0_65 = arith.constant 0 : index
    %c0_66 = arith.constant 0 : index
    %156 = vector.load %arg12[%c0_64, %c0_65, %c0_66] : memref<1x16x1024xf32, #tpu.memory_space<vmem>>, vector<1x16x1024xf32>
    %157 = vector.shape_cast %156 : vector<1x16x1024xf32> to vector<16x1024xf32>
    %158 = vector.shape_cast %155 : vector<16x1024xf32> to vector<1x16x1024xf32>
    tpu.vector_store %arg12[%c0_64, %c0_65, %c0_66], %158 {strides = array<i32>} : memref<1x16x1024xf32, #tpu.memory_space<vmem>>, vector<1x16x1024xf32>,
    return
  }
  func.func @transform_0(%arg0: i32) -> (i32, i32, i32) {
    %c0_i32 = arith.constant 0 : i32
    %c0_i32_0 = arith.constant 0 : i32
    %c0_i32_1 = arith.constant 0 : i32
    return %arg0, %c0_i32, %c0_i32_0 : i32, i32, i32
  }
  func.func @transform_1(%arg0: i32) -> (i32, i32, i32) {
    %c0_i32 = arith.constant 0 : i32
    %c0_i32_0 = arith.constant 0 : i32
    %c0_i32_1 = arith.constant 0 : i32
    %c0_i32_2 = arith.constant 0 : i32
    return %c0_i32, %c0_i32_0, %c0_i32_1 : i32, i32, i32
  }
  func.func @transform_2(%arg0: i32) -> (i32, i32) {
    %c0_i32 = arith.constant 0 : i32
    %c0_i32_0 = arith.constant 0 : i32
    %c0_i32_1 = arith.constant 0 : i32
    return %c0_i32, %c0_i32_0 : i32, i32
  }
  func.func @transform_3(%arg0: i32) -> (i32, i32) {
    %c0_i32 = arith.constant 0 : i32
    %c0_i32_0 = arith.constant 0 : i32
    %c0_i32_1 = arith.constant 0 : i32
    return %c0_i32, %c0_i32_0 : i32, i32
  }
  func.func @transform_4(%arg0: i32) -> (i32, i32) {
    %c0_i32 = arith.constant 0 : i32
    %c0_i32_0 = arith.constant 0 : i32
    %c0_i32_1 = arith.constant 0 : i32
    return %c0_i32, %c0_i32_0 : i32, i32
  }
  func.func @transform_5(%arg0: i32) -> (i32, i32, i32) {
    %c0_i32 = arith.constant 0 : i32
    %c0_i32_0 = arith.constant 0 : i32
    %c0_i32_1 = arith.constant 0 : i32
    %c0_i32_2 = arith.constant 0 : i32
    return %c0_i32, %c0_i32_0, %c0_i32_1 : i32, i32, i32
  }
  func.func @transform_6(%arg0: i32) -> (i32, i32) {
    %c0_i32 = arith.constant 0 : i32
    %c0_i32_0 = arith.constant 0 : i32
    %c0_i32_1 = arith.constant 0 : i32
    return %c0_i32, %c0_i32_0 : i32, i32
  }
  func.func @transform_7(%arg0: i32) -> (i32, i32) {
    %c0_i32 = arith.constant 0 : i32
    %c0_i32_0 = arith.constant 0 : i32
    %c0_i32_1 = arith.constant 0 : i32
    return %c0_i32, %c0_i32_0 : i32, i32
  }
  func.func @transform_8(%arg0: i32) -> (i32, i32) {
    %c0_i32 = arith.constant 0 : i32
    %c0_i32_0 = arith.constant 0 : i32
    %c0_i32_1 = arith.constant 0 : i32
    return %c0_i32, %c0_i32_0 : i32, i32
  }
  func.func @transform_9(%arg0: i32) -> (i32, i32) {
    %c0_i32 = arith.constant 0 : i32
    %c0_i32_0 = arith.constant 0 : i32
    %c0_i32_1 = arith.constant 0 : i32
    return %c0_i32, %c0_i32_0 : i32, i32
  }
  func.func @transform_10(%arg0: i32) -> (i32, i32) {
    %c0_i32 = arith.constant 0 : i32
    %c0_i32_0 = arith.constant 0 : i32
    %c0_i32_1 = arith.constant 0 : i32
    return %c0_i32, %c0_i32_0 : i32, i32
  }
  func.func @transform_11(%arg0: i32) -> (i32, i32, i32) {
    %c0_i32 = arith.constant 0 : i32
    %c0_i32_0 = arith.constant 0 : i32
    %c0_i32_1 = arith.constant 0 : i32
    return %arg0, %c0_i32, %c0_i32_0 : i32, i32, i32
  }
}

</mosaic_0001>

<llo_original>
// kernel: proto_forward.1
$region0: #{proto_forward.1}
  #allocation0 [shape = 'u32[]', space=smem, size = 0x4, offset = 0x4, fixed_abs, tag = 'smem constant byte address 0x4 - core index']
  #allocation1 [shape = 'u32[72,128]{1,0:T(1,128)}', space=vmem, size = 0x9000, scoped, tag = 'internal scratch']
  %s0 = inlined_call_operand.vmem [shape: f32[2,4,256], index: 0, kind: input, shape index: {}]
  %s1 = inlined_call_operand.vmem [shape: bf16[3,32,12], index: 1, kind: input, shape index: {}]
  %s2 = inlined_call_operand.vmem [shape: f32[32,1], index: 2, kind: input, shape index: {}]
  %s3 = inlined_call_operand.vmem [shape: f32[32,1], index: 3, kind: input, shape index: {}]
  %s4 = inlined_call_operand.hbm [shape: bf16[256,1024], index: 4, kind: input, shape index: {}]
  %s5 = inlined_call_operand.vmem [shape: bf16[3,32,96], index: 5, kind: input, shape index: {}]
  %s6 = inlined_call_operand.vmem [shape: f32[32,1], index: 6, kind: input, shape index: {}]
  %s7 = inlined_call_operand.vmem [shape: f32[32,1], index: 7, kind: input, shape index: {}]
  %s8 = inlined_call_operand.vmem [shape: bf16[16,32], index: 8, kind: input, shape index: {}]
  %s9 = inlined_call_operand.vmem [shape: f32[16,1], index: 9, kind: input, shape index: {}]
  %s10 = inlined_call_operand.vmem [shape: f32[16,1], index: 10, kind: input, shape index: {}]
  %s11 = inlined_call_operand.vmem [shape: f32[2,16,1024], index: 11, kind: output, shape index: {}]
  %s12 = sld [smem:[#allocation0]]
  $region81: #{proto_forward.1} parent=0
    _
  %s14 = ssub.s32 1, %s12
  %s15 = scalar_select 0, %s14, %s12
  $region1: #{proto_forward.1} parent=0
    #allocation2 [shape = 'u8[524288]{0}', space=vmem, size = 0x80000, scoped, tag = 'input window, operand 4, single buffered']
    #allocation3 [shape = 's32[2]{0}', space=sflag, size = 0x8, scoped, tag = 'scoped memory for proto_forward.1']
    %16 = vsyncpa [#allocation3], 0
    loop: start=0, step=1, limit=4
    $region2: #{proto_forward.1} parent=1 // loop_pre_header
      _
    $region3: #{proto_forward.1} parent=1 // loop_header
      %s18 = sphi 0, %s22
      %p19 = scmp.ge.s32.totalorder %s18, 4
      %s28 = sphi 0, %s30
      %s31 = sphi 0, %s28
      %s32 = sphi 0, %s31
      %s48 = sphi 0, %s32
      %s52 = sphi 0, %s52
      %s54 = sphi 0, %s52
      %s55 = sphi 0, %s54
      %s69 = sphi 0, %s55
      %s73 = sphi 0, %s73
      %s75 = sphi 0, %s73
      %s76 = sphi 0, %s75
      %s90 = sphi 0, %s76
      %s94 = sphi 0, %s94
      %s96 = sphi 0, %s94
      %s97 = sphi 0, %s96
      %s111 = sphi 0, %s97
      %s115 = sphi 0, %s115
      %s117 = sphi 0, %s115
      %s118 = sphi 0, %s117
      %s132 = sphi 0, %s118
      %s136 = sphi 0, %s136
      %s138 = sphi 0, %s136
      %s139 = sphi 0, %s138
      %s153 = sphi 0, %s139
      %s157 = sphi 0, %s157
      %s159 = sphi 0, %s157
      %s160 = sphi 0, %s159
      %s174 = sphi 0, %s160
      %s178 = sphi 0, %s178
      %s180 = sphi 0, %s178
      %s181 = sphi 0, %s180
      %s195 = sphi 0, %s181
      %s199 = sphi 0, %s199
      %s201 = sphi 0, %s199
      %s202 = sphi 0, %s201
      %s216 = sphi 0, %s202
      %s220 = sphi 0, %s220
      %s222 = sphi 0, %s220
      %s223 = sphi 0, %s222
      %s237 = sphi 0, %s223
      %s241 = sphi 0, %s241
      %s243 = sphi 0, %s241
      %s244 = sphi 0, %s243
      %s258 = sphi 0, %s244
      %s264 = sphi 0, %s266
      %s267 = sphi 0, %s264
      %s268 = sphi 0, %s267
      %s284 = sphi 0, %s268
    $region4: #{proto_forward.1} parent=1 // loop_header_branch
      %21 = sbr.rel (%p19) target = $region8
    $region5: #{proto_forward.1} parent=1 // loop_body
      %s23 = ssub.s32 %s18, 1
      %s24 = ssub.s32 %s18, 2
      %s25 = sadd.s32 %s18, 1
      %s26 = ssub.s32 %s18, %s25
      %p27 = scmp.eq.s32.totalorder %s26, 0
      %s29 = sadd.s32 %s28, 1
      %s30 = scalar_select %p27, %s28, %s29
      %p33 = pneg %p27
      %p34 = scmp.eq.s32.totalorder %s18, 1
      %p35 = por %p33, %p34
      %p36 = scmp.ne.s32.totalorder %s28, %s31
      %p37 = scmp.eq.s32.totalorder %s18, 0
      %p38 = por %p36, %p37
      %p39 = scmp.ne.s32.totalorder %s28, %s31
      %p40 = scmp.eq.s32.totalorder %s23, 1
      %p41 = por %p39, %p40
      %p42 = scmp.ne.s32.totalorder %s31, %s32
      %p43 = scmp.eq.s32.totalorder %s23, 0
      %p44 = por %p42, %p43
      %p45 = scmp.ne.s32.totalorder %s31, %s32
      %p46 = scmp.eq.s32.totalorder %s24, 1
      %p47 = por %p45, %p46
      %p49 = scmp.ne.s32.totalorder %s32, %s48
      %p50 = scmp.eq.s32.totalorder %s24, 0
      %p51 = por %p49, %p50
      %s53 = sadd.s32 %s52, 1
      %p56 = scmp.eq.s32.totalorder %s18, 1
      %p57 = scmp.ne.s32.totalorder %s52, %s54
      %p58 = scmp.eq.s32.totalorder %s18, 0
      %p59 = por %p57, %p58
      %p60 = scmp.ne.s32.totalorder %s52, %s54
      %p61 = scmp.eq.s32.totalorder %s23, 1
      %p62 = por %p60, %p61
      %p63 = scmp.ne.s32.totalorder %s54, %s55
      %p64 = scmp.eq.s32.totalorder %s23, 0
      %p65 = por %p63, %p64
      %p66 = scmp.ne.s32.totalorder %s54, %s55
      %p67 = scmp.eq.s32.totalorder %s24, 1
      %p68 = por %p66, %p67
      %p70 = scmp.ne.s32.totalorder %s55, %s69
      %p71 = scmp.eq.s32.totalorder %s24, 0
      %p72 = por %p70, %p71
      %s74 = sadd.s32 %s73, 1
      %p77 = scmp.eq.s32.totalorder %s18, 1
      %p78 = scmp.ne.s32.totalorder %s73, %s75
      %p79 = scmp.eq.s32.totalorder %s18, 0
      %p80 = por %p78, %p79
      %p81 = scmp.ne.s32.totalorder %s73, %s75
      %p82 = scmp.eq.s32.totalorder %s23, 1
      %p83 = por %p81, %p82
      %p84 = scmp.ne.s32.totalorder %s75, %s76
      %p85 = scmp.eq.s32.totalorder %s23, 0
      %p86 = por %p84, %p85
      %p87 = scmp.ne.s32.totalorder %s75, %s76
      %p88 = scmp.eq.s32.totalorder %s24, 1
      %p89 = por %p87, %p88
      %p91 = scmp.ne.s32.totalorder %s76, %s90
      %p92 = scmp.eq.s32.totalorder %s24, 0
      %p93 = por %p91, %p92
      %s95 = sadd.s32 %s94, 1
      %p98 = scmp.eq.s32.totalorder %s18, 1
      %p99 = scmp.ne.s32.totalorder %s94, %s96
      %p100 = scmp.eq.s32.totalorder %s18, 0
      %p101 = por %p99, %p100
      %p102 = scmp.ne.s32.totalorder %s94, %s96
      %p103 = scmp.eq.s32.totalorder %s23, 1
      %p104 = por %p102, %p103
      %p105 = scmp.ne.s32.totalorder %s96, %s97
      %p106 = scmp.eq.s32.totalorder %s23, 0
      %p107 = por %p105, %p106
      %p108 = scmp.ne.s32.totalorder %s96, %s97
      %p109 = scmp.eq.s32.totalorder %s24, 1
      %p110 = por %p108, %p109
      %p112 = scmp.ne.s32.totalorder %s97, %s111
      %p113 = scmp.eq.s32.totalorder %s24, 0
      %p114 = por %p112, %p113
      %s116 = sadd.s32 %s115, 1
      %p119 = scmp.eq.s32.totalorder %s18, 1
      %p120 = scmp.ne.s32.totalorder %s115, %s117
      %p121 = scmp.eq.s32.totalorder %s18, 0
      %p122 = por %p120, %p121
      %p123 = scmp.ne.s32.totalorder %s115, %s117
      %p124 = scmp.eq.s32.totalorder %s23, 1
      %p125 = por %p123, %p124
      %p126 = scmp.ne.s32.totalorder %s117, %s118
      %p127 = scmp.eq.s32.totalorder %s23, 0
      %p128 = por %p126, %p127
      %p129 = scmp.ne.s32.totalorder %s117, %s118
      %p130 = scmp.eq.s32.totalorder %s24, 1
      %p131 = por %p129, %p130
      %p133 = scmp.ne.s32.totalorder %s118, %s132
      %p134 = scmp.eq.s32.totalorder %s24, 0
      %p135 = por %p133, %p134
      %s137 = sadd.s32 %s136, 1
      %p140 = scmp.eq.s32.totalorder %s18, 1
      %p141 = scmp.ne.s32.totalorder %s136, %s138
      %p142 = scmp.eq.s32.totalorder %s18, 0
      %p143 = por %p141, %p142
      %p144 = scmp.ne.s32.totalorder %s136, %s138
      %p145 = scmp.eq.s32.totalorder %s23, 1
      %p146 = por %p144, %p145
      %p147 = scmp.ne.s32.totalorder %s138, %s139
      %p148 = scmp.eq.s32.totalorder %s23, 0
      %p149 = por %p147, %p148
      %p150 = scmp.ne.s32.totalorder %s138, %s139
      %p151 = scmp.eq.s32.totalorder %s24, 1
      %p152 = por %p150, %p151
      %p154 = scmp.ne.s32.totalorder %s139, %s153
      %p155 = scmp.eq.s32.totalorder %s24, 0
      %p156 = por %p154, %p155
      %s158 = sadd.s32 %s157, 1
      %p161 = scmp.eq.s32.totalorder %s18, 1
      %p162 = scmp.ne.s32.totalorder %s157, %s159
      %p163 = scmp.eq.s32.totalorder %s18, 0
      %p164 = por %p162, %p163
      %p165 = scmp.ne.s32.totalorder %s157, %s159
      %p166 = scmp.eq.s32.totalorder %s23, 1
      %p167 = por %p165, %p166
      %p168 = scmp.ne.s32.totalorder %s159, %s160
      %p169 = scmp.eq.s32.totalorder %s23, 0
      %p170 = por %p168, %p169
      %p171 = scmp.ne.s32.totalorder %s159, %s160
      %p172 = scmp.eq.s32.totalorder %s24, 1
      %p173 = por %p171, %p172
      %p175 = scmp.ne.s32.totalorder %s160, %s174
      %p176 = scmp.eq.s32.totalorder %s24, 0
      %p177 = por %p175, %p176
      %s179 = sadd.s32 %s178, 1
      %p182 = scmp.eq.s32.totalorder %s18, 1
      %p183 = scmp.ne.s32.totalorder %s178, %s180
      %p184 = scmp.eq.s32.totalorder %s18, 0
      %p185 = por %p183, %p184
      %p186 = scmp.ne.s32.totalorder %s178, %s180
      %p187 = scmp.eq.s32.totalorder %s23, 1
      %p188 = por %p186, %p187
      %p189 = scmp.ne.s32.totalorder %s180, %s181
      %p190 = scmp.eq.s32.totalorder %s23, 0
      %p191 = por %p189, %p190
      %p192 = scmp.ne.s32.totalorder %s180, %s181
      %p193 = scmp.eq.s32.totalorder %s24, 1
      %p194 = por %p192, %p193
      %p196 = scmp.ne.s32.totalorder %s181, %s195
      %p197 = scmp.eq.s32.totalorder %s24, 0
      %p198 = por %p196, %p197
      %s200 = sadd.s32 %s199, 1
      %p203 = scmp.eq.s32.totalorder %s18, 1
      %p204 = scmp.ne.s32.totalorder %s199, %s201
      %p205 = scmp.eq.s32.totalorder %s18, 0
      %p206 = por %p204, %p205
      %p207 = scmp.ne.s32.totalorder %s199, %s201
      %p208 = scmp.eq.s32.totalorder %s23, 1
      %p209 = por %p207, %p208
      %p210 = scmp.ne.s32.totalorder %s201, %s202
      %p211 = scmp.eq.s32.totalorder %s23, 0
      %p212 = por %p210, %p211
      %p213 = scmp.ne.s32.totalorder %s201, %s202
      %p214 = scmp.eq.s32.totalorder %s24, 1
      %p215 = por %p213, %p214
      %p217 = scmp.ne.s32.totalorder %s202, %s216
      %p218 = scmp.eq.s32.totalorder %s24, 0
      %p219 = por %p217, %p218
      %s221 = sadd.s32 %s220, 1
      %p224 = scmp.eq.s32.totalorder %s18, 1
      %p225 = scmp.ne.s32.totalorder %s220, %s222
      %p226 = scmp.eq.s32.totalorder %s18, 0
      %p227 = por %p225, %p226
      %p228 = scmp.ne.s32.totalorder %s220, %s222
      %p229 = scmp.eq.s32.totalorder %s23, 1
      %p230 = por %p228, %p229
      %p231 = scmp.ne.s32.totalorder %s222, %s223
      %p232 = scmp.eq.s32.totalorder %s23, 0
      %p233 = por %p231, %p232
      %p234 = scmp.ne.s32.totalorder %s222, %s223
      %p235 = scmp.eq.s32.totalorder %s24, 1
      %p236 = por %p234, %p235
      %p238 = scmp.ne.s32.totalorder %s223, %s237
      %p239 = scmp.eq.s32.totalorder %s24, 0
      %p240 = por %p238, %p239
      %s242 = sadd.s32 %s241, 1
      %p245 = scmp.eq.s32.totalorder %s18, 1
      %p246 = scmp.ne.s32.totalorder %s241, %s243
      %p247 = scmp.eq.s32.totalorder %s18, 0
      %p248 = por %p246, %p247
      %p249 = scmp.ne.s32.totalorder %s241, %s243
      %p250 = scmp.eq.s32.totalorder %s23, 1
      %p251 = por %p249, %p250
      %p252 = scmp.ne.s32.totalorder %s243, %s244
      %p253 = scmp.eq.s32.totalorder %s23, 0
      %p254 = por %p252, %p253
      %p255 = scmp.ne.s32.totalorder %s243, %s244
      %p256 = scmp.eq.s32.totalorder %s24, 1
      %p257 = por %p255, %p256
      %p259 = scmp.ne.s32.totalorder %s244, %s258
      %p260 = scmp.eq.s32.totalorder %s24, 0
      %p261 = por %p259, %p260
      %s262 = ssub.s32 %s18, %s25
      %p263 = scmp.eq.s32.totalorder %s262, 0
      %s265 = sadd.s32 %s264, 1
      %s266 = scalar_select %p263, %s264, %s265
      %p269 = pneg %p263
      %p270 = scmp.eq.s32.totalorder %s18, 1
      %p271 = por %p269, %p270
      %p272 = scmp.ne.s32.totalorder %s264, %s267
      %p273 = scmp.eq.s32.totalorder %s18, 0
      %p274 = por %p272, %p273
      %p275 = scmp.ne.s32.totalorder %s264, %s267
      %p276 = scmp.eq.s32.totalorder %s23, 1
      %p277 = por %p275, %p276
      %p278 = scmp.ne.s32.totalorder %s267, %s268
      %p279 = scmp.eq.s32.totalorder %s23, 0
      %p280 = por %p278, %p279
      %p281 = scmp.ne.s32.totalorder %s267, %s268
      %p282 = scmp.eq.s32.totalorder %s24, 1
      %p283 = por %p281, %p282
      %p285 = scmp.ne.s32.totalorder %s268, %s284
      %p286 = scmp.eq.s32.totalorder %s24, 0
      %p287 = por %p285, %p286
      %p288 = scmp.le.s32.totalorder 1, %s18
      %p289 = scmp.lt.s32.totalorder %s18, 3
      %p290 = pnand %p288, %p289
      %p291 = pneg %p290
      // Predicated region
      $region9: #{proto_forward.1} parent=5 // pred_check
        _
      $region10: #{proto_forward.1} parent=5 // pred_check_branch
        %293 = sbr.rel (%p290) target = $region12
      $region11: #{proto_forward.1} parent=5 // pred_region
        %s294 = ssub.s32 %s18, 1
        // Predicated region
        $region13: #{proto_forward.1} parent=11 // pred_check
          %p295 = pneg %p65
        $region14: #{proto_forward.1} parent=11 // pred_check_branch
          %297 = sbr.rel (%p295) target = $region16
        $region15: #{proto_forward.1} parent=11 // pred_region
          _
        $region16: #{proto_forward.1} parent=11 // pred_fallthru
          _
        // Predicated region
        $region17: #{proto_forward.1} parent=11 // pred_check
          %p298 = pneg %p86
        $region18: #{proto_forward.1} parent=11 // pred_check_branch
          %300 = sbr.rel (%p298) target = $region20
        $region19: #{proto_forward.1} parent=11 // pred_region
          _
        $region20: #{proto_forward.1} parent=11 // pred_fallthru
          _
        // Predicated region
        $region21: #{proto_forward.1} parent=11 // pred_check
          %p301 = pneg %p107
        $region22: #{proto_forward.1} parent=11 // pred_check_branch
          %303 = sbr.rel (%p301) target = $region24
        $region23: #{proto_forward.1} parent=11 // pred_region
          _
        $region24: #{proto_forward.1} parent=11 // pred_fallthru
          _
        // Predicated region
        $region25: #{proto_forward.1} parent=11 // pred_check
          %p304 = pneg %p128
        $region26: #{proto_forward.1} parent=11 // pred_check_branch
          %306 = sbr.rel (%p304) target = $region28
        $region27: #{proto_forward.1} parent=11 // pred_region
          %308 = vsyncadd [#allocation3], 0
          %s309 = sshll.u32 %s4, 4
          %s310 = int_to_ptr.hbm [resolvable:$true] %s309
          %s311 = sshll.u32 [#allocation2], 4
          %s312 = int_to_ptr.vmem [resolvable:$true] %s311
          %317 = dma.hbm_to_vmem [thread:$0]  %s310, 16384, %s312, [#allocation3], 512, 512, 32
        $region28: #{proto_forward.1} parent=11 // pred_fallthru
          _
        // Predicated region
        $region29: #{proto_forward.1} parent=11 // pred_check
          %p318 = pneg %p149
        $region30: #{proto_forward.1} parent=11 // pred_check_branch
          %320 = sbr.rel (%p318) target = $region32
        $region31: #{proto_forward.1} parent=11 // pred_region
          _
        $region32: #{proto_forward.1} parent=11 // pred_fallthru
          _
        // Predicated region
        $region33: #{proto_forward.1} parent=11 // pred_check
          %p321 = pneg %p170
        $region34: #{proto_forward.1} parent=11 // pred_check_branch
          %323 = sbr.rel (%p321) target = $region36
        $region35: #{proto_forward.1} parent=11 // pred_region
          _
        $region36: #{proto_forward.1} parent=11 // pred_fallthru
          _
        // Predicated region
        $region37: #{proto_forward.1} parent=11 // pred_check
          %p324 = pneg %p191
        $region38: #{proto_forward.1} parent=11 // pred_check_branch
          %326 = sbr.rel (%p324) target = $region40
        $region39: #{proto_forward.1} parent=11 // pred_region
          _
        $region40: #{proto_forward.1} parent=11 // pred_fallthru
          _
        // Predicated region
        $region41: #{proto_forward.1} parent=11 // pred_check
          %p327 = pneg %p212
        $region42: #{proto_forward.1} parent=11 // pred_check_branch
          %329 = sbr.rel (%p327) target = $region44
        $region43: #{proto_forward.1} parent=11 // pred_region
          _
        $region44: #{proto_forward.1} parent=11 // pred_fallthru
          _
        // Predicated region
        $region45: #{proto_forward.1} parent=11 // pred_check
          %p330 = pneg %p233
        $region46: #{proto_forward.1} parent=11 // pred_check_branch
          %332 = sbr.rel (%p330) target = $region48
        $region47: #{proto_forward.1} parent=11 // pred_region
          _
        $region48: #{proto_forward.1} parent=11 // pred_fallthru
          _
        // Predicated region
        $region49: #{proto_forward.1} parent=11 // pred_check
          %p333 = pneg %p254
        $region50: #{proto_forward.1} parent=11 // pred_check_branch
          %335 = sbr.rel (%p333) target = $region52
        $region51: #{proto_forward.1} parent=11 // pred_region
          _
        $region52: #{proto_forward.1} parent=11 // pred_fallthru
          _
      $region12: #{proto_forward.1} parent=5 // pred_fallthru
        _
      %p336 = scmp.lt.s32.totalorder %s18, 2
      // Predicated region
      $region53: #{proto_forward.1} parent=5 // pred_check
        %p337 = pneg %p336
      $region54: #{proto_forward.1} parent=5 // pred_check_branch
        %339 = sbr.rel (%p337) target = $region56
      $region55: #{proto_forward.1} parent=5 // pred_region
        // Predicated region
        $region57: #{proto_forward.1} parent=55 // pred_check
          %p340 = pneg %p38
        $region58: #{proto_forward.1} parent=55 // pred_check_branch
          %342 = sbr.rel (%p340) target = $region60
        $region59: #{proto_forward.1} parent=55 // pred_region
          %p343 = scmp.lt.s32.totalorder %s18, 1
          %s344 = scalar_select %p343, %s18, 1
          %s345 = smul.addr %s344, 2
          %s346 = smul.addr %s345, 4
          %s347 = scalar_lea.vmem %s0, %s346
        $region60: #{proto_forward.1} parent=55 // pred_fallthru
          _
      $region56: #{proto_forward.1} parent=5 // pred_fallthru
        _
      %p348 = scmp.le.s32.totalorder 1, %s18
      %p349 = scmp.lt.s32.totalorder %s18, 3
      %p350 = pnand %p348, %p349
      %p351 = pneg %p350
      // Predicated region
      $region61: #{proto_forward.1} parent=5 // pred_check
        _
      $region62: #{proto_forward.1} parent=5 // pred_check_branch
        %353 = sbr.rel (%p350) target = $region64
      $region63: #{proto_forward.1} parent=5 // pred_region
        %s354 = ssub.s32 %s18, 1
        // Predicated region
        $region65: #{proto_forward.1} parent=63 // pred_check
          %p355 = pneg %p128
        $region66: #{proto_forward.1} parent=63 // pred_check_branch
          %357 = sbr.rel (%p355) target = $region68
        $region67: #{proto_forward.1} parent=63 // pred_region
          %359 = dma.done [#allocation3], 16384
        $region68: #{proto_forward.1} parent=63 // pred_fallthru
          _
        %p360 = scmp.lt.s32.totalorder %s23, 1
        %s361 = scalar_select %p360, %s23, 1
        %s362 = smul.addr %s361, 2
        %s363 = smul.addr %s362, 4
        %s364 = scalar_lea.vmem %s0, %s363
        %p365 = pneg %p44
        %p366 = pneg %p41
        %p367 = pneg %p65
        %p368 = pneg %p62
        %p369 = pneg %p86
        %p370 = pneg %p83
        %p371 = pneg %p107
        %p372 = pneg %p104
        %p373 = pneg %p128
        %p374 = pneg %p125
        %p375 = pneg %p149
        %p376 = pneg %p146
        %p377 = pneg %p170
        %p378 = pneg %p167
        %p379 = pneg %p191
        %p380 = pneg %p188
        %p381 = pneg %p212
        %p382 = pneg %p209
        %p383 = pneg %p233
        %p384 = pneg %p230
        %p385 = pneg %p254
        %p386 = pneg %p251
        %p387 = pneg %p280
        %p388 = pneg %p277
        %p389 = scmp.lt.s32.totalorder %s23, 1
        %s390 = scalar_select %p389, %s23, 1
        %s391 = smul.addr %s390, 16
        %s392 = smul.addr %s391, 8
        %s393 = scalar_lea.vmem %s11, %s392
        %p394 = scmp.lt.s32.totalorder %s23, 1
        %s395 = scalar_select %p394, %s23, 1
        %s396 = smul.addr %s395, 2
        %s397 = smul.addr %s396, 4
        %s398 = scalar_lea.vmem %s0, %s397
        %p399 = scmp.lt.s32.totalorder %s23, 1
        %s400 = scalar_select %p399, %s23, 1
        %s401 = smul.addr %s400, 16
        %s402 = smul.addr %s401, 8
        %s403 = scalar_lea.vmem %s11, %s402
        %v405 = vld [vmem:[%s398] sm:$0xff]
        %v406 = vlaneseq
        %v407 = vand.u32 %v406, 127
        %v408 = vadd.s32 %v407, 128
        %vm409 = vcmp.lt.s32.totalorder %v407, 0
        %v410 = vsub.s32 0, %v407
        %v411 = vsel %vm409, %v410, %v407
        %v412 = vshrl.u32 %v411, 4
        %v413 = vand.u32 %v411, 15
        %v414 = vsub.s32 0, %v413
        %v415 = vsel %vm409, %v414, %v413
        %vm416 = vcmp.lt.s32.totalorder %v408, 0
        %v417 = vsub.s32 0, %v408
        %v418 = vsel %vm416, %v417, %v408
        %v419 = vshrl.u32 %v418, 4
        %v420 = vand.u32 %v418, 15
        %v421 = vsub.s32 0, %v420
        %v422 = vsel %vm416, %v421, %v420
        %vm423 = vcmp.ne.s32.totalorder %v415, 0
        %vm424 = vcmp.ne.s32.totalorder %v422, 0
        %vm425 = vcmp.lt.s32.totalorder %v415, 0
        %vm426 = vcmp.lt.s32.totalorder %v422, 0
        %vm427 = vmand %vm425, %vm423
        %vm428 = vmand %vm426, %vm424
        %v429 = vadd.s32 %v415, 16
        %v430 = vadd.s32 %v422, 16
        %v431 = vsel %vm427, %v429, %v415
        %v432 = vsel %vm428, %v430, %v422
        %vm433 = vcmp.ge.s32.totalorder %v431, 1
        %vm434 = vcmp.ge.s32.totalorder %v432, 1
        %436 = vst [vmem:[#allocation1] ss:$2 sm:$0xff] %v405
        %v437 = vld.sshfl [vmem:[#allocation1] sm:$0xff pattern:$0x75316420]
        %v438 = vld.sshfl [vmem:[#allocation1 + $0x8] sm:$0xff pattern:$0x75316420]
        %439 = vrot.lane.b32.xlu0 %v437, 1
        %v440 = vpop.permute.xlu0 %439
        %441 = vrot.lane.b32.xlu0 %v438, 1
        %v442 = vpop.permute.xlu0 %441
        %vm443 = vcmask 7168
        %v444 = vsel %vm443, %v440, %v442
        %v447 = vsel %vm443, 0.0, %v440
        %v448 = vsel %vm433, 1, 0
        %v449 = vsel %vm434, 1, 0
        %vm450 = vcmp.eq.s32.totalorder %v448, 1
        %vm451 = vcmp.eq.s32.totalorder %v449, 1
        %v452 = vsel %vm450, %v447, 0.0
        %v453 = vsel %vm451, %v444, 0.0
        %vm454 = vcmp.le.s32.totalorder %v431, 14
        %vm455 = vcmp.le.s32.totalorder %v432, 14
        %456 = vst [vmem:[#allocation1] ss:$2 sm:$0xff] %v405
        %v457 = vld.sshfl [vmem:[#allocation1] sm:$0xff pattern:$0x75316420]
        %v458 = vld.sshfl [vmem:[#allocation1 + $0x8] sm:$0xff pattern:$0x75316420]
        %459 = vrot.lane.b32.xlu0 %v457, 127
        %v460 = vpop.permute.xlu0 %459
        %461 = vrot.lane.b32.xlu0 %v458, 127
        %v462 = vpop.permute.xlu0 %461
        %vm463 = vcmask 1039360
        %v464 = vsel %vm463, %v460, %v462
        %v467 = vsel %vm463, %v462, 0.0
        %v468 = vsel %vm454, 1, 0
        %v469 = vsel %vm455, 1, 0
        %vm470 = vcmp.eq.s32.totalorder %v468, 1
        %vm471 = vcmp.eq.s32.totalorder %v469, 1
        %v472 = vsel %vm470, %v464, 0.0
        %v473 = vsel %vm471, %v467, 0.0
        %s474 = scalar_lea.vmem [#allocation1], 1
        %475 = vst [vmem:[%s474] ss:$2 sm:$0xff] %v405
        %v476 = vld.sshfl [vmem:[#allocation1] sm:$0xff pattern:$0x75316420]
        %v477 = vld.sshfl [vmem:[#allocation1 + $0x8] sm:$0xff pattern:$0x75316420]
        %vm480 = vcmask 1043456
        %v481 = vsel %vm480, %v452, %v476
        %v482 = vsel %vm480, %v453, %v477
        %487 = vrot.lane.b32.xlu0 %v481, 16
        %v488 = vpop.permute.xlu0 %487
        %489 = vrot.lane.b32.xlu0 %v482, 16
        %v490 = vpop.permute.xlu0 %489
        %491 = vrot.lane.b32.xlu0 %v472, 16
        %v492 = vpop.permute.xlu0 %491
        %493 = vrot.lane.b32.xlu0 %v473, 16
        %v494 = vpop.permute.xlu0 %493
        %vm495 = vcmask 130048
        %v496 = vsel %vm495, %v488, %v490
        %v497 = vsel %vm495, %v492, %v494
        %v502 = vsel %vm495, 0.0, %v488
        %v503 = vsel %vm495, 0.0, %v492
        %v504 = vld [vmem:[%s1] sm:$0xf]
        %v505 = vld [vmem:[%s1 + $0x4] sm:$0xf]
        %v506 = vld [vmem:[%s1 + $0x8] sm:$0xf]
        %v507 = vld [vmem:[%s1 + $0xc] sm:$0xf]
        %v508 = vpack.c.bf16 %v503, %v502
        %v509 = vpack.c.bf16 %v497, %v496
        %s510 = scalar_lea.vmem %s1, 16
        %v511 = vld [vmem:[%s510] sm:$0xf]
        %v512 = vld [vmem:[%s510 + $0x4] sm:$0xf]
        %v513 = vld [vmem:[%s510 + $0x8] sm:$0xf]
        %v514 = vld [vmem:[%s510 + $0xc] sm:$0xf]
        %v515 = vpack.c.bf16 %v472, %v481
        %v516 = vpack.c.bf16 %v473, %v482
        %v521 = vunpack.c.l.b16 %v511
        %v522 = vunpack.c.l.b16 %v512
        %v523 = vunpack.c.l.b16 %v513
        %v524 = vunpack.c.l.b16 %v514
        %v525 = vpack.c.b16 %v522, %v521
        %v526 = vpack.c.b16 %v524, %v523
        %vm527 = vcmask 97280
        %v529 = vsel %vm527, %v525, 0
        %v532 = vsel %vm527, %v526, 0
        %vm534 = vcmask 1045504
        %v536 = vsel %vm534, %v515, 0
        %v539 = vsel %vm534, %v516, 0
        %541 = vmatpush.bf16.msra.mxu0 0
        %542 = vmatpush.bf16.msra.mxu0 0
        %543 = vmatpush.bf16.msra.mxu0 0
        %544 = vmatpush.bf16.msra.mxu0 0
        %545 = vmatpush.bf16.msra.mxu0 0
        %546 = vmatpush.bf16.msra.mxu0 0
        %547 = vmatpush.bf16.msra.mxu0 0
        %548 = vmatpush.bf16.msra.mxu0 %v536
        %549 = vmatmul.bf16.gmra.mxu0 %v529
        %v550 = vpop.f32.mrf.mxu0
        %v551 = vadd.f32 0.0, %v550
        %v552 = vpop.f32.mrf.mxu0
        %v553 = vadd.f32 0.0, %v552
        %554 = vmatmul.bf16.gmra.mxu0 %v532
        %v555 = vpop.f32.mrf.mxu0
        %v556 = vadd.f32 0.0, %v555
        %v557 = vpop.f32.mrf.mxu0
        %v558 = vadd.f32 0.0, %v557
        %559 = vdwg.mxu0
        %560 = vmatpush.bf16.msra.mxu0 0
        %561 = vmatpush.bf16.msra.mxu0 0
        %562 = vmatpush.bf16.msra.mxu0 0
        %563 = vmatpush.bf16.msra.mxu0 0
        %564 = vmatpush.bf16.msra.mxu0 0
        %565 = vmatpush.bf16.msra.mxu0 0
        %566 = vmatpush.bf16.msra.mxu0 0
        %567 = vmatpush.bf16.msra.mxu0 %v539
        %568 = vmatmul.bf16.gmra.mxu0 %v529
        %v569 = vpop.f32.mrf.mxu0
        %v570 = vadd.f32 0.0, %v569
        %v571 = vpop.f32.mrf.mxu0
        %v572 = vadd.f32 0.0, %v571
        %573 = vmatmul.bf16.gmra.mxu0 %v532
        %v574 = vpop.f32.mrf.mxu0
        %v575 = vadd.f32 0.0, %v574
        %v576 = vpop.f32.mrf.mxu0
        %v577 = vadd.f32 0.0, %v576
        %578 = vdwg.mxu0
        %v583 = vunpack.c.l.b16 %v504
        %v584 = vunpack.c.l.b16 %v505
        %v585 = vunpack.c.l.b16 %v506
        %v586 = vunpack.c.l.b16 %v507
        %v587 = vpack.c.b16 %v584, %v583
        %v588 = vpack.c.b16 %v586, %v585
        %v590 = vsel %vm527, %v587, 0
        %v593 = vsel %vm527, %v588, 0
        %v596 = vsel %vm534, %v508, 0
        %v599 = vsel %vm534, %v509, 0
        %601 = vmatpush.bf16.msra.mxu0 0
        %602 = vmatpush.bf16.msra.mxu0 0
        %603 = vmatpush.bf16.msra.mxu0 0
        %604 = vmatpush.bf16.msra.mxu0 0
        %605 = vmatpush.bf16.msra.mxu0 0
        %606 = vmatpush.bf16.msra.mxu0 0
        %607 = vmatpush.bf16.msra.mxu0 0
        %608 = vmatpush.bf16.msra.mxu0 %v596
        %609 = vmatmul.bf16.gmra.mxu0 %v590
        %v610 = vpop.f32.mrf.mxu0
        %v611 = vadd.f32 %v551, %v610
        %v612 = vpop.f32.mrf.mxu0
        %v613 = vadd.f32 %v553, %v612
        %614 = vmatmul.bf16.gmra.mxu0 %v593
        %v615 = vpop.f32.mrf.mxu0
        %v616 = vadd.f32 %v556, %v615
        %v617 = vpop.f32.mrf.mxu0
        %v618 = vadd.f32 %v558, %v617
        %619 = vdwg.mxu0
        %620 = vmatpush.bf16.msra.mxu0 0
        %621 = vmatpush.bf16.msra.mxu0 0
        %622 = vmatpush.bf16.msra.mxu0 0
        %623 = vmatpush.bf16.msra.mxu0 0
        %624 = vmatpush.bf16.msra.mxu0 0
        %625 = vmatpush.bf16.msra.mxu0 0
        %626 = vmatpush.bf16.msra.mxu0 0
        %627 = vmatpush.bf16.msra.mxu0 %v599
        %628 = vmatmul.bf16.gmra.mxu0 %v590
        %v629 = vpop.f32.mrf.mxu0
        %v630 = vadd.f32 %v570, %v629
        %v631 = vpop.f32.mrf.mxu0
        %v632 = vadd.f32 %v572, %v631
        %633 = vmatmul.bf16.gmra.mxu0 %v593
        %v634 = vpop.f32.mrf.mxu0
        %v635 = vadd.f32 %v575, %v634
        %v636 = vpop.f32.mrf.mxu0
        %v637 = vadd.f32 %v577, %v636
        %638 = vdwg.mxu0
        %639 = vrot.lane.b32.xlu0 %v481, 112
        %v640 = vpop.permute.xlu0 %639
        %641 = vrot.lane.b32.xlu0 %v482, 112
        %v642 = vpop.permute.xlu0 %641
        %643 = vrot.lane.b32.xlu0 %v472, 112
        %v644 = vpop.permute.xlu0 %643
        %645 = vrot.lane.b32.xlu0 %v473, 112
        %v646 = vpop.permute.xlu0 %645
        %vm647 = vcmask 916480
        %v648 = vsel %vm647, %v640, %v642
        %v649 = vsel %vm647, %v644, %v646
        %v654 = vsel %vm647, %v642, 0.0
        %v655 = vsel %vm647, %v646, 0.0
        %s656 = scalar_lea.vmem %s1, 32
        %v657 = vld [vmem:[%s656] sm:$0xf]
        %v658 = vld [vmem:[%s656 + $0x4] sm:$0xf]
        %v659 = vld [vmem:[%s656 + $0x8] sm:$0xf]
        %v660 = vld [vmem:[%s656 + $0xc] sm:$0xf]
        %v661 = vpack.c.bf16 %v649, %v648
        %v662 = vpack.c.bf16 %v655, %v654
        %v667 = vunpack.c.l.b16 %v657
        %v668 = vunpack.c.l.b16 %v658
        %v669 = vunpack.c.l.b16 %v659
        %v670 = vunpack.c.l.b16 %v660
        %v671 = vpack.c.b16 %v668, %v667
        %v672 = vpack.c.b16 %v670, %v669
        %v674 = vsel %vm527, %v671, 0
        %v677 = vsel %vm527, %v672, 0
        %v680 = vsel %vm534, %v661, 0
        %v683 = vsel %vm534, %v662, 0
        %685 = vmatpush.bf16.msra.mxu0 0
        %686 = vmatpush.bf16.msra.mxu0 0
        %687 = vmatpush.bf16.msra.mxu0 0
        %688 = vmatpush.bf16.msra.mxu0 0
        %689 = vmatpush.bf16.msra.mxu0 0
        %690 = vmatpush.bf16.msra.mxu0 0
        %691 = vmatpush.bf16.msra.mxu0 0
        %692 = vmatpush.bf16.msra.mxu0 %v680
        %693 = vmatmul.bf16.gmra.mxu0 %v674
        %v694 = vpop.f32.mrf.mxu0
        %v695 = vadd.f32 0.0, %v694
        %v696 = vpop.f32.mrf.mxu0
        %v697 = vadd.f32 0.0, %v696
        %698 = vmatmul.bf16.gmra.mxu0 %v677
        %v699 = vpop.f32.mrf.mxu0
        %v700 = vadd.f32 0.0, %v699
        %v701 = vpop.f32.mrf.mxu0
        %v702 = vadd.f32 0.0, %v701
        %703 = vdwg.mxu0
        %704 = vmatpush.bf16.msra.mxu0 0
        %705 = vmatpush.bf16.msra.mxu0 0
        %706 = vmatpush.bf16.msra.mxu0 0
        %707 = vmatpush.bf16.msra.mxu0 0
        %708 = vmatpush.bf16.msra.mxu0 0
        %709 = vmatpush.bf16.msra.mxu0 0
        %710 = vmatpush.bf16.msra.mxu0 0
        %711 = vmatpush.bf16.msra.mxu0 %v683
        %712 = vmatmul.bf16.gmra.mxu0 %v674
        %v713 = vpop.f32.mrf.mxu0
        %v714 = vadd.f32 0.0, %v713
        %v715 = vpop.f32.mrf.mxu0
        %v716 = vadd.f32 0.0, %v715
        %717 = vmatmul.bf16.gmra.mxu0 %v677
        %v718 = vpop.f32.mrf.mxu0
        %v719 = vadd.f32 0.0, %v718
        %v720 = vpop.f32.mrf.mxu0
        %v721 = vadd.f32 0.0, %v720
        %722 = vdwg.mxu0
        %v723 = vadd.f32 %v611, %v695
        %v724 = vadd.f32 %v630, %v714
        %v725 = vadd.f32 %v613, %v697
        %v726 = vadd.f32 %v632, %v716
        %v727 = vadd.f32 %v616, %v700
        %v728 = vadd.f32 %v635, %v719
        %v729 = vadd.f32 %v618, %v702
        %v730 = vadd.f32 %v637, %v721
        %v731 = vld [vmem:[%s2] sm:$0xff]
        %v732 = vld [vmem:[%s2 + $0x8] sm:$0xff]
        %v733 = vld [vmem:[%s2 + $0x10] sm:$0xff]
        %v734 = vld [vmem:[%s2 + $0x18] sm:$0xff]
        %736 = vset.pattern.permute.xlu0 0
        %737 = vperm.xlu0 %736, %v731
        %v738 = vpop.permute.xlu0 %737
        %741 = vset.pattern.permute.xlu0 0
        %742 = vperm.xlu0 %741, %v732
        %v743 = vpop.permute.xlu0 %742
        %746 = vset.pattern.permute.xlu0 0
        %747 = vperm.xlu0 %746, %v733
        %v748 = vpop.permute.xlu0 %747
        %751 = vset.pattern.permute.xlu0 0
        %752 = vperm.xlu0 %751, %v734
        %v753 = vpop.permute.xlu0 %752
        %v755 = vmul.f32 %v723, %v738
        %v756 = vmul.f32 %v724, %v738
        %v757 = vmul.f32 %v725, %v743
        %v758 = vmul.f32 %v726, %v743
        %v759 = vmul.f32 %v727, %v748
        %v760 = vmul.f32 %v728, %v748
        %v761 = vmul.f32 %v729, %v753
        %v762 = vmul.f32 %v730, %v753
        %v763 = vld [vmem:[%s3] sm:$0xff]
        %v764 = vld [vmem:[%s3 + $0x8] sm:$0xff]
        %v765 = vld [vmem:[%s3 + $0x10] sm:$0xff]
        %v766 = vld [vmem:[%s3 + $0x18] sm:$0xff]
        %768 = vset.pattern.permute.xlu0 0
        %769 = vperm.xlu0 %768, %v763
        %v770 = vpop.permute.xlu0 %769
        %773 = vset.pattern.permute.xlu0 0
        %774 = vperm.xlu0 %773, %v764
        %v775 = vpop.permute.xlu0 %774
        %778 = vset.pattern.permute.xlu0 0
        %779 = vperm.xlu0 %778, %v765
        %v780 = vpop.permute.xlu0 %779
        %783 = vset.pattern.permute.xlu0 0
        %784 = vperm.xlu0 %783, %v766
        %v785 = vpop.permute.xlu0 %784
        %v787 = vadd.f32 %v755, %v770
        %v788 = vadd.f32 %v756, %v770
        %v789 = vadd.f32 %v757, %v775
        %v790 = vadd.f32 %v758, %v775
        %v791 = vadd.f32 %v759, %v780
        %v792 = vadd.f32 %v760, %v780
        %v793 = vadd.f32 %v761, %v785
        %v794 = vadd.f32 %v762, %v785
        %v795 = vxor.u32 %v787, 2147483648
        %v796 = vxor.u32 %v788, 2147483648
        %v797 = vxor.u32 %v789, 2147483648
        %v798 = vxor.u32 %v790, 2147483648
        %v799 = vxor.u32 %v791, 2147483648
        %v800 = vxor.u32 %v792, 2147483648
        %v801 = vxor.u32 %v793, 2147483648
        %v802 = vxor.u32 %v794, 2147483648
        %v803 = vmul.f32 %v795, 1.442695
        %v804 = vpow.pop %v803
        %v805 = vmul.f32 %v796, 1.442695
        %v806 = vpow.pop %v805
        %v807 = vmul.f32 %v797, 1.442695
        %v808 = vpow.pop %v807
        %v809 = vmul.f32 %v798, 1.442695
        %v810 = vpow.pop %v809
        %v811 = vmul.f32 %v799, 1.442695
        %v812 = vpow.pop %v811
        %v813 = vmul.f32 %v800, 1.442695
        %v814 = vpow.pop %v813
        %v815 = vmul.f32 %v801, 1.442695
        %v816 = vpow.pop %v815
        %v817 = vmul.f32 %v802, 1.442695
        %v818 = vpow.pop %v817
        %v819 = vadd.f32 %v804, 1.0
        %v820 = vadd.f32 %v806, 1.0
        %v821 = vadd.f32 %v808, 1.0
        %v822 = vadd.f32 %v810, 1.0
        %v823 = vadd.f32 %v812, 1.0
        %v824 = vadd.f32 %v814, 1.0
        %v825 = vadd.f32 %v816, 1.0
        %v826 = vadd.f32 %v818, 1.0
        %v827 = vrcp.pop %v819
        %v828 = vmul.f32 %v819, %v827
        %v829 = vsub.f32 1.0, %v828
        %v830 = vmul.f32 %v827, %v829
        %v831 = vadd.f32 %v827, %v830
        %vm832 = vweird.f32 %v819
        %vm833 = vweird.f32 %v827
        %vm834 = vmor %vm832, %vm833
        %v835 = vsel %vm834, %v827, %v831
        %v836 = vand.u32 2147483647, %v819
        %vm837 = vcmp.eq.f32.partialorder %v836, 8.507059e+37
        %v838 = vand.u32 %v819, 2147483648
        %v839 = vor.u32 1.1754944e-38, %v838
        %v840 = vsel %vm837, %v839, %v835
        %v841 = vmul.f32 1.0, %v840
        %v842 = vrcp.pop %v820
        %v843 = vmul.f32 %v820, %v842
        %v844 = vsub.f32 1.0, %v843
        %v845 = vmul.f32 %v842, %v844
        %v846 = vadd.f32 %v842, %v845
        %vm847 = vweird.f32 %v820
        %vm848 = vweird.f32 %v842
        %vm849 = vmor %vm847, %vm848
        %v850 = vsel %vm849, %v842, %v846
        %v851 = vand.u32 2147483647, %v820
        %vm852 = vcmp.eq.f32.partialorder %v851, 8.507059e+37
        %v853 = vand.u32 %v820, 2147483648
        %v854 = vor.u32 1.1754944e-38, %v853
        %v855 = vsel %vm852, %v854, %v850
        %v856 = vmul.f32 1.0, %v855
        %v857 = vrcp.pop %v821
        %v858 = vmul.f32 %v821, %v857
        %v859 = vsub.f32 1.0, %v858
        %v860 = vmul.f32 %v857, %v859
        %v861 = vadd.f32 %v857, %v860
        %vm862 = vweird.f32 %v821
        %vm863 = vweird.f32 %v857
        %vm864 = vmor %vm862, %vm863
        %v865 = vsel %vm864, %v857, %v861
        %v866 = vand.u32 2147483647, %v821
        %vm867 = vcmp.eq.f32.partialorder %v866, 8.507059e+37
        %v868 = vand.u32 %v821, 2147483648
        %v869 = vor.u32 1.1754944e-38, %v868
        %v870 = vsel %vm867, %v869, %v865
        %v871 = vmul.f32 1.0, %v870
        %v872 = vrcp.pop %v822
        %v873 = vmul.f32 %v822, %v872
        %v874 = vsub.f32 1.0, %v873
        %v875 = vmul.f32 %v872, %v874
        %v876 = vadd.f32 %v872, %v875
        %vm877 = vweird.f32 %v822
        %vm878 = vweird.f32 %v872
        %vm879 = vmor %vm877, %vm878
        %v880 = vsel %vm879, %v872, %v876
        %v881 = vand.u32 2147483647, %v822
        %vm882 = vcmp.eq.f32.partialorder %v881, 8.507059e+37
        %v883 = vand.u32 %v822, 2147483648
        %v884 = vor.u32 1.1754944e-38, %v883
        %v885 = vsel %vm882, %v884, %v880
        %v886 = vmul.f32 1.0, %v885
        %v887 = vrcp.pop %v823
        %v888 = vmul.f32 %v823, %v887
        %v889 = vsub.f32 1.0, %v888
        %v890 = vmul.f32 %v887, %v889
        %v891 = vadd.f32 %v887, %v890
        %vm892 = vweird.f32 %v823
        %vm893 = vweird.f32 %v887
        %vm894 = vmor %vm892, %vm893
        %v895 = vsel %vm894, %v887, %v891
        %v896 = vand.u32 2147483647, %v823
        %vm897 = vcmp.eq.f32.partialorder %v896, 8.507059e+37
        %v898 = vand.u32 %v823, 2147483648
        %v899 = vor.u32 1.1754944e-38, %v898
        %v900 = vsel %vm897, %v899, %v895
        %v901 = vmul.f32 1.0, %v900
        %v902 = vrcp.pop %v824
        %v903 = vmul.f32 %v824, %v902
        %v904 = vsub.f32 1.0, %v903
        %v905 = vmul.f32 %v902, %v904
        %v906 = vadd.f32 %v902, %v905
        %vm907 = vweird.f32 %v824
        %vm908 = vweird.f32 %v902
        %vm909 = vmor %vm907, %vm908
        %v910 = vsel %vm909, %v902, %v906
        %v911 = vand.u32 2147483647, %v824
        %vm912 = vcmp.eq.f32.partialorder %v911, 8.507059e+37
        %v913 = vand.u32 %v824, 2147483648
        %v914 = vor.u32 1.1754944e-38, %v913
        %v915 = vsel %vm912, %v914, %v910
        %v916 = vmul.f32 1.0, %v915
        %v917 = vrcp.pop %v825
        %v918 = vmul.f32 %v825, %v917
        %v919 = vsub.f32 1.0, %v918
        %v920 = vmul.f32 %v917, %v919
        %v921 = vadd.f32 %v917, %v920
        %vm922 = vweird.f32 %v825
        %vm923 = vweird.f32 %v917
        %vm924 = vmor %vm922, %vm923
        %v925 = vsel %vm924, %v917, %v921
        %v926 = vand.u32 2147483647, %v825
        %vm927 = vcmp.eq.f32.partialorder %v926, 8.507059e+37
        %v928 = vand.u32 %v825, 2147483648
        %v929 = vor.u32 1.1754944e-38, %v928
        %v930 = vsel %vm927, %v929, %v925
        %v931 = vmul.f32 1.0, %v930
        %v932 = vrcp.pop %v826
        %v933 = vmul.f32 %v826, %v932
        %v934 = vsub.f32 1.0, %v933
        %v935 = vmul.f32 %v932, %v934
        %v936 = vadd.f32 %v932, %v935
        %vm937 = vweird.f32 %v826
        %vm938 = vweird.f32 %v932
        %vm939 = vmor %vm937, %vm938
        %v940 = vsel %vm939, %v932, %v936
        %v941 = vand.u32 2147483647, %v826
        %vm942 = vcmp.eq.f32.partialorder %v941, 8.507059e+37
        %v943 = vand.u32 %v826, 2147483648
        %v944 = vor.u32 1.1754944e-38, %v943
        %v945 = vsel %vm942, %v944, %v940
        %v946 = vmul.f32 1.0, %v945
        %v947 = vmul.f32 %v787, %v841
        %v948 = vmul.f32 %v788, %v856
        %v949 = vmul.f32 %v789, %v871
        %v950 = vmul.f32 %v790, %v886
        %v951 = vmul.f32 %v791, %v901
        %v952 = vmul.f32 %v792, %v916
        %v953 = vmul.f32 %v793, %v931
        %v954 = vmul.f32 %v794, %v946
        %v955 = vpack.c.bf16 %v949, %v947
        %v956 = vpack.c.bf16 %v950, %v948
        %v957 = vpack.c.bf16 %v953, %v951
        %v958 = vpack.c.bf16 %v954, %v952
        %v959 = vld [vmem:[#allocation2] sm:$0xff]
        %v960 = vld [vmem:[#allocation2 + $0x8] sm:$0xff]
        %v961 = vld [vmem:[#allocation2 + $0x10] sm:$0xff]
        %v962 = vld [vmem:[#allocation2 + $0x18] sm:$0xff]
        %v963 = vld [vmem:[#allocation2 + $0x20] sm:$0xff]
        %v964 = vld [vmem:[#allocation2 + $0x28] sm:$0xff]
        %v965 = vld [vmem:[#allocation2 + $0x30] sm:$0xff]
        %v966 = vld [vmem:[#allocation2 + $0x38] sm:$0xff]
        %v967 = vld [vmem:[#allocation2 + $0x40] sm:$0xff]
        %v968 = vld [vmem:[#allocation2 + $0x48] sm:$0xff]
        %v969 = vld [vmem:[#allocation2 + $0x50] sm:$0xff]
        %v970 = vld [vmem:[#allocation2 + $0x58] sm:$0xff]
        %v971 = vld [vmem:[#allocation2 + $0x60] sm:$0xff]
        %v972 = vld [vmem:[#allocation2 + $0x68] sm:$0xff]
        %v973 = vld [vmem:[#allocation2 + $0x70] sm:$0xff]
        %v974 = vld [vmem:[#allocation2 + $0x78] sm:$0xff]
        %v975 = vld [vmem:[#allocation2 + $0x80] sm:$0xff]
        %v976 = vld [vmem:[#allocation2 + $0x88] sm:$0xff]
        %v977 = vld [vmem:[#allocation2 + $0x90] sm:$0xff]
        %v978 = vld [vmem:[#allocation2 + $0x98] sm:$0xff]
        %v979 = vld [vmem:[#allocation2 + $0xa0] sm:$0xff]
        %v980 = vld [vmem:[#allocation2 + $0xa8] sm:$0xff]
        %v981 = vld [vmem:[#allocation2 + $0xb0] sm:$0xff]
        %v982 = vld [vmem:[#allocation2 + $0xb8] sm:$0xff]
        %v983 = vld [vmem:[#allocation2 + $0xc0] sm:$0xff]
        %v984 = vld [vmem:[#allocation2 + $0xc8] sm:$0xff]
        %v985 = vld [vmem:[#allocation2 + $0xd0] sm:$0xff]
        %v986 = vld [vmem:[#allocation2 + $0xd8] sm:$0xff]
        %v987 = vld [vmem:[#allocation2 + $0xe0] sm:$0xff]
        %v988 = vld [vmem:[#allocation2 + $0xe8] sm:$0xff]
        %v989 = vld [vmem:[#allocation2 + $0xf0] sm:$0xff]
        %v990 = vld [vmem:[#allocation2 + $0xf8] sm:$0xff]
        %v991 = vld [vmem:[#allocation2 + $0x100] sm:$0xff]
        %v992 = vld [vmem:[#allocation2 + $0x108] sm:$0xff]
        %v993 = vld [vmem:[#allocation2 + $0x110] sm:$0xff]
        %v994 = vld [vmem:[#allocation2 + $0x118] sm:$0xff]
        %v995 = vld [vmem:[#allocation2 + $0x120] sm:$0xff]
        %v996 = vld [vmem:[#allocation2 + $0x128] sm:$0xff]
        %v997 = vld [vmem:[#allocation2 + $0x130] sm:$0xff]
        %v998 = vld [vmem:[#allocation2 + $0x138] sm:$0xff]
        %v999 = vld [vmem:[#allocation2 + $0x140] sm:$0xff]
        %v1000 = vld [vmem:[#allocation2 + $0x148] sm:$0xff]
        %v1001 = vld [vmem:[#allocation2 + $0x150] sm:$0xff]
        %v1002 = vld [vmem:[#allocation2 + $0x158] sm:$0xff]
        %v1003 = vld [vmem:[#allocation2 + $0x160] sm:$0xff]
        %v1004 = vld [vmem:[#allocation2 + $0x168] sm:$0xff]
        %v1005 = vld [vmem:[#allocation2 + $0x170] sm:$0xff]
        %v1006 = vld [vmem:[#allocation2 + $0x178] sm:$0xff]
        %v1007 = vld [vmem:[#allocation2 + $0x180] sm:$0xff]
        %v1008 = vld [vmem:[#allocation2 + $0x188] sm:$0xff]
        %v1009 = vld [vmem:[#allocation2 + $0x190] sm:$0xff]
        %v1010 = vld [vmem:[#allocation2 + $0x198] sm:$0xff]
        %v1011 = vld [vmem:[#allocation2 + $0x1a0] sm:$0xff]
        %v1012 = vld [vmem:[#allocation2 + $0x1a8] sm:$0xff]
        %v1013 = vld [vmem:[#allocation2 + $0x1b0] sm:$0xff]
        %v1014 = vld [vmem:[#allocation2 + $0x1b8] sm:$0xff]
        %v1015 = vld [vmem:[#allocation2 + $0x1c0] sm:$0xff]
        %v1016 = vld [vmem:[#allocation2 + $0x1c8] sm:$0xff]
        %v1017 = vld [vmem:[#allocation2 + $0x1d0] sm:$0xff]
        %v1018 = vld [vmem:[#allocation2 + $0x1d8] sm:$0xff]
        %v1019 = vld [vmem:[#allocation2 + $0x1e0] sm:$0xff]
        %v1020 = vld [vmem:[#allocation2 + $0x1e8] sm:$0xff]
        %v1021 = vld [vmem:[#allocation2 + $0x1f0] sm:$0xff]
        %v1022 = vld [vmem:[#allocation2 + $0x1f8] sm:$0xff]
        %v1023 = vld [vmem:[#allocation2 + $0x200] sm:$0xff]
        %v1024 = vld [vmem:[#allocation2 + $0x208] sm:$0xff]
        %v1025 = vld [vmem:[#allocation2 + $0x210] sm:$0xff]
        %v1026 = vld [vmem:[#allocation2 + $0x218] sm:$0xff]
        %v1027 = vld [vmem:[#allocation2 + $0x220] sm:$0xff]
        %v1028 = vld [vmem:[#allocation2 + $0x228] sm:$0xff]
        %v1029 = vld [vmem:[#allocation2 + $0x230] sm:$0xff]
        %v1030 = vld [vmem:[#allocation2 + $0x238] sm:$0xff]
        %v1031 = vld [vmem:[#allocation2 + $0x240] sm:$0xff]
        %v1032 = vld [vmem:[#allocation2 + $0x248] sm:$0xff]
        %v1033 = vld [vmem:[#allocation2 + $0x250] sm:$0xff]
        %v1034 = vld [vmem:[#allocation2 + $0x258] sm:$0xff]
        %v1035 = vld [vmem:[#allocation2 + $0x260] sm:$0xff]
        %v1036 = vld [vmem:[#allocation2 + $0x268] sm:$0xff]
        %v1037 = vld [vmem:[#allocation2 + $0x270] sm:$0xff]
        %v1038 = vld [vmem:[#allocation2 + $0x278] sm:$0xff]
        %v1039 = vld [vmem:[#allocation2 + $0x280] sm:$0xff]
        %v1040 = vld [vmem:[#allocation2 + $0x288] sm:$0xff]
        %v1041 = vld [vmem:[#allocation2 + $0x290] sm:$0xff]
        %v1042 = vld [vmem:[#allocation2 + $0x298] sm:$0xff]
        %v1043 = vld [vmem:[#allocation2 + $0x2a0] sm:$0xff]
        %v1044 = vld [vmem:[#allocation2 + $0x2a8] sm:$0xff]
        %v1045 = vld [vmem:[#allocation2 + $0x2b0] sm:$0xff]
        %v1046 = vld [vmem:[#allocation2 + $0x2b8] sm:$0xff]
        %v1047 = vld [vmem:[#allocation2 + $0x2c0] sm:$0xff]
        %v1048 = vld [vmem:[#allocation2 + $0x2c8] sm:$0xff]
        %v1049 = vld [vmem:[#allocation2 + $0x2d0] sm:$0xff]
        %v1050 = vld [vmem:[#allocation2 + $0x2d8] sm:$0xff]
        %v1051 = vld [vmem:[#allocation2 + $0x2e0] sm:$0xff]
        %v1052 = vld [vmem:[#allocation2 + $0x2e8] sm:$0xff]
        %v1053 = vld [vmem:[#allocation2 + $0x2f0] sm:$0xff]
        %v1054 = vld [vmem:[#allocation2 + $0x2f8] sm:$0xff]
        %v1055 = vld [vmem:[#allocation2 + $0x300] sm:$0xff]
        %v1056 = vld [vmem:[#allocation2 + $0x308] sm:$0xff]
        %v1057 = vld [vmem:[#allocation2 + $0x310] sm:$0xff]
        %v1058 = vld [vmem:[#allocation2 + $0x318] sm:$0xff]
        %v1059 = vld [vmem:[#allocation2 + $0x320] sm:$0xff]
        %v1060 = vld [vmem:[#allocation2 + $0x328] sm:$0xff]
        %v1061 = vld [vmem:[#allocation2 + $0x330] sm:$0xff]
        %v1062 = vld [vmem:[#allocation2 + $0x338] sm:$0xff]
        %v1063 = vld [vmem:[#allocation2 + $0x340] sm:$0xff]
        %v1064 = vld [vmem:[#allocation2 + $0x348] sm:$0xff]
        %v1065 = vld [vmem:[#allocation2 + $0x350] sm:$0xff]
        %v1066 = vld [vmem:[#allocation2 + $0x358] sm:$0xff]
        %v1067 = vld [vmem:[#allocation2 + $0x360] sm:$0xff]
        %v1068 = vld [vmem:[#allocation2 + $0x368] sm:$0xff]
        %v1069 = vld [vmem:[#allocation2 + $0x370] sm:$0xff]
        %v1070 = vld [vmem:[#allocation2 + $0x378] sm:$0xff]
        %v1071 = vld [vmem:[#allocation2 + $0x380] sm:$0xff]
        %v1072 = vld [vmem:[#allocation2 + $0x388] sm:$0xff]
        %v1073 = vld [vmem:[#allocation2 + $0x390] sm:$0xff]
        %v1074 = vld [vmem:[#allocation2 + $0x398] sm:$0xff]
        %v1075 = vld [vmem:[#allocation2 + $0x3a0] sm:$0xff]
        %v1076 = vld [vmem:[#allocation2 + $0x3a8] sm:$0xff]
        %v1077 = vld [vmem:[#allocation2 + $0x3b0] sm:$0xff]
        %v1078 = vld [vmem:[#allocation2 + $0x3b8] sm:$0xff]
        %v1079 = vld [vmem:[#allocation2 + $0x3c0] sm:$0xff]
        %v1080 = vld [vmem:[#allocation2 + $0x3c8] sm:$0xff]
        %v1081 = vld [vmem:[#allocation2 + $0x3d0] sm:$0xff]
        %v1082 = vld [vmem:[#allocation2 + $0x3d8] sm:$0xff]
        %v1083 = vld [vmem:[#allocation2 + $0x3e0] sm:$0xff]
        %v1084 = vld [vmem:[#allocation2 + $0x3e8] sm:$0xff]
        %v1085 = vld [vmem:[#allocation2 + $0x3f0] sm:$0xff]
        %v1086 = vld [vmem:[#allocation2 + $0x3f8] sm:$0xff]
        %v1215 = vunpack.c.l.b16 %v959
        %v1216 = vunpack.c.h.b16 %v959
        %v1217 = vunpack.c.l.b16 %v960
        %v1218 = vunpack.c.h.b16 %v960
        %v1219 = vunpack.c.l.b16 %v961
        %v1220 = vunpack.c.h.b16 %v961
        %v1221 = vunpack.c.l.b16 %v962
        %v1222 = vunpack.c.h.b16 %v962
        %v1223 = vunpack.c.l.b16 %v963
        %v1224 = vunpack.c.h.b16 %v963
        %v1225 = vunpack.c.l.b16 %v964
        %v1226 = vunpack.c.h.b16 %v964
        %v1227 = vunpack.c.l.b16 %v965
        %v1228 = vunpack.c.h.b16 %v965
        %v1229 = vunpack.c.l.b16 %v966
        %v1230 = vunpack.c.h.b16 %v966
        %v1231 = vunpack.c.l.b16 %v967
        %v1232 = vunpack.c.h.b16 %v967
        %v1233 = vunpack.c.l.b16 %v968
        %v1234 = vunpack.c.h.b16 %v968
        %v1235 = vunpack.c.l.b16 %v969
        %v1236 = vunpack.c.h.b16 %v969
        %v1237 = vunpack.c.l.b16 %v970
        %v1238 = vunpack.c.h.b16 %v970
        %v1239 = vunpack.c.l.b16 %v971
        %v1240 = vunpack.c.h.b16 %v971
        %v1241 = vunpack.c.l.b16 %v972
        %v1242 = vunpack.c.h.b16 %v972
        %v1243 = vunpack.c.l.b16 %v973
        %v1244 = vunpack.c.h.b16 %v973
        %v1245 = vunpack.c.l.b16 %v974
        %v1246 = vunpack.c.h.b16 %v974
        %v1247 = vunpack.c.l.b16 %v975
        %v1248 = vunpack.c.h.b16 %v975
        %v1249 = vunpack.c.l.b16 %v976
        %v1250 = vunpack.c.h.b16 %v976
        %v1251 = vunpack.c.l.b16 %v977
        %v1252 = vunpack.c.h.b16 %v977
        %v1253 = vunpack.c.l.b16 %v978
        %v1254 = vunpack.c.h.b16 %v978
        %v1255 = vunpack.c.l.b16 %v979
        %v1256 = vunpack.c.h.b16 %v979
        %v1257 = vunpack.c.l.b16 %v980
        %v1258 = vunpack.c.h.b16 %v980
        %v1259 = vunpack.c.l.b16 %v981
        %v1260 = vunpack.c.h.b16 %v981
        %v1261 = vunpack.c.l.b16 %v982
        %v1262 = vunpack.c.h.b16 %v982
        %v1263 = vunpack.c.l.b16 %v983
        %v1264 = vunpack.c.h.b16 %v983
        %v1265 = vunpack.c.l.b16 %v984
        %v1266 = vunpack.c.h.b16 %v984
        %v1267 = vunpack.c.l.b16 %v985
        %v1268 = vunpack.c.h.b16 %v985
        %v1269 = vunpack.c.l.b16 %v986
        %v1270 = vunpack.c.h.b16 %v986
        %v1271 = vunpack.c.l.b16 %v987
        %v1272 = vunpack.c.h.b16 %v987
        %v1273 = vunpack.c.l.b16 %v988
        %v1274 = vunpack.c.h.b16 %v988
        %v1275 = vunpack.c.l.b16 %v989
        %v1276 = vunpack.c.h.b16 %v989
        %v1277 = vunpack.c.l.b16 %v990
        %v1278 = vunpack.c.h.b16 %v990
        %v1279 = vunpack.c.l.b16 %v991
        %v1280 = vunpack.c.h.b16 %v991
        %v1281 = vunpack.c.l.b16 %v992
        %v1282 = vunpack.c.h.b16 %v992
        %v1283 = vunpack.c.l.b16 %v993
        %v1284 = vunpack.c.h.b16 %v993
        %v1285 = vunpack.c.l.b16 %v994
        %v1286 = vunpack.c.h.b16 %v994
        %v1287 = vunpack.c.l.b16 %v995
        %v1288 = vunpack.c.h.b16 %v995
        %v1289 = vunpack.c.l.b16 %v996
        %v1290 = vunpack.c.h.b16 %v996
        %v1291 = vunpack.c.l.b16 %v997
        %v1292 = vunpack.c.h.b16 %v997
        %v1293 = vunpack.c.l.b16 %v998
        %v1294 = vunpack.c.h.b16 %v998
        %v1295 = vunpack.c.l.b16 %v999
        %v1296 = vunpack.c.h.b16 %v999
        %v1297 = vunpack.c.l.b16 %v1000
        %v1298 = vunpack.c.h.b16 %v1000
        %v1299 = vunpack.c.l.b16 %v1001
        %v1300 = vunpack.c.h.b16 %v1001
        %v1301 = vunpack.c.l.b16 %v1002
        %v1302 = vunpack.c.h.b16 %v1002
        %v1303 = vunpack.c.l.b16 %v1003
        %v1304 = vunpack.c.h.b16 %v1003
        %v1305 = vunpack.c.l.b16 %v1004
        %v1306 = vunpack.c.h.b16 %v1004
        %v1307 = vunpack.c.l.b16 %v1005
        %v1308 = vunpack.c.h.b16 %v1005
        %v1309 = vunpack.c.l.b16 %v1006
        %v1310 = vunpack.c.h.b16 %v1006
        %v1311 = vunpack.c.l.b16 %v1007
        %v1312 = vunpack.c.h.b16 %v1007
        %v1313 = vunpack.c.l.b16 %v1008
        %v1314 = vunpack.c.h.b16 %v1008
        %v1315 = vunpack.c.l.b16 %v1009
        %v1316 = vunpack.c.h.b16 %v1009
        %v1317 = vunpack.c.l.b16 %v1010
        %v1318 = vunpack.c.h.b16 %v1010
        %v1319 = vunpack.c.l.b16 %v1011
        %v1320 = vunpack.c.h.b16 %v1011
        %v1321 = vunpack.c.l.b16 %v1012
        %v1322 = vunpack.c.h.b16 %v1012
        %v1323 = vunpack.c.l.b16 %v1013
        %v1324 = vunpack.c.h.b16 %v1013
        %v1325 = vunpack.c.l.b16 %v1014
        %v1326 = vunpack.c.h.b16 %v1014
        %v1327 = vunpack.c.l.b16 %v1015
        %v1328 = vunpack.c.h.b16 %v1015
        %v1329 = vunpack.c.l.b16 %v1016
        %v1330 = vunpack.c.h.b16 %v1016
        %v1331 = vunpack.c.l.b16 %v1017
        %v1332 = vunpack.c.h.b16 %v1017
        %v1333 = vunpack.c.l.b16 %v1018
        %v1334 = vunpack.c.h.b16 %v1018
        %v1335 = vunpack.c.l.b16 %v1019
        %v1336 = vunpack.c.h.b16 %v1019
        %v1337 = vunpack.c.l.b16 %v1020
        %v1338 = vunpack.c.h.b16 %v1020
        %v1339 = vunpack.c.l.b16 %v1021
        %v1340 = vunpack.c.h.b16 %v1021
        %v1341 = vunpack.c.l.b16 %v1022
        %v1342 = vunpack.c.h.b16 %v1022
        %v1343 = vunpack.c.l.b16 %v1023
        %v1344 = vunpack.c.h.b16 %v1023
        %v1345 = vunpack.c.l.b16 %v1024
        %v1346 = vunpack.c.h.b16 %v1024
        %v1347 = vunpack.c.l.b16 %v1025
        %v1348 = vunpack.c.h.b16 %v1025
        %v1349 = vunpack.c.l.b16 %v1026
        %v1350 = vunpack.c.h.b16 %v1026
        %v1351 = vunpack.c.l.b16 %v1027
        %v1352 = vunpack.c.h.b16 %v1027
        %v1353 = vunpack.c.l.b16 %v1028
        %v1354 = vunpack.c.h.b16 %v1028
        %v1355 = vunpack.c.l.b16 %v1029
        %v1356 = vunpack.c.h.b16 %v1029
        %v1357 = vunpack.c.l.b16 %v1030
        %v1358 = vunpack.c.h.b16 %v1030
        %v1359 = vunpack.c.l.b16 %v1031
        %v1360 = vunpack.c.h.b16 %v1031
        %v1361 = vunpack.c.l.b16 %v1032
        %v1362 = vunpack.c.h.b16 %v1032
        %v1363 = vunpack.c.l.b16 %v1033
        %v1364 = vunpack.c.h.b16 %v1033
        %v1365 = vunpack.c.l.b16 %v1034
        %v1366 = vunpack.c.h.b16 %v1034
        %v1367 = vunpack.c.l.b16 %v1035
        %v1368 = vunpack.c.h.b16 %v1035
        %v1369 = vunpack.c.l.b16 %v1036
        %v1370 = vunpack.c.h.b16 %v1036
        %v1371 = vunpack.c.l.b16 %v1037
        %v1372 = vunpack.c.h.b16 %v1037
        %v1373 = vunpack.c.l.b16 %v1038
        %v1374 = vunpack.c.h.b16 %v1038
        %v1375 = vunpack.c.l.b16 %v1039
        %v1376 = vunpack.c.h.b16 %v1039
        %v1377 = vunpack.c.l.b16 %v1040
        %v1378 = vunpack.c.h.b16 %v1040
        %v1379 = vunpack.c.l.b16 %v1041
        %v1380 = vunpack.c.h.b16 %v1041
        %v1381 = vunpack.c.l.b16 %v1042
        %v1382 = vunpack.c.h.b16 %v1042
        %v1383 = vunpack.c.l.b16 %v1043
        %v1384 = vunpack.c.h.b16 %v1043
        %v1385 = vunpack.c.l.b16 %v1044
        %v1386 = vunpack.c.h.b16 %v1044
        %v1387 = vunpack.c.l.b16 %v1045
        %v1388 = vunpack.c.h.b16 %v1045
        %v1389 = vunpack.c.l.b16 %v1046
        %v1390 = vunpack.c.h.b16 %v1046
        %v1391 = vunpack.c.l.b16 %v1047
        %v1392 = vunpack.c.h.b16 %v1047
        %v1393 = vunpack.c.l.b16 %v1048
        %v1394 = vunpack.c.h.b16 %v1048
        %v1395 = vunpack.c.l.b16 %v1049
        %v1396 = vunpack.c.h.b16 %v1049
        %v1397 = vunpack.c.l.b16 %v1050
        %v1398 = vunpack.c.h.b16 %v1050
        %v1399 = vunpack.c.l.b16 %v1051
        %v1400 = vunpack.c.h.b16 %v1051
        %v1401 = vunpack.c.l.b16 %v1052
        %v1402 = vunpack.c.h.b16 %v1052
        %v1403 = vunpack.c.l.b16 %v1053
        %v1404 = vunpack.c.h.b16 %v1053
        %v1405 = vunpack.c.l.b16 %v1054
        %v1406 = vunpack.c.h.b16 %v1054
        %v1407 = vunpack.c.l.b16 %v1055
        %v1408 = vunpack.c.h.b16 %v1055
        %v1409 = vunpack.c.l.b16 %v1056
        %v1410 = vunpack.c.h.b16 %v1056
        %v1411 = vunpack.c.l.b16 %v1057
        %v1412 = vunpack.c.h.b16 %v1057
        %v1413 = vunpack.c.l.b16 %v1058
        %v1414 = vunpack.c.h.b16 %v1058
        %v1415 = vunpack.c.l.b16 %v1059
        %v1416 = vunpack.c.h.b16 %v1059
        %v1417 = vunpack.c.l.b16 %v1060
        %v1418 = vunpack.c.h.b16 %v1060
        %v1419 = vunpack.c.l.b16 %v1061
        %v1420 = vunpack.c.h.b16 %v1061
        %v1421 = vunpack.c.l.b16 %v1062
        %v1422 = vunpack.c.h.b16 %v1062
        %v1423 = vunpack.c.l.b16 %v1063
        %v1424 = vunpack.c.h.b16 %v1063
        %v1425 = vunpack.c.l.b16 %v1064
        %v1426 = vunpack.c.h.b16 %v1064
        %v1427 = vunpack.c.l.b16 %v1065
        %v1428 = vunpack.c.h.b16 %v1065
        %v1429 = vunpack.c.l.b16 %v1066
        %v1430 = vunpack.c.h.b16 %v1066
        %v1431 = vunpack.c.l.b16 %v1067
        %v1432 = vunpack.c.h.b16 %v1067
        %v1433 = vunpack.c.l.b16 %v1068
        %v1434 = vunpack.c.h.b16 %v1068
        %v1435 = vunpack.c.l.b16 %v1069
        %v1436 = vunpack.c.h.b16 %v1069
        %v1437 = vunpack.c.l.b16 %v1070
        %v1438 = vunpack.c.h.b16 %v1070
        %v1439 = vunpack.c.l.b16 %v1071
        %v1440 = vunpack.c.h.b16 %v1071
        %v1441 = vunpack.c.l.b16 %v1072
        %v1442 = vunpack.c.h.b16 %v1072
        %v1443 = vunpack.c.l.b16 %v1073
        %v1444 = vunpack.c.h.b16 %v1073
        %v1445 = vunpack.c.l.b16 %v1074
        %v1446 = vunpack.c.h.b16 %v1074
        %v1447 = vunpack.c.l.b16 %v1075
        %v1448 = vunpack.c.h.b16 %v1075
        %v1449 = vunpack.c.l.b16 %v1076
        %v1450 = vunpack.c.h.b16 %v1076
        %v1451 = vunpack.c.l.b16 %v1077
        %v1452 = vunpack.c.h.b16 %v1077
        %v1453 = vunpack.c.l.b16 %v1078
        %v1454 = vunpack.c.h.b16 %v1078
        %v1455 = vunpack.c.l.b16 %v1079
        %v1456 = vunpack.c.h.b16 %v1079
        %v1457 = vunpack.c.l.b16 %v1080
        %v1458 = vunpack.c.h.b16 %v1080
        %v1459 = vunpack.c.l.b16 %v1081
        %v1460 = vunpack.c.h.b16 %v1081
        %v1461 = vunpack.c.l.b16 %v1082
        %v1462 = vunpack.c.h.b16 %v1082
        %v1463 = vunpack.c.l.b16 %v1083
        %v1464 = vunpack.c.h.b16 %v1083
        %v1465 = vunpack.c.l.b16 %v1084
        %v1466 = vunpack.c.h.b16 %v1084
        %v1467 = vunpack.c.l.b16 %v1085
        %v1468 = vunpack.c.h.b16 %v1085
        %v1469 = vunpack.c.l.b16 %v1086
        %v1470 = vunpack.c.h.b16 %v1086
        %v1471 = vpack.c.b16 %v1223, %v1215
        %v1472 = vpack.c.b16 %v1224, %v1216
        %v1473 = vpack.c.b16 %v1225, %v1217
        %v1474 = vpack.c.b16 %v1226, %v1218
        %v1475 = vpack.c.b16 %v1227, %v1219
        %v1476 = vpack.c.b16 %v1228, %v1220
        %v1477 = vpack.c.b16 %v1229, %v1221
        %v1478 = vpack.c.b16 %v1230, %v1222
        %v1479 = vpack.c.b16 %v1239, %v1231
        %v1480 = vpack.c.b16 %v1240, %v1232
        %v1481 = vpack.c.b16 %v1241, %v1233
        %v1482 = vpack.c.b16 %v1242, %v1234
        %v1483 = vpack.c.b16 %v1243, %v1235
        %v1484 = vpack.c.b16 %v1244, %v1236
        %v1485 = vpack.c.b16 %v1245, %v1237
        %v1486 = vpack.c.b16 %v1246, %v1238
        %v1487 = vpack.c.b16 %v1255, %v1247
        %v1488 = vpack.c.b16 %v1256, %v1248
        %v1489 = vpack.c.b16 %v1257, %v1249
        %v1490 = vpack.c.b16 %v1258, %v1250
        %v1491 = vpack.c.b16 %v1259, %v1251
        %v1492 = vpack.c.b16 %v1260, %v1252
        %v1493 = vpack.c.b16 %v1261, %v1253
        %v1494 = vpack.c.b16 %v1262, %v1254
        %v1495 = vpack.c.b16 %v1271, %v1263
        %v1496 = vpack.c.b16 %v1272, %v1264
        %v1497 = vpack.c.b16 %v1273, %v1265
        %v1498 = vpack.c.b16 %v1274, %v1266
        %v1499 = vpack.c.b16 %v1275, %v1267
        %v1500 = vpack.c.b16 %v1276, %v1268
        %v1501 = vpack.c.b16 %v1277, %v1269
        %v1502 = vpack.c.b16 %v1278, %v1270
        %v1503 = vpack.c.b16 %v1287, %v1279
        %v1504 = vpack.c.b16 %v1288, %v1280
        %v1505 = vpack.c.b16 %v1289, %v1281
        %v1506 = vpack.c.b16 %v1290, %v1282
        %v1507 = vpack.c.b16 %v1291, %v1283
        %v1508 = vpack.c.b16 %v1292, %v1284
        %v1509 = vpack.c.b16 %v1293, %v1285
        %v1510 = vpack.c.b16 %v1294, %v1286
        %v1511 = vpack.c.b16 %v1303, %v1295
        %v1512 = vpack.c.b16 %v1304, %v1296
        %v1513 = vpack.c.b16 %v1305, %v1297
        %v1514 = vpack.c.b16 %v1306, %v1298
        %v1515 = vpack.c.b16 %v1307, %v1299
        %v1516 = vpack.c.b16 %v1308, %v1300
        %v1517 = vpack.c.b16 %v1309, %v1301
        %v1518 = vpack.c.b16 %v1310, %v1302
        %v1519 = vpack.c.b16 %v1319, %v1311
        %v1520 = vpack.c.b16 %v1320, %v1312
        %v1521 = vpack.c.b16 %v1321, %v1313
        %v1522 = vpack.c.b16 %v1322, %v1314
        %v1523 = vpack.c.b16 %v1323, %v1315
        %v1524 = vpack.c.b16 %v1324, %v1316
        %v1525 = vpack.c.b16 %v1325, %v1317
        %v1526 = vpack.c.b16 %v1326, %v1318
        %v1527 = vpack.c.b16 %v1335, %v1327
        %v1528 = vpack.c.b16 %v1336, %v1328
        %v1529 = vpack.c.b16 %v1337, %v1329
        %v1530 = vpack.c.b16 %v1338, %v1330
        %v1531 = vpack.c.b16 %v1339, %v1331
        %v1532 = vpack.c.b16 %v1340, %v1332
        %v1533 = vpack.c.b16 %v1341, %v1333
        %v1534 = vpack.c.b16 %v1342, %v1334
        %v1535 = vpack.c.b16 %v1351, %v1343
        %v1536 = vpack.c.b16 %v1352, %v1344
        %v1537 = vpack.c.b16 %v1353, %v1345
        %v1538 = vpack.c.b16 %v1354, %v1346
        %v1539 = vpack.c.b16 %v1355, %v1347
        %v1540 = vpack.c.b16 %v1356, %v1348
        %v1541 = vpack.c.b16 %v1357, %v1349
        %v1542 = vpack.c.b16 %v1358, %v1350
        %v1543 = vpack.c.b16 %v1367, %v1359
        %v1544 = vpack.c.b16 %v1368, %v1360
        %v1545 = vpack.c.b16 %v1369, %v1361
        %v1546 = vpack.c.b16 %v1370, %v1362
        %v1547 = vpack.c.b16 %v1371, %v1363
        %v1548 = vpack.c.b16 %v1372, %v1364
        %v1549 = vpack.c.b16 %v1373, %v1365
        %v1550 = vpack.c.b16 %v1374, %v1366
        %v1551 = vpack.c.b16 %v1383, %v1375
        %v1552 = vpack.c.b16 %v1384, %v1376
        %v1553 = vpack.c.b16 %v1385, %v1377
        %v1554 = vpack.c.b16 %v1386, %v1378
        %v1555 = vpack.c.b16 %v1387, %v1379
        %v1556 = vpack.c.b16 %v1388, %v1380
        %v1557 = vpack.c.b16 %v1389, %v1381
        %v1558 = vpack.c.b16 %v1390, %v1382
        %v1559 = vpack.c.b16 %v1399, %v1391
        %v1560 = vpack.c.b16 %v1400, %v1392
        %v1561 = vpack.c.b16 %v1401, %v1393
        %v1562 = vpack.c.b16 %v1402, %v1394
        %v1563 = vpack.c.b16 %v1403, %v1395
        %v1564 = vpack.c.b16 %v1404, %v1396
        %v1565 = vpack.c.b16 %v1405, %v1397
        %v1566 = vpack.c.b16 %v1406, %v1398
        %v1567 = vpack.c.b16 %v1415, %v1407
        %v1568 = vpack.c.b16 %v1416, %v1408
        %v1569 = vpack.c.b16 %v1417, %v1409
        %v1570 = vpack.c.b16 %v1418, %v1410
        %v1571 = vpack.c.b16 %v1419, %v1411
        %v1572 = vpack.c.b16 %v1420, %v1412
        %v1573 = vpack.c.b16 %v1421, %v1413
        %v1574 = vpack.c.b16 %v1422, %v1414
        %v1575 = vpack.c.b16 %v1431, %v1423
        %v1576 = vpack.c.b16 %v1432, %v1424
        %v1577 = vpack.c.b16 %v1433, %v1425
        %v1578 = vpack.c.b16 %v1434, %v1426
        %v1579 = vpack.c.b16 %v1435, %v1427
        %v1580 = vpack.c.b16 %v1436, %v1428
        %v1581 = vpack.c.b16 %v1437, %v1429
        %v1582 = vpack.c.b16 %v1438, %v1430
        %v1583 = vpack.c.b16 %v1447, %v1439
        %v1584 = vpack.c.b16 %v1448, %v1440
        %v1585 = vpack.c.b16 %v1449, %v1441
        %v1586 = vpack.c.b16 %v1450, %v1442
        %v1587 = vpack.c.b16 %v1451, %v1443
        %v1588 = vpack.c.b16 %v1452, %v1444
        %v1589 = vpack.c.b16 %v1453, %v1445
        %v1590 = vpack.c.b16 %v1454, %v1446
        %v1591 = vpack.c.b16 %v1463, %v1455
        %v1592 = vpack.c.b16 %v1464, %v1456
        %v1593 = vpack.c.b16 %v1465, %v1457
        %v1594 = vpack.c.b16 %v1466, %v1458
        %v1595 = vpack.c.b16 %v1467, %v1459
        %v1596 = vpack.c.b16 %v1468, %v1460
        %v1597 = vpack.c.b16 %v1469, %v1461
        %v1598 = vpack.c.b16 %v1470, %v1462
        %1727 = vmatpush.bf16.msra.mxu0 %v1527
        %1728 = vmatpush.bf16.msra.mxu0 %v1519
        %1729 = vmatpush.bf16.msra.mxu0 %v1511
        %1730 = vmatpush.bf16.msra.mxu0 %v1503
        %1731 = vmatpush.bf16.msra.mxu0 %v1495
        %1732 = vmatpush.bf16.msra.mxu0 %v1487
        %1733 = vmatpush.bf16.msra.mxu0 %v1479
        %1734 = vmatpush.bf16.msra.mxu0 %v1471
        %1735 = vmatmul.bf16.gmra.mxu0 %v955
        %v1736 = vpop.f32.mrf.mxu0
        %v1737 = vadd.f32 0.0, %v1736
        %v1738 = vpop.f32.mrf.mxu0
        %v1739 = vadd.f32 0.0, %v1738
        %1740 = vmatmul.bf16.gmra.mxu0 %v957
        %v1741 = vpop.f32.mrf.mxu0
        %v1742 = vadd.f32 0.0, %v1741
        %v1743 = vpop.f32.mrf.mxu0
        %v1744 = vadd.f32 0.0, %v1743
        %1745 = vdwg.mxu0
        %1746 = vmatpush.bf16.msra.mxu0 %v1591
        %1747 = vmatpush.bf16.msra.mxu0 %v1583
        %1748 = vmatpush.bf16.msra.mxu0 %v1575
        %1749 = vmatpush.bf16.msra.mxu0 %v1567
        %1750 = vmatpush.bf16.msra.mxu0 %v1559
        %1751 = vmatpush.bf16.msra.mxu0 %v1551
        %1752 = vmatpush.bf16.msra.mxu0 %v1543
        %1753 = vmatpush.bf16.msra.mxu0 %v1535
        %1754 = vmatmul.bf16.gmra.mxu0 %v956
        %v1755 = vpop.f32.mrf.mxu0
        %v1756 = vadd.f32 %v1737, %v1755
        %v1757 = vpop.f32.mrf.mxu0
        %v1758 = vadd.f32 %v1739, %v1757
        %1759 = vmatmul.bf16.gmra.mxu0 %v958
        %v1760 = vpop.f32.mrf.mxu0
        %v1761 = vadd.f32 %v1742, %v1760
        %v1762 = vpop.f32.mrf.mxu0
        %v1763 = vadd.f32 %v1744, %v1762
        %1764 = vdwg.mxu0
        %1765 = vmatpush.bf16.msra.mxu0 %v1528
        %1766 = vmatpush.bf16.msra.mxu0 %v1520
        %1767 = vmatpush.bf16.msra.mxu0 %v1512
        %1768 = vmatpush.bf16.msra.mxu0 %v1504
        %1769 = vmatpush.bf16.msra.mxu0 %v1496
        %1770 = vmatpush.bf16.msra.mxu0 %v1488
        %1771 = vmatpush.bf16.msra.mxu0 %v1480
        %1772 = vmatpush.bf16.msra.mxu0 %v1472
        %1773 = vmatmul.bf16.gmra.mxu0 %v955
        %v1774 = vpop.f32.mrf.mxu0
        %v1775 = vadd.f32 0.0, %v1774
        %v1776 = vpop.f32.mrf.mxu0
        %v1777 = vadd.f32 0.0, %v1776
        %1778 = vmatmul.bf16.gmra.mxu0 %v957
        %v1779 = vpop.f32.mrf.mxu0
        %v1780 = vadd.f32 0.0, %v1779
        %v1781 = vpop.f32.mrf.mxu0
        %v1782 = vadd.f32 0.0, %v1781
        %1783 = vdwg.mxu0
        %1784 = vmatpush.bf16.msra.mxu0 %v1592
        %1785 = vmatpush.bf16.msra.mxu0 %v1584
        %1786 = vmatpush.bf16.msra.mxu0 %v1576
        %1787 = vmatpush.bf16.msra.mxu0 %v1568
        %1788 = vmatpush.bf16.msra.mxu0 %v1560
        %1789 = vmatpush.bf16.msra.mxu0 %v1552
        %1790 = vmatpush.bf16.msra.mxu0 %v1544
        %1791 = vmatpush.bf16.msra.mxu0 %v1536
        %1792 = vmatmul.bf16.gmra.mxu0 %v956
        %v1793 = vpop.f32.mrf.mxu0
        %v1794 = vadd.f32 %v1775, %v1793
        %v1795 = vpop.f32.mrf.mxu0
        %v1796 = vadd.f32 %v1777, %v1795
        %1797 = vmatmul.bf16.gmra.mxu0 %v958
        %v1798 = vpop.f32.mrf.mxu0
        %v1799 = vadd.f32 %v1780, %v1798
        %v1800 = vpop.f32.mrf.mxu0
        %v1801 = vadd.f32 %v1782, %v1800
        %1802 = vdwg.mxu0
        %1803 = vmatpush.bf16.msra.mxu0 %v1529
        %1804 = vmatpush.bf16.msra.mxu0 %v1521
        %1805 = vmatpush.bf16.msra.mxu0 %v1513
        %1806 = vmatpush.bf16.msra.mxu0 %v1505
        %1807 = vmatpush.bf16.msra.mxu0 %v1497
        %1808 = vmatpush.bf16.msra.mxu0 %v1489
        %1809 = vmatpush.bf16.msra.mxu0 %v1481
        %1810 = vmatpush.bf16.msra.mxu0 %v1473
        %1811 = vmatmul.bf16.gmra.mxu0 %v955
        %v1812 = vpop.f32.mrf.mxu0
        %v1813 = vadd.f32 0.0, %v1812
        %v1814 = vpop.f32.mrf.mxu0
        %v1815 = vadd.f32 0.0, %v1814
        %1816 = vmatmul.bf16.gmra.mxu0 %v957
        %v1817 = vpop.f32.mrf.mxu0
        %v1818 = vadd.f32 0.0, %v1817
        %v1819 = vpop.f32.mrf.mxu0
        %v1820 = vadd.f32 0.0, %v1819
        %1821 = vdwg.mxu0
        %1822 = vmatpush.bf16.msra.mxu0 %v1593
        %1823 = vmatpush.bf16.msra.mxu0 %v1585
        %1824 = vmatpush.bf16.msra.mxu0 %v1577
        %1825 = vmatpush.bf16.msra.mxu0 %v1569
        %1826 = vmatpush.bf16.msra.mxu0 %v1561
        %1827 = vmatpush.bf16.msra.mxu0 %v1553
        %1828 = vmatpush.bf16.msra.mxu0 %v1545
        %1829 = vmatpush.bf16.msra.mxu0 %v1537
        %1830 = vmatmul.bf16.gmra.mxu0 %v956
        %v1831 = vpop.f32.mrf.mxu0
        %v1832 = vadd.f32 %v1813, %v1831
        %v1833 = vpop.f32.mrf.mxu0
        %v1834 = vadd.f32 %v1815, %v1833
        %1835 = vmatmul.bf16.gmra.mxu0 %v958
        %v1836 = vpop.f32.mrf.mxu0
        %v1837 = vadd.f32 %v1818, %v1836
        %v1838 = vpop.f32.mrf.mxu0
        %v1839 = vadd.f32 %v1820, %v1838
        %1840 = vdwg.mxu0
        %1841 = vmatpush.bf16.msra.mxu0 %v1530
        %1842 = vmatpush.bf16.msra.mxu0 %v1522
        %1843 = vmatpush.bf16.msra.mxu0 %v1514
        %1844 = vmatpush.bf16.msra.mxu0 %v1506
        %1845 = vmatpush.bf16.msra.mxu0 %v1498
        %1846 = vmatpush.bf16.msra.mxu0 %v1490
        %1847 = vmatpush.bf16.msra.mxu0 %v1482
        %1848 = vmatpush.bf16.msra.mxu0 %v1474
        %1849 = vmatmul.bf16.gmra.mxu0 %v955
        %v1850 = vpop.f32.mrf.mxu0
        %v1851 = vadd.f32 0.0, %v1850
        %v1852 = vpop.f32.mrf.mxu0
        %v1853 = vadd.f32 0.0, %v1852
        %1854 = vmatmul.bf16.gmra.mxu0 %v957
        %v1855 = vpop.f32.mrf.mxu0
        %v1856 = vadd.f32 0.0, %v1855
        %v1857 = vpop.f32.mrf.mxu0
        %v1858 = vadd.f32 0.0, %v1857
        %1859 = vdwg.mxu0
        %1860 = vmatpush.bf16.msra.mxu0 %v1594
        %1861 = vmatpush.bf16.msra.mxu0 %v1586
        %1862 = vmatpush.bf16.msra.mxu0 %v1578
        %1863 = vmatpush.bf16.msra.mxu0 %v1570
        %1864 = vmatpush.bf16.msra.mxu0 %v1562
        %1865 = vmatpush.bf16.msra.mxu0 %v1554
        %1866 = vmatpush.bf16.msra.mxu0 %v1546
        %1867 = vmatpush.bf16.msra.mxu0 %v1538
        %1868 = vmatmul.bf16.gmra.mxu0 %v956
        %v1869 = vpop.f32.mrf.mxu0
        %v1870 = vadd.f32 %v1851, %v1869
        %v1871 = vpop.f32.mrf.mxu0
        %v1872 = vadd.f32 %v1853, %v1871
        %1873 = vmatmul.bf16.gmra.mxu0 %v958
        %v1874 = vpop.f32.mrf.mxu0
        %v1875 = vadd.f32 %v1856, %v1874
        %v1876 = vpop.f32.mrf.mxu0
        %v1877 = vadd.f32 %v1858, %v1876
        %1878 = vdwg.mxu0
        %1879 = vmatpush.bf16.msra.mxu0 %v1531
        %1880 = vmatpush.bf16.msra.mxu0 %v1523
        %1881 = vmatpush.bf16.msra.mxu0 %v1515
        %1882 = vmatpush.bf16.msra.mxu0 %v1507
        %1883 = vmatpush.bf16.msra.mxu0 %v1499
        %1884 = vmatpush.bf16.msra.mxu0 %v1491
        %1885 = vmatpush.bf16.msra.mxu0 %v1483
        %1886 = vmatpush.bf16.msra.mxu0 %v1475
        %1887 = vmatmul.bf16.gmra.mxu0 %v955
        %v1888 = vpop.f32.mrf.mxu0
        %v1889 = vadd.f32 0.0, %v1888
        %v1890 = vpop.f32.mrf.mxu0
        %v1891 = vadd.f32 0.0, %v1890
        %1892 = vmatmul.bf16.gmra.mxu0 %v957
        %v1893 = vpop.f32.mrf.mxu0
        %v1894 = vadd.f32 0.0, %v1893
        %v1895 = vpop.f32.mrf.mxu0
        %v1896 = vadd.f32 0.0, %v1895
        %1897 = vdwg.mxu0
        %1898 = vmatpush.bf16.msra.mxu0 %v1595
        %1899 = vmatpush.bf16.msra.mxu0 %v1587
        %1900 = vmatpush.bf16.msra.mxu0 %v1579
        %1901 = vmatpush.bf16.msra.mxu0 %v1571
        %1902 = vmatpush.bf16.msra.mxu0 %v1563
        %1903 = vmatpush.bf16.msra.mxu0 %v1555
        %1904 = vmatpush.bf16.msra.mxu0 %v1547
        %1905 = vmatpush.bf16.msra.mxu0 %v1539
        %1906 = vmatmul.bf16.gmra.mxu0 %v956
        %v1907 = vpop.f32.mrf.mxu0
        %v1908 = vadd.f32 %v1889, %v1907
        %v1909 = vpop.f32.mrf.mxu0
        %v1910 = vadd.f32 %v1891, %v1909
        %1911 = vmatmul.bf16.gmra.mxu0 %v958
        %v1912 = vpop.f32.mrf.mxu0
        %v1913 = vadd.f32 %v1894, %v1912
        %v1914 = vpop.f32.mrf.mxu0
        %v1915 = vadd.f32 %v1896, %v1914
        %1916 = vdwg.mxu0
        %1917 = vmatpush.bf16.msra.mxu0 %v1532
        %1918 = vmatpush.bf16.msra.mxu0 %v1524
        %1919 = vmatpush.bf16.msra.mxu0 %v1516
        %1920 = vmatpush.bf16.msra.mxu0 %v1508
        %1921 = vmatpush.bf16.msra.mxu0 %v1500
        %1922 = vmatpush.bf16.msra.mxu0 %v1492
        %1923 = vmatpush.bf16.msra.mxu0 %v1484
        %1924 = vmatpush.bf16.msra.mxu0 %v1476
        %1925 = vmatmul.bf16.gmra.mxu0 %v955
        %v1926 = vpop.f32.mrf.mxu0
        %v1927 = vadd.f32 0.0, %v1926
        %v1928 = vpop.f32.mrf.mxu0
        %v1929 = vadd.f32 0.0, %v1928
        %1930 = vmatmul.bf16.gmra.mxu0 %v957
        %v1931 = vpop.f32.mrf.mxu0
        %v1932 = vadd.f32 0.0, %v1931
        %v1933 = vpop.f32.mrf.mxu0
        %v1934 = vadd.f32 0.0, %v1933
        %1935 = vdwg.mxu0
        %1936 = vmatpush.bf16.msra.mxu0 %v1596
        %1937 = vmatpush.bf16.msra.mxu0 %v1588
        %1938 = vmatpush.bf16.msra.mxu0 %v1580
        %1939 = vmatpush.bf16.msra.mxu0 %v1572
        %1940 = vmatpush.bf16.msra.mxu0 %v1564
        %1941 = vmatpush.bf16.msra.mxu0 %v1556
        %1942 = vmatpush.bf16.msra.mxu0 %v1548
        %1943 = vmatpush.bf16.msra.mxu0 %v1540
        %1944 = vmatmul.bf16.gmra.mxu0 %v956
        %v1945 = vpop.f32.mrf.mxu0
        %v1946 = vadd.f32 %v1927, %v1945
        %v1947 = vpop.f32.mrf.mxu0
        %v1948 = vadd.f32 %v1929, %v1947
        %1949 = vmatmul.bf16.gmra.mxu0 %v958
        %v1950 = vpop.f32.mrf.mxu0
        %v1951 = vadd.f32 %v1932, %v1950
        %v1952 = vpop.f32.mrf.mxu0
        %v1953 = vadd.f32 %v1934, %v1952
        %1954 = vdwg.mxu0
        %1955 = vmatpush.bf16.msra.mxu0 %v1533
        %1956 = vmatpush.bf16.msra.mxu0 %v1525
        %1957 = vmatpush.bf16.msra.mxu0 %v1517
        %1958 = vmatpush.bf16.msra.mxu0 %v1509
        %1959 = vmatpush.bf16.msra.mxu0 %v1501
        %1960 = vmatpush.bf16.msra.mxu0 %v1493
        %1961 = vmatpush.bf16.msra.mxu0 %v1485
        %1962 = vmatpush.bf16.msra.mxu0 %v1477
        %1963 = vmatmul.bf16.gmra.mxu0 %v955
        %v1964 = vpop.f32.mrf.mxu0
        %v1965 = vadd.f32 0.0, %v1964
        %v1966 = vpop.f32.mrf.mxu0
        %v1967 = vadd.f32 0.0, %v1966
        %1968 = vmatmul.bf16.gmra.mxu0 %v957
        %v1969 = vpop.f32.mrf.mxu0
        %v1970 = vadd.f32 0.0, %v1969
        %v1971 = vpop.f32.mrf.mxu0
        %v1972 = vadd.f32 0.0, %v1971
        %1973 = vdwg.mxu0
        %1974 = vmatpush.bf16.msra.mxu0 %v1597
        %1975 = vmatpush.bf16.msra.mxu0 %v1589
        %1976 = vmatpush.bf16.msra.mxu0 %v1581
        %1977 = vmatpush.bf16.msra.mxu0 %v1573
        %1978 = vmatpush.bf16.msra.mxu0 %v1565
        %1979 = vmatpush.bf16.msra.mxu0 %v1557
        %1980 = vmatpush.bf16.msra.mxu0 %v1549
        %1981 = vmatpush.bf16.msra.mxu0 %v1541
        %1982 = vmatmul.bf16.gmra.mxu0 %v956
        %v1983 = vpop.f32.mrf.mxu0
        %v1984 = vadd.f32 %v1965, %v1983
        %v1985 = vpop.f32.mrf.mxu0
        %v1986 = vadd.f32 %v1967, %v1985
        %1987 = vmatmul.bf16.gmra.mxu0 %v958
        %v1988 = vpop.f32.mrf.mxu0
        %v1989 = vadd.f32 %v1970, %v1988
        %v1990 = vpop.f32.mrf.mxu0
        %v1991 = vadd.f32 %v1972, %v1990
        %1992 = vdwg.mxu0
        %1993 = vmatpush.bf16.msra.mxu0 %v1534
        %1994 = vmatpush.bf16.msra.mxu0 %v1526
        %1995 = vmatpush.bf16.msra.mxu0 %v1518
        %1996 = vmatpush.bf16.msra.mxu0 %v1510
        %1997 = vmatpush.bf16.msra.mxu0 %v1502
        %1998 = vmatpush.bf16.msra.mxu0 %v1494
        %1999 = vmatpush.bf16.msra.mxu0 %v1486
        %2000 = vmatpush.bf16.msra.mxu0 %v1478
        %2001 = vmatmul.bf16.gmra.mxu0 %v955
        %v2002 = vpop.f32.mrf.mxu0
        %v2003 = vadd.f32 0.0, %v2002
        %v2004 = vpop.f32.mrf.mxu0
        %v2005 = vadd.f32 0.0, %v2004
        %2006 = vmatmul.bf16.gmra.mxu0 %v957
        %v2007 = vpop.f32.mrf.mxu0
        %v2008 = vadd.f32 0.0, %v2007
        %v2009 = vpop.f32.mrf.mxu0
        %v2010 = vadd.f32 0.0, %v2009
        %2011 = vdwg.mxu0
        %2012 = vmatpush.bf16.msra.mxu0 %v1598
        %2013 = vmatpush.bf16.msra.mxu0 %v1590
        %2014 = vmatpush.bf16.msra.mxu0 %v1582
        %2015 = vmatpush.bf16.msra.mxu0 %v1574
        %2016 = vmatpush.bf16.msra.mxu0 %v1566
        %2017 = vmatpush.bf16.msra.mxu0 %v1558
        %2018 = vmatpush.bf16.msra.mxu0 %v1550
        %2019 = vmatpush.bf16.msra.mxu0 %v1542
        %2020 = vmatmul.bf16.gmra.mxu0 %v956
        %v2021 = vpop.f32.mrf.mxu0
        %v2022 = vadd.f32 %v2003, %v2021
        %v2023 = vpop.f32.mrf.mxu0
        %v2024 = vadd.f32 %v2005, %v2023
        %2025 = vmatmul.bf16.gmra.mxu0 %v958
        %v2026 = vpop.f32.mrf.mxu0
        %v2027 = vadd.f32 %v2008, %v2026
        %v2028 = vpop.f32.mrf.mxu0
        %v2029 = vadd.f32 %v2010, %v2028
        %2030 = vdwg.mxu0
        %v2031 = vadd.s32 %v407, 256
        %v2032 = vadd.s32 %v407, 384
        %v2033 = vadd.s32 %v407, 512
        %v2034 = vadd.s32 %v407, 640
        %v2035 = vadd.s32 %v407, 768
        %v2036 = vadd.s32 %v407, 896
        %vm2037 = vcmp.lt.s32.totalorder %v407, 0
        %v2038 = vsub.s32 0, %v407
        %v2039 = vsel %vm2037, %v2038, %v407
        %v2040 = vshrl.u32 %v2039, 5
        %v2041 = vand.u32 %v2039, 31
        %v2042 = vsub.s32 0, %v2041
        %v2043 = vsel %vm2037, %v2042, %v2041
        %vm2044 = vcmp.lt.s32.totalorder %v408, 0
        %v2045 = vsub.s32 0, %v408
        %v2046 = vsel %vm2044, %v2045, %v408
        %v2047 = vshrl.u32 %v2046, 5
        %v2048 = vand.u32 %v2046, 31
        %v2049 = vsub.s32 0, %v2048
        %v2050 = vsel %vm2044, %v2049, %v2048
        %vm2051 = vcmp.lt.s32.totalorder %v2031, 0
        %v2052 = vsub.s32 0, %v2031
        %v2053 = vsel %vm2051, %v2052, %v2031
        %v2054 = vshrl.u32 %v2053, 5
        %v2055 = vand.u32 %v2053, 31
        %v2056 = vsub.s32 0, %v2055
        %v2057 = vsel %vm2051, %v2056, %v2055
        %vm2058 = vcmp.lt.s32.totalorder %v2032, 0
        %v2059 = vsub.s32 0, %v2032
        %v2060 = vsel %vm2058, %v2059, %v2032
        %v2061 = vshrl.u32 %v2060, 5
        %v2062 = vand.u32 %v2060, 31
        %v2063 = vsub.s32 0, %v2062
        %v2064 = vsel %vm2058, %v2063, %v2062
        %vm2065 = vcmp.lt.s32.totalorder %v2033, 0
        %v2066 = vsub.s32 0, %v2033
        %v2067 = vsel %vm2065, %v2066, %v2033
        %v2068 = vshrl.u32 %v2067, 5
        %v2069 = vand.u32 %v2067, 31
        %v2070 = vsub.s32 0, %v2069
        %v2071 = vsel %vm2065, %v2070, %v2069
        %vm2072 = vcmp.lt.s32.totalorder %v2034, 0
        %v2073 = vsub.s32 0, %v2034
        %v2074 = vsel %vm2072, %v2073, %v2034
        %v2075 = vshrl.u32 %v2074, 5
        %v2076 = vand.u32 %v2074, 31
        %v2077 = vsub.s32 0, %v2076
        %v2078 = vsel %vm2072, %v2077, %v2076
        %vm2079 = vcmp.lt.s32.totalorder %v2035, 0
        %v2080 = vsub.s32 0, %v2035
        %v2081 = vsel %vm2079, %v2080, %v2035
        %v2082 = vshrl.u32 %v2081, 5
        %v2083 = vand.u32 %v2081, 31
        %v2084 = vsub.s32 0, %v2083
        %v2085 = vsel %vm2079, %v2084, %v2083
        %vm2086 = vcmp.lt.s32.totalorder %v2036, 0
        %v2087 = vsub.s32 0, %v2036
        %v2088 = vsel %vm2086, %v2087, %v2036
        %v2089 = vshrl.u32 %v2088, 5
        %v2090 = vand.u32 %v2088, 31
        %v2091 = vsub.s32 0, %v2090
        %v2092 = vsel %vm2086, %v2091, %v2090
        %vm2093 = vcmp.ne.s32.totalorder %v2043, 0
        %vm2094 = vcmp.ne.s32.totalorder %v2050, 0
        %vm2095 = vcmp.ne.s32.totalorder %v2057, 0
        %vm2096 = vcmp.ne.s32.totalorder %v2064, 0
        %vm2097 = vcmp.ne.s32.totalorder %v2071, 0
        %vm2098 = vcmp.ne.s32.totalorder %v2078, 0
        %vm2099 = vcmp.ne.s32.totalorder %v2085, 0
        %vm2100 = vcmp.ne.s32.totalorder %v2092, 0
        %vm2101 = vcmp.lt.s32.totalorder %v2043, 0
        %vm2102 = vcmp.lt.s32.totalorder %v2050, 0
        %vm2103 = vcmp.lt.s32.totalorder %v2057, 0
        %vm2104 = vcmp.lt.s32.totalorder %v2064, 0
        %vm2105 = vcmp.lt.s32.totalorder %v2071, 0
        %vm2106 = vcmp.lt.s32.totalorder %v2078, 0
        %vm2107 = vcmp.lt.s32.totalorder %v2085, 0
        %vm2108 = vcmp.lt.s32.totalorder %v2092, 0
        %vm2109 = vmand %vm2101, %vm2093
        %vm2110 = vmand %vm2102, %vm2094
        %vm2111 = vmand %vm2103, %vm2095
        %vm2112 = vmand %vm2104, %vm2096
        %vm2113 = vmand %vm2105, %vm2097
        %vm2114 = vmand %vm2106, %vm2098
        %vm2115 = vmand %vm2107, %vm2099
        %vm2116 = vmand %vm2108, %vm2100
        %v2117 = vadd.s32 %v2043, 32
        %v2118 = vadd.s32 %v2050, 32
        %v2119 = vadd.s32 %v2057, 32
        %v2120 = vadd.s32 %v2064, 32
        %v2121 = vadd.s32 %v2071, 32
        %v2122 = vadd.s32 %v2078, 32
        %v2123 = vadd.s32 %v2085, 32
        %v2124 = vadd.s32 %v2092, 32
        %v2125 = vsel %vm2109, %v2117, %v2043
        %v2126 = vsel %vm2110, %v2118, %v2050
        %v2127 = vsel %vm2111, %v2119, %v2057
        %v2128 = vsel %vm2112, %v2120, %v2064
        %v2129 = vsel %vm2113, %v2121, %v2071
        %v2130 = vsel %vm2114, %v2122, %v2078
        %v2131 = vsel %vm2115, %v2123, %v2085
        %v2132 = vsel %vm2116, %v2124, %v2092
        %vm2133 = vcmp.ge.s32.totalorder %v2125, 1
        %vm2134 = vcmp.ge.s32.totalorder %v2126, 1
        %vm2135 = vcmp.ge.s32.totalorder %v2127, 1
        %vm2136 = vcmp.ge.s32.totalorder %v2128, 1
        %vm2137 = vcmp.ge.s32.totalorder %v2129, 1
        %vm2138 = vcmp.ge.s32.totalorder %v2130, 1
        %vm2139 = vcmp.ge.s32.totalorder %v2131, 1
        %vm2140 = vcmp.ge.s32.totalorder %v2132, 1
        %2173 = vrot.lane.b32.xlu0 %v1756, 1
        %v2174 = vpop.permute.xlu0 %2173
        %2175 = vrot.lane.b32.xlu0 %v1794, 1
        %v2176 = vpop.permute.xlu0 %2175
        %2177 = vrot.lane.b32.xlu0 %v1832, 1
        %v2178 = vpop.permute.xlu0 %2177
        %2179 = vrot.lane.b32.xlu0 %v1870, 1
        %v2180 = vpop.permute.xlu0 %2179
        %2181 = vrot.lane.b32.xlu0 %v1908, 1
        %v2182 = vpop.permute.xlu0 %2181
        %2183 = vrot.lane.b32.xlu0 %v1946, 1
        %v2184 = vpop.permute.xlu0 %2183
        %2185 = vrot.lane.b32.xlu0 %v1984, 1
        %v2186 = vpop.permute.xlu0 %2185
        %2187 = vrot.lane.b32.xlu0 %v2022, 1
        %v2188 = vpop.permute.xlu0 %2187
        %2189 = vrot.lane.b32.xlu0 %v1758, 1
        %v2190 = vpop.permute.xlu0 %2189
        %2191 = vrot.lane.b32.xlu0 %v1796, 1
        %v2192 = vpop.permute.xlu0 %2191
        %2193 = vrot.lane.b32.xlu0 %v1834, 1
        %v2194 = vpop.permute.xlu0 %2193
        %2195 = vrot.lane.b32.xlu0 %v1872, 1
        %v2196 = vpop.permute.xlu0 %2195
        %2197 = vrot.lane.b32.xlu0 %v1910, 1
        %v2198 = vpop.permute.xlu0 %2197
        %2199 = vrot.lane.b32.xlu0 %v1948, 1
        %v2200 = vpop.permute.xlu0 %2199
        %2201 = vrot.lane.b32.xlu0 %v1986, 1
        %v2202 = vpop.permute.xlu0 %2201
        %2203 = vrot.lane.b32.xlu0 %v2024, 1
        %v2204 = vpop.permute.xlu0 %2203
        %2205 = vrot.lane.b32.xlu0 %v1761, 1
        %v2206 = vpop.permute.xlu0 %2205
        %2207 = vrot.lane.b32.xlu0 %v1799, 1
        %v2208 = vpop.permute.xlu0 %2207
        %2209 = vrot.lane.b32.xlu0 %v1837, 1
        %v2210 = vpop.permute.xlu0 %2209
        %2211 = vrot.lane.b32.xlu0 %v1875, 1
        %v2212 = vpop.permute.xlu0 %2211
        %2213 = vrot.lane.b32.xlu0 %v1913, 1
        %v2214 = vpop.permute.xlu0 %2213
        %2215 = vrot.lane.b32.xlu0 %v1951, 1
        %v2216 = vpop.permute.xlu0 %2215
        %2217 = vrot.lane.b32.xlu0 %v1989, 1
        %v2218 = vpop.permute.xlu0 %2217
        %2219 = vrot.lane.b32.xlu0 %v2027, 1
        %v2220 = vpop.permute.xlu0 %2219
        %2221 = vrot.lane.b32.xlu0 %v1763, 1
        %v2222 = vpop.permute.xlu0 %2221
        %2223 = vrot.lane.b32.xlu0 %v1801, 1
        %v2224 = vpop.permute.xlu0 %2223
        %2225 = vrot.lane.b32.xlu0 %v1839, 1
        %v2226 = vpop.permute.xlu0 %2225
        %2227 = vrot.lane.b32.xlu0 %v1877, 1
        %v2228 = vpop.permute.xlu0 %2227
        %2229 = vrot.lane.b32.xlu0 %v1915, 1
        %v2230 = vpop.permute.xlu0 %2229
        %2231 = vrot.lane.b32.xlu0 %v1953, 1
        %v2232 = vpop.permute.xlu0 %2231
        %2233 = vrot.lane.b32.xlu0 %v1991, 1
        %v2234 = vpop.permute.xlu0 %2233
        %2235 = vrot.lane.b32.xlu0 %v2029, 1
        %v2236 = vpop.permute.xlu0 %2235
        %v2237 = vsel %vm443, %v2174, %v2176
        %v2238 = vsel %vm443, %v2176, %v2178
        %v2239 = vsel %vm443, %v2178, %v2180
        %v2240 = vsel %vm443, %v2180, %v2182
        %v2241 = vsel %vm443, %v2182, %v2184
        %v2242 = vsel %vm443, %v2184, %v2186
        %v2243 = vsel %vm443, %v2186, %v2188
        %v2244 = vsel %vm443, %v2190, %v2192
        %v2245 = vsel %vm443, %v2192, %v2194
        %v2246 = vsel %vm443, %v2194, %v2196
        %v2247 = vsel %vm443, %v2196, %v2198
        %v2248 = vsel %vm443, %v2198, %v2200
        %v2249 = vsel %vm443, %v2200, %v2202
        %v2250 = vsel %vm443, %v2202, %v2204
        %v2251 = vsel %vm443, %v2206, %v2208
        %v2252 = vsel %vm443, %v2208, %v2210
        %v2253 = vsel %vm443, %v2210, %v2212
        %v2254 = vsel %vm443, %v2212, %v2214
        %v2255 = vsel %vm443, %v2214, %v2216
        %v2256 = vsel %vm443, %v2216, %v2218
        %v2257 = vsel %vm443, %v2218, %v2220
        %v2258 = vsel %vm443, %v2222, %v2224
        %v2259 = vsel %vm443, %v2224, %v2226
        %v2260 = vsel %vm443, %v2226, %v2228
        %v2261 = vsel %vm443, %v2228, %v2230
        %v2262 = vsel %vm443, %v2230, %v2232
        %v2263 = vsel %vm443, %v2232, %v2234
        %v2264 = vsel %vm443, %v2234, %v2236
        %v2297 = vsel %vm443, 0.0, %v2174
        %v2298 = vsel %vm443, 0.0, %v2190
        %v2299 = vsel %vm443, 0.0, %v2206
        %v2300 = vsel %vm443, 0.0, %v2222
        %v2301 = vsel %vm2133, 1, 0
        %v2302 = vsel %vm2134, 1, 0
        %v2303 = vsel %vm2135, 1, 0
        %v2304 = vsel %vm2136, 1, 0
        %v2305 = vsel %vm2137, 1, 0
        %v2306 = vsel %vm2138, 1, 0
        %v2307 = vsel %vm2139, 1, 0
        %v2308 = vsel %vm2140, 1, 0
        %vm2309 = vcmp.eq.s32.totalorder %v2301, 1
        %vm2310 = vcmp.eq.s32.totalorder %v2302, 1
        %vm2311 = vcmp.eq.s32.totalorder %v2303, 1
        %vm2312 = vcmp.eq.s32.totalorder %v2304, 1
        %vm2313 = vcmp.eq.s32.totalorder %v2305, 1
        %vm2314 = vcmp.eq.s32.totalorder %v2306, 1
        %vm2315 = vcmp.eq.s32.totalorder %v2307, 1
        %vm2316 = vcmp.eq.s32.totalorder %v2308, 1
        %v2317 = vsel %vm2309, %v2297, 0.0
        %v2318 = vsel %vm2310, %v2237, 0.0
        %v2319 = vsel %vm2311, %v2238, 0.0
        %v2320 = vsel %vm2312, %v2239, 0.0
        %v2321 = vsel %vm2313, %v2240, 0.0
        %v2322 = vsel %vm2314, %v2241, 0.0
        %v2323 = vsel %vm2315, %v2242, 0.0
        %v2324 = vsel %vm2316, %v2243, 0.0
        %v2325 = vsel %vm2309, %v2298, 0.0
        %v2326 = vsel %vm2310, %v2244, 0.0
        %v2327 = vsel %vm2311, %v2245, 0.0
        %v2328 = vsel %vm2312, %v2246, 0.0
        %v2329 = vsel %vm2313, %v2247, 0.0
        %v2330 = vsel %vm2314, %v2248, 0.0
        %v2331 = vsel %vm2315, %v2249, 0.0
        %v2332 = vsel %vm2316, %v2250, 0.0
        %v2333 = vsel %vm2309, %v2299, 0.0
        %v2334 = vsel %vm2310, %v2251, 0.0
        %v2335 = vsel %vm2311, %v2252, 0.0
        %v2336 = vsel %vm2312, %v2253, 0.0
        %v2337 = vsel %vm2313, %v2254, 0.0
        %v2338 = vsel %vm2314, %v2255, 0.0
        %v2339 = vsel %vm2315, %v2256, 0.0
        %v2340 = vsel %vm2316, %v2257, 0.0
        %v2341 = vsel %vm2309, %v2300, 0.0
        %v2342 = vsel %vm2310, %v2258, 0.0
        %v2343 = vsel %vm2311, %v2259, 0.0
        %v2344 = vsel %vm2312, %v2260, 0.0
        %v2345 = vsel %vm2313, %v2261, 0.0
        %v2346 = vsel %vm2314, %v2262, 0.0
        %v2347 = vsel %vm2315, %v2263, 0.0
        %v2348 = vsel %vm2316, %v2264, 0.0
        %vm2349 = vcmp.le.s32.totalorder %v2125, 30
        %vm2350 = vcmp.le.s32.totalorder %v2126, 30
        %vm2351 = vcmp.le.s32.totalorder %v2127, 30
        %vm2352 = vcmp.le.s32.totalorder %v2128, 30
        %vm2353 = vcmp.le.s32.totalorder %v2129, 30
        %vm2354 = vcmp.le.s32.totalorder %v2130, 30
        %vm2355 = vcmp.le.s32.totalorder %v2131, 30
        %vm2356 = vcmp.le.s32.totalorder %v2132, 30
        %2357 = vrot.lane.b32.xlu0 %v1756, 127
        %v2358 = vpop.permute.xlu0 %2357
        %2359 = vrot.lane.b32.xlu0 %v1794, 127
        %v2360 = vpop.permute.xlu0 %2359
        %2361 = vrot.lane.b32.xlu0 %v1832, 127
        %v2362 = vpop.permute.xlu0 %2361
        %2363 = vrot.lane.b32.xlu0 %v1870, 127
        %v2364 = vpop.permute.xlu0 %2363
        %2365 = vrot.lane.b32.xlu0 %v1908, 127
        %v2366 = vpop.permute.xlu0 %2365
        %2367 = vrot.lane.b32.xlu0 %v1946, 127
        %v2368 = vpop.permute.xlu0 %2367
        %2369 = vrot.lane.b32.xlu0 %v1984, 127
        %v2370 = vpop.permute.xlu0 %2369
        %2371 = vrot.lane.b32.xlu0 %v2022, 127
        %v2372 = vpop.permute.xlu0 %2371
        %2373 = vrot.lane.b32.xlu0 %v1758, 127
        %v2374 = vpop.permute.xlu0 %2373
        %2375 = vrot.lane.b32.xlu0 %v1796, 127
        %v2376 = vpop.permute.xlu0 %2375
        %2377 = vrot.lane.b32.xlu0 %v1834, 127
        %v2378 = vpop.permute.xlu0 %2377
        %2379 = vrot.lane.b32.xlu0 %v1872, 127
        %v2380 = vpop.permute.xlu0 %2379
        %2381 = vrot.lane.b32.xlu0 %v1910, 127
        %v2382 = vpop.permute.xlu0 %2381
        %2383 = vrot.lane.b32.xlu0 %v1948, 127
        %v2384 = vpop.permute.xlu0 %2383
        %2385 = vrot.lane.b32.xlu0 %v1986, 127
        %v2386 = vpop.permute.xlu0 %2385
        %2387 = vrot.lane.b32.xlu0 %v2024, 127
        %v2388 = vpop.permute.xlu0 %2387
        %2389 = vrot.lane.b32.xlu0 %v1761, 127
        %v2390 = vpop.permute.xlu0 %2389
        %2391 = vrot.lane.b32.xlu0 %v1799, 127
        %v2392 = vpop.permute.xlu0 %2391
        %2393 = vrot.lane.b32.xlu0 %v1837, 127
        %v2394 = vpop.permute.xlu0 %2393
        %2395 = vrot.lane.b32.xlu0 %v1875, 127
        %v2396 = vpop.permute.xlu0 %2395
        %2397 = vrot.lane.b32.xlu0 %v1913, 127
        %v2398 = vpop.permute.xlu0 %2397
        %2399 = vrot.lane.b32.xlu0 %v1951, 127
        %v2400 = vpop.permute.xlu0 %2399
        %2401 = vrot.lane.b32.xlu0 %v1989, 127
        %v2402 = vpop.permute.xlu0 %2401
        %2403 = vrot.lane.b32.xlu0 %v2027, 127
        %v2404 = vpop.permute.xlu0 %2403
        %2405 = vrot.lane.b32.xlu0 %v1763, 127
        %v2406 = vpop.permute.xlu0 %2405
        %2407 = vrot.lane.b32.xlu0 %v1801, 127
        %v2408 = vpop.permute.xlu0 %2407
        %2409 = vrot.lane.b32.xlu0 %v1839, 127
        %v2410 = vpop.permute.xlu0 %2409
        %2411 = vrot.lane.b32.xlu0 %v1877, 127
        %v2412 = vpop.permute.xlu0 %2411
        %2413 = vrot.lane.b32.xlu0 %v1915, 127
        %v2414 = vpop.permute.xlu0 %2413
        %2415 = vrot.lane.b32.xlu0 %v1953, 127
        %v2416 = vpop.permute.xlu0 %2415
        %2417 = vrot.lane.b32.xlu0 %v1991, 127
        %v2418 = vpop.permute.xlu0 %2417
        %2419 = vrot.lane.b32.xlu0 %v2029, 127
        %v2420 = vpop.permute.xlu0 %2419
        %v2421 = vsel %vm463, %v2358, %v2360
        %v2422 = vsel %vm463, %v2360, %v2362
        %v2423 = vsel %vm463, %v2362, %v2364
        %v2424 = vsel %vm463, %v2364, %v2366
        %v2425 = vsel %vm463, %v2366, %v2368
        %v2426 = vsel %vm463, %v2368, %v2370
        %v2427 = vsel %vm463, %v2370, %v2372
        %v2428 = vsel %vm463, %v2374, %v2376
        %v2429 = vsel %vm463, %v2376, %v2378
        %v2430 = vsel %vm463, %v2378, %v2380
        %v2431 = vsel %vm463, %v2380, %v2382
        %v2432 = vsel %vm463, %v2382, %v2384
        %v2433 = vsel %vm463, %v2384, %v2386
        %v2434 = vsel %vm463, %v2386, %v2388
        %v2435 = vsel %vm463, %v2390, %v2392
        %v2436 = vsel %vm463, %v2392, %v2394
        %v2437 = vsel %vm463, %v2394, %v2396
        %v2438 = vsel %vm463, %v2396, %v2398
        %v2439 = vsel %vm463, %v2398, %v2400
        %v2440 = vsel %vm463, %v2400, %v2402
        %v2441 = vsel %vm463, %v2402, %v2404
        %v2442 = vsel %vm463, %v2406, %v2408
        %v2443 = vsel %vm463, %v2408, %v2410
        %v2444 = vsel %vm463, %v2410, %v2412
        %v2445 = vsel %vm463, %v2412, %v2414
        %v2446 = vsel %vm463, %v2414, %v2416
        %v2447 = vsel %vm463, %v2416, %v2418
        %v2448 = vsel %vm463, %v2418, %v2420
        %v2481 = vsel %vm463, %v2372, 0.0
        %v2482 = vsel %vm463, %v2388, 0.0
        %v2483 = vsel %vm463, %v2404, 0.0
        %v2484 = vsel %vm463, %v2420, 0.0
        %v2485 = vsel %vm2349, 1, 0
        %v2486 = vsel %vm2350, 1, 0
        %v2487 = vsel %vm2351, 1, 0
        %v2488 = vsel %vm2352, 1, 0
        %v2489 = vsel %vm2353, 1, 0
        %v2490 = vsel %vm2354, 1, 0
        %v2491 = vsel %vm2355, 1, 0
        %v2492 = vsel %vm2356, 1, 0
        %vm2493 = vcmp.eq.s32.totalorder %v2485, 1
        %vm2494 = vcmp.eq.s32.totalorder %v2486, 1
        %vm2495 = vcmp.eq.s32.totalorder %v2487, 1
        %vm2496 = vcmp.eq.s32.totalorder %v2488, 1
        %vm2497 = vcmp.eq.s32.totalorder %v2489, 1
        %vm2498 = vcmp.eq.s32.totalorder %v2490, 1
        %vm2499 = vcmp.eq.s32.totalorder %v2491, 1
        %vm2500 = vcmp.eq.s32.totalorder %v2492, 1
        %v2501 = vsel %vm2493, %v2421, 0.0
        %v2502 = vsel %vm2494, %v2422, 0.0
        %v2503 = vsel %vm2495, %v2423, 0.0
        %v2504 = vsel %vm2496, %v2424, 0.0
        %v2505 = vsel %vm2497, %v2425, 0.0
        %v2506 = vsel %vm2498, %v2426, 0.0
        %v2507 = vsel %vm2499, %v2427, 0.0
        %v2508 = vsel %vm2500, %v2481, 0.0
        %v2509 = vsel %vm2493, %v2428, 0.0
        %v2510 = vsel %vm2494, %v2429, 0.0
        %v2511 = vsel %vm2495, %v2430, 0.0
        %v2512 = vsel %vm2496, %v2431, 0.0
        %v2513 = vsel %vm2497, %v2432, 0.0
        %v2514 = vsel %vm2498, %v2433, 0.0
        %v2515 = vsel %vm2499, %v2434, 0.0
        %v2516 = vsel %vm2500, %v2482, 0.0
        %v2517 = vsel %vm2493, %v2435, 0.0
        %v2518 = vsel %vm2494, %v2436, 0.0
        %v2519 = vsel %vm2495, %v2437, 0.0
        %v2520 = vsel %vm2496, %v2438, 0.0
        %v2521 = vsel %vm2497, %v2439, 0.0
        %v2522 = vsel %vm2498, %v2440, 0.0
        %v2523 = vsel %vm2499, %v2441, 0.0
        %v2524 = vsel %vm2500, %v2483, 0.0
        %v2525 = vsel %vm2493, %v2442, 0.0
        %v2526 = vsel %vm2494, %v2443, 0.0
        %v2527 = vsel %vm2495, %v2444, 0.0
        %v2528 = vsel %vm2496, %v2445, 0.0
        %v2529 = vsel %vm2497, %v2446, 0.0
        %v2530 = vsel %vm2498, %v2447, 0.0
        %v2531 = vsel %vm2499, %v2448, 0.0
        %v2532 = vsel %vm2500, %v2484, 0.0
        %2597 = vrot.lane.b32.xlu0 %v2317, 32
        %v2598 = vpop.permute.xlu0 %2597
        %2599 = vrot.lane.b32.xlu0 %v2318, 32
        %v2600 = vpop.permute.xlu0 %2599
        %2601 = vrot.lane.b32.xlu0 %v2319, 32
        %v2602 = vpop.permute.xlu0 %2601
        %2603 = vrot.lane.b32.xlu0 %v2320, 32
        %v2604 = vpop.permute.xlu0 %2603
        %2605 = vrot.lane.b32.xlu0 %v2321, 32
        %v2606 = vpop.permute.xlu0 %2605
        %2607 = vrot.lane.b32.xlu0 %v2322, 32
        %v2608 = vpop.permute.xlu0 %2607
        %2609 = vrot.lane.b32.xlu0 %v2323, 32
        %v2610 = vpop.permute.xlu0 %2609
        %2611 = vrot.lane.b32.xlu0 %v2324, 32
        %v2612 = vpop.permute.xlu0 %2611
        %2613 = vrot.lane.b32.xlu0 %v2325, 32
        %v2614 = vpop.permute.xlu0 %2613
        %2615 = vrot.lane.b32.xlu0 %v2326, 32
        %v2616 = vpop.permute.xlu0 %2615
        %2617 = vrot.lane.b32.xlu0 %v2327, 32
        %v2618 = vpop.permute.xlu0 %2617
        %2619 = vrot.lane.b32.xlu0 %v2328, 32
        %v2620 = vpop.permute.xlu0 %2619
        %2621 = vrot.lane.b32.xlu0 %v2329, 32
        %v2622 = vpop.permute.xlu0 %2621
        %2623 = vrot.lane.b32.xlu0 %v2330, 32
        %v2624 = vpop.permute.xlu0 %2623
        %2625 = vrot.lane.b32.xlu0 %v2331, 32
        %v2626 = vpop.permute.xlu0 %2625
        %2627 = vrot.lane.b32.xlu0 %v2332, 32
        %v2628 = vpop.permute.xlu0 %2627
        %2629 = vrot.lane.b32.xlu0 %v2333, 32
        %v2630 = vpop.permute.xlu0 %2629
        %2631 = vrot.lane.b32.xlu0 %v2334, 32
        %v2632 = vpop.permute.xlu0 %2631
        %2633 = vrot.lane.b32.xlu0 %v2335, 32
        %v2634 = vpop.permute.xlu0 %2633
        %2635 = vrot.lane.b32.xlu0 %v2336, 32
        %v2636 = vpop.permute.xlu0 %2635
        %2637 = vrot.lane.b32.xlu0 %v2337, 32
        %v2638 = vpop.permute.xlu0 %2637
        %2639 = vrot.lane.b32.xlu0 %v2338, 32
        %v2640 = vpop.permute.xlu0 %2639
        %2641 = vrot.lane.b32.xlu0 %v2339, 32
        %v2642 = vpop.permute.xlu0 %2641
        %2643 = vrot.lane.b32.xlu0 %v2340, 32
        %v2644 = vpop.permute.xlu0 %2643
        %2645 = vrot.lane.b32.xlu0 %v2341, 32
        %v2646 = vpop.permute.xlu0 %2645
        %2647 = vrot.lane.b32.xlu0 %v2342, 32
        %v2648 = vpop.permute.xlu0 %2647
        %2649 = vrot.lane.b32.xlu0 %v2343, 32
        %v2650 = vpop.permute.xlu0 %2649
        %2651 = vrot.lane.b32.xlu0 %v2344, 32
        %v2652 = vpop.permute.xlu0 %2651
        %2653 = vrot.lane.b32.xlu0 %v2345, 32
        %v2654 = vpop.permute.xlu0 %2653
        %2655 = vrot.lane.b32.xlu0 %v2346, 32
        %v2656 = vpop.permute.xlu0 %2655
        %2657 = vrot.lane.b32.xlu0 %v2347, 32
        %v2658 = vpop.permute.xlu0 %2657
        %2659 = vrot.lane.b32.xlu0 %v2348, 32
        %v2660 = vpop.permute.xlu0 %2659
        %2661 = vrot.lane.b32.xlu0 %v1756, 32
        %v2662 = vpop.permute.xlu0 %2661
        %2663 = vrot.lane.b32.xlu0 %v1794, 32
        %v2664 = vpop.permute.xlu0 %2663
        %2665 = vrot.lane.b32.xlu0 %v1832, 32
        %v2666 = vpop.permute.xlu0 %2665
        %2667 = vrot.lane.b32.xlu0 %v1870, 32
        %v2668 = vpop.permute.xlu0 %2667
        %2669 = vrot.lane.b32.xlu0 %v1908, 32
        %v2670 = vpop.permute.xlu0 %2669
        %2671 = vrot.lane.b32.xlu0 %v1946, 32
        %v2672 = vpop.permute.xlu0 %2671
        %2673 = vrot.lane.b32.xlu0 %v1984, 32
        %v2674 = vpop.permute.xlu0 %2673
        %2675 = vrot.lane.b32.xlu0 %v2022, 32
        %v2676 = vpop.permute.xlu0 %2675
        %2677 = vrot.lane.b32.xlu0 %v1758, 32
        %v2678 = vpop.permute.xlu0 %2677
        %2679 = vrot.lane.b32.xlu0 %v1796, 32
        %v2680 = vpop.permute.xlu0 %2679
        %2681 = vrot.lane.b32.xlu0 %v1834, 32
        %v2682 = vpop.permute.xlu0 %2681
        %2683 = vrot.lane.b32.xlu0 %v1872, 32
        %v2684 = vpop.permute.xlu0 %2683
        %2685 = vrot.lane.b32.xlu0 %v1910, 32
        %v2686 = vpop.permute.xlu0 %2685
        %2687 = vrot.lane.b32.xlu0 %v1948, 32
        %v2688 = vpop.permute.xlu0 %2687
        %2689 = vrot.lane.b32.xlu0 %v1986, 32
        %v2690 = vpop.permute.xlu0 %2689
        %2691 = vrot.lane.b32.xlu0 %v2024, 32
        %v2692 = vpop.permute.xlu0 %2691
        %2693 = vrot.lane.b32.xlu0 %v1761, 32
        %v2694 = vpop.permute.xlu0 %2693
        %2695 = vrot.lane.b32.xlu0 %v1799, 32
        %v2696 = vpop.permute.xlu0 %2695
        %2697 = vrot.lane.b32.xlu0 %v1837, 32
        %v2698 = vpop.permute.xlu0 %2697
        %2699 = vrot.lane.b32.xlu0 %v1875, 32
        %v2700 = vpop.permute.xlu0 %2699
        %2701 = vrot.lane.b32.xlu0 %v1913, 32
        %v2702 = vpop.permute.xlu0 %2701
        %2703 = vrot.lane.b32.xlu0 %v1951, 32
        %v2704 = vpop.permute.xlu0 %2703
        %2705 = vrot.lane.b32.xlu0 %v1989, 32
        %v2706 = vpop.permute.xlu0 %2705
        %2707 = vrot.lane.b32.xlu0 %v2027, 32
        %v2708 = vpop.permute.xlu0 %2707
        %2709 = vrot.lane.b32.xlu0 %v1763, 32
        %v2710 = vpop.permute.xlu0 %2709
        %2711 = vrot.lane.b32.xlu0 %v1801, 32
        %v2712 = vpop.permute.xlu0 %2711
        %2713 = vrot.lane.b32.xlu0 %v1839, 32
        %v2714 = vpop.permute.xlu0 %2713
        %2715 = vrot.lane.b32.xlu0 %v1877, 32
        %v2716 = vpop.permute.xlu0 %2715
        %2717 = vrot.lane.b32.xlu0 %v1915, 32
        %v2718 = vpop.permute.xlu0 %2717
        %2719 = vrot.lane.b32.xlu0 %v1953, 32
        %v2720 = vpop.permute.xlu0 %2719
        %2721 = vrot.lane.b32.xlu0 %v1991, 32
        %v2722 = vpop.permute.xlu0 %2721
        %2723 = vrot.lane.b32.xlu0 %v2029, 32
        %v2724 = vpop.permute.xlu0 %2723
        %2725 = vrot.lane.b32.xlu0 %v2501, 32
        %v2726 = vpop.permute.xlu0 %2725
        %2727 = vrot.lane.b32.xlu0 %v2502, 32
        %v2728 = vpop.permute.xlu0 %2727
        %2729 = vrot.lane.b32.xlu0 %v2503, 32
        %v2730 = vpop.permute.xlu0 %2729
        %2731 = vrot.lane.b32.xlu0 %v2504, 32
        %v2732 = vpop.permute.xlu0 %2731
        %2733 = vrot.lane.b32.xlu0 %v2505, 32
        %v2734 = vpop.permute.xlu0 %2733
        %2735 = vrot.lane.b32.xlu0 %v2506, 32
        %v2736 = vpop.permute.xlu0 %2735
        %2737 = vrot.lane.b32.xlu0 %v2507, 32
        %v2738 = vpop.permute.xlu0 %2737
        %2739 = vrot.lane.b32.xlu0 %v2508, 32
        %v2740 = vpop.permute.xlu0 %2739
        %2741 = vrot.lane.b32.xlu0 %v2509, 32
        %v2742 = vpop.permute.xlu0 %2741
        %2743 = vrot.lane.b32.xlu0 %v2510, 32
        %v2744 = vpop.permute.xlu0 %2743
        %2745 = vrot.lane.b32.xlu0 %v2511, 32
        %v2746 = vpop.permute.xlu0 %2745
        %2747 = vrot.lane.b32.xlu0 %v2512, 32
        %v2748 = vpop.permute.xlu0 %2747
        %2749 = vrot.lane.b32.xlu0 %v2513, 32
        %v2750 = vpop.permute.xlu0 %2749
        %2751 = vrot.lane.b32.xlu0 %v2514, 32
        %v2752 = vpop.permute.xlu0 %2751
        %2753 = vrot.lane.b32.xlu0 %v2515, 32
        %v2754 = vpop.permute.xlu0 %2753
        %2755 = vrot.lane.b32.xlu0 %v2516, 32
        %v2756 = vpop.permute.xlu0 %2755
        %2757 = vrot.lane.b32.xlu0 %v2517, 32
        %v2758 = vpop.permute.xlu0 %2757
        %2759 = vrot.lane.b32.xlu0 %v2518, 32
        %v2760 = vpop.permute.xlu0 %2759
        %2761 = vrot.lane.b32.xlu0 %v2519, 32
        %v2762 = vpop.permute.xlu0 %2761
        %2763 = vrot.lane.b32.xlu0 %v2520, 32
        %v2764 = vpop.permute.xlu0 %2763
        %2765 = vrot.lane.b32.xlu0 %v2521, 32
        %v2766 = vpop.permute.xlu0 %2765
        %2767 = vrot.lane.b32.xlu0 %v2522, 32
        %v2768 = vpop.permute.xlu0 %2767
        %2769 = vrot.lane.b32.xlu0 %v2523, 32
        %v2770 = vpop.permute.xlu0 %2769
        %2771 = vrot.lane.b32.xlu0 %v2524, 32
        %v2772 = vpop.permute.xlu0 %2771
        %2773 = vrot.lane.b32.xlu0 %v2525, 32
        %v2774 = vpop.permute.xlu0 %2773
        %2775 = vrot.lane.b32.xlu0 %v2526, 32
        %v2776 = vpop.permute.xlu0 %2775
        %2777 = vrot.lane.b32.xlu0 %v2527, 32
        %v2778 = vpop.permute.xlu0 %2777
        %2779 = vrot.lane.b32.xlu0 %v2528, 32
        %v2780 = vpop.permute.xlu0 %2779
        %2781 = vrot.lane.b32.xlu0 %v2529, 32
        %v2782 = vpop.permute.xlu0 %2781
        %2783 = vrot.lane.b32.xlu0 %v2530, 32
        %v2784 = vpop.permute.xlu0 %2783
        %2785 = vrot.lane.b32.xlu0 %v2531, 32
        %v2786 = vpop.permute.xlu0 %2785
        %2787 = vrot.lane.b32.xlu0 %v2532, 32
        %v2788 = vpop.permute.xlu0 %2787
        %vm2789 = vcmask 261120
        %v2790 = vsel %vm2789, %v2598, %v2600
        %v2791 = vsel %vm2789, %v2600, %v2602
        %v2792 = vsel %vm2789, %v2602, %v2604
        %v2793 = vsel %vm2789, %v2604, %v2606
        %v2794 = vsel %vm2789, %v2606, %v2608
        %v2795 = vsel %vm2789, %v2608, %v2610
        %v2796 = vsel %vm2789, %v2610, %v2612
        %v2797 = vsel %vm2789, %v2614, %v2616
        %v2798 = vsel %vm2789, %v2616, %v2618
        %v2799 = vsel %vm2789, %v2618, %v2620
        %v2800 = vsel %vm2789, %v2620, %v2622
        %v2801 = vsel %vm2789, %v2622, %v2624
        %v2802 = vsel %vm2789, %v2624, %v2626
        %v2803 = vsel %vm2789, %v2626, %v2628
        %v2804 = vsel %vm2789, %v2630, %v2632
        %v2805 = vsel %vm2789, %v2632, %v2634
        %v2806 = vsel %vm2789, %v2634, %v2636
        %v2807 = vsel %vm2789, %v2636, %v2638
        %v2808 = vsel %vm2789, %v2638, %v2640
        %v2809 = vsel %vm2789, %v2640, %v2642
        %v2810 = vsel %vm2789, %v2642, %v2644
        %v2811 = vsel %vm2789, %v2646, %v2648
        %v2812 = vsel %vm2789, %v2648, %v2650
        %v2813 = vsel %vm2789, %v2650, %v2652
        %v2814 = vsel %vm2789, %v2652, %v2654
        %v2815 = vsel %vm2789, %v2654, %v2656
        %v2816 = vsel %vm2789, %v2656, %v2658
        %v2817 = vsel %vm2789, %v2658, %v2660
        %v2818 = vsel %vm2789, %v2662, %v2664
        %v2819 = vsel %vm2789, %v2664, %v2666
        %v2820 = vsel %vm2789, %v2666, %v2668
        %v2821 = vsel %vm2789, %v2668, %v2670
        %v2822 = vsel %vm2789, %v2670, %v2672
        %v2823 = vsel %vm2789, %v2672, %v2674
        %v2824 = vsel %vm2789, %v2674, %v2676
        %v2825 = vsel %vm2789, %v2678, %v2680
        %v2826 = vsel %vm2789, %v2680, %v2682
        %v2827 = vsel %vm2789, %v2682, %v2684
        %v2828 = vsel %vm2789, %v2684, %v2686
        %v2829 = vsel %vm2789, %v2686, %v2688
        %v2830 = vsel %vm2789, %v2688, %v2690
        %v2831 = vsel %vm2789, %v2690, %v2692
        %v2832 = vsel %vm2789, %v2694, %v2696
        %v2833 = vsel %vm2789, %v2696, %v2698
        %v2834 = vsel %vm2789, %v2698, %v2700
        %v2835 = vsel %vm2789, %v2700, %v2702
        %v2836 = vsel %vm2789, %v2702, %v2704
        %v2837 = vsel %vm2789, %v2704, %v2706
        %v2838 = vsel %vm2789, %v2706, %v2708
        %v2839 = vsel %vm2789, %v2710, %v2712
        %v2840 = vsel %vm2789, %v2712, %v2714
        %v2841 = vsel %vm2789, %v2714, %v2716
        %v2842 = vsel %vm2789, %v2716, %v2718
        %v2843 = vsel %vm2789, %v2718, %v2720
        %v2844 = vsel %vm2789, %v2720, %v2722
        %v2845 = vsel %vm2789, %v2722, %v2724
        %v2846 = vsel %vm2789, %v2726, %v2728
        %v2847 = vsel %vm2789, %v2728, %v2730
        %v2848 = vsel %vm2789, %v2730, %v2732
        %v2849 = vsel %vm2789, %v2732, %v2734
        %v2850 = vsel %vm2789, %v2734, %v2736
        %v2851 = vsel %vm2789, %v2736, %v2738
        %v2852 = vsel %vm2789, %v2738, %v2740
        %v2853 = vsel %vm2789, %v2742, %v2744
        %v2854 = vsel %vm2789, %v2744, %v2746
        %v2855 = vsel %vm2789, %v2746, %v2748
        %v2856 = vsel %vm2789, %v2748, %v2750
        %v2857 = vsel %vm2789, %v2750, %v2752
        %v2858 = vsel %vm2789, %v2752, %v2754
        %v2859 = vsel %vm2789, %v2754, %v2756
        %v2860 = vsel %vm2789, %v2758, %v2760
        %v2861 = vsel %vm2789, %v2760, %v2762
        %v2862 = vsel %vm2789, %v2762, %v2764
        %v2863 = vsel %vm2789, %v2764, %v2766
        %v2864 = vsel %vm2789, %v2766, %v2768
        %v2865 = vsel %vm2789, %v2768, %v2770
        %v2866 = vsel %vm2789, %v2770, %v2772
        %v2867 = vsel %vm2789, %v2774, %v2776
        %v2868 = vsel %vm2789, %v2776, %v2778
        %v2869 = vsel %vm2789, %v2778, %v2780
        %v2870 = vsel %vm2789, %v2780, %v2782
        %v2871 = vsel %vm2789, %v2782, %v2784
        %v2872 = vsel %vm2789, %v2784, %v2786
        %v2873 = vsel %vm2789, %v2786, %v2788
        %v2970 = vsel %vm2789, 0.0, %v2598
        %v2971 = vsel %vm2789, 0.0, %v2614
        %v2972 = vsel %vm2789, 0.0, %v2630
        %v2973 = vsel %vm2789, 0.0, %v2646
        %v2974 = vsel %vm2789, 0.0, %v2662
        %v2975 = vsel %vm2789, 0.0, %v2678
        %v2976 = vsel %vm2789, 0.0, %v2694
        %v2977 = vsel %vm2789, 0.0, %v2710
        %v2978 = vsel %vm2789, 0.0, %v2726
        %v2979 = vsel %vm2789, 0.0, %v2742
        %v2980 = vsel %vm2789, 0.0, %v2758
        %v2981 = vsel %vm2789, 0.0, %v2774
        %v2982 = vld [vmem:[%s5] sm:$0xf]
        %v2983 = vld [vmem:[%s5 + $0x4] sm:$0xf]
        %v2984 = vld [vmem:[%s5 + $0x8] sm:$0xf]
        %v2985 = vld [vmem:[%s5 + $0xc] sm:$0xf]
        %v2986 = vpack.c.bf16 %v2971, %v2970
        %v2987 = vpack.c.bf16 %v2797, %v2790
        %v2988 = vpack.c.bf16 %v2798, %v2791
        %v2989 = vpack.c.bf16 %v2799, %v2792
        %v2990 = vpack.c.bf16 %v2800, %v2793
        %v2991 = vpack.c.bf16 %v2801, %v2794
        %v2992 = vpack.c.bf16 %v2802, %v2795
        %v2993 = vpack.c.bf16 %v2803, %v2796
        %v2994 = vpack.c.bf16 %v2973, %v2972
        %v2995 = vpack.c.bf16 %v2811, %v2804
        %v2996 = vpack.c.bf16 %v2812, %v2805
        %v2997 = vpack.c.bf16 %v2813, %v2806
        %v2998 = vpack.c.bf16 %v2814, %v2807
        %v2999 = vpack.c.bf16 %v2815, %v2808
        %v3000 = vpack.c.bf16 %v2816, %v2809
        %v3001 = vpack.c.bf16 %v2817, %v2810
        %v3002 = vpack.c.bf16 %v2975, %v2974
        %v3003 = vpack.c.bf16 %v2825, %v2818
        %v3004 = vpack.c.bf16 %v2826, %v2819
        %v3005 = vpack.c.bf16 %v2827, %v2820
        %v3006 = vpack.c.bf16 %v2828, %v2821
        %v3007 = vpack.c.bf16 %v2829, %v2822
        %v3008 = vpack.c.bf16 %v2830, %v2823
        %v3009 = vpack.c.bf16 %v2831, %v2824
        %v3010 = vpack.c.bf16 %v2977, %v2976
        %v3011 = vpack.c.bf16 %v2839, %v2832
        %v3012 = vpack.c.bf16 %v2840, %v2833
        %v3013 = vpack.c.bf16 %v2841, %v2834
        %v3014 = vpack.c.bf16 %v2842, %v2835
        %v3015 = vpack.c.bf16 %v2843, %v2836
        %v3016 = vpack.c.bf16 %v2844, %v2837
        %v3017 = vpack.c.bf16 %v2845, %v2838
        %v3018 = vpack.c.bf16 %v2979, %v2978
        %v3019 = vpack.c.bf16 %v2853, %v2846
        %v3020 = vpack.c.bf16 %v2854, %v2847
        %v3021 = vpack.c.bf16 %v2855, %v2848
        %v3022 = vpack.c.bf16 %v2856, %v2849
        %v3023 = vpack.c.bf16 %v2857, %v2850
        %v3024 = vpack.c.bf16 %v2858, %v2851
        %v3025 = vpack.c.bf16 %v2859, %v2852
        %v3026 = vpack.c.bf16 %v2981, %v2980
        %v3027 = vpack.c.bf16 %v2867, %v2860
        %v3028 = vpack.c.bf16 %v2868, %v2861
        %v3029 = vpack.c.bf16 %v2869, %v2862
        %v3030 = vpack.c.bf16 %v2870, %v2863
        %v3031 = vpack.c.bf16 %v2871, %v2864
        %v3032 = vpack.c.bf16 %v2872, %v2865
        %v3033 = vpack.c.bf16 %v2873, %v2866
        %s3034 = scalar_lea.vmem %s5, 16
        %v3035 = vld [vmem:[%s3034] sm:$0xf]
        %v3036 = vld [vmem:[%s3034 + $0x4] sm:$0xf]
        %v3037 = vld [vmem:[%s3034 + $0x8] sm:$0xf]
        %v3038 = vld [vmem:[%s3034 + $0xc] sm:$0xf]
        %v3039 = vpack.c.bf16 %v2325, %v2317
        %v3040 = vpack.c.bf16 %v2326, %v2318
        %v3041 = vpack.c.bf16 %v2327, %v2319
        %v3042 = vpack.c.bf16 %v2328, %v2320
        %v3043 = vpack.c.bf16 %v2329, %v2321
        %v3044 = vpack.c.bf16 %v2330, %v2322
        %v3045 = vpack.c.bf16 %v2331, %v2323
        %v3046 = vpack.c.bf16 %v2332, %v2324
        %v3047 = vpack.c.bf16 %v2341, %v2333
        %v3048 = vpack.c.bf16 %v2342, %v2334
        %v3049 = vpack.c.bf16 %v2343, %v2335
        %v3050 = vpack.c.bf16 %v2344, %v2336
        %v3051 = vpack.c.bf16 %v2345, %v2337
        %v3052 = vpack.c.bf16 %v2346, %v2338
        %v3053 = vpack.c.bf16 %v2347, %v2339
        %v3054 = vpack.c.bf16 %v2348, %v2340
        %v3055 = vpack.c.bf16 %v1758, %v1756
        %v3056 = vpack.c.bf16 %v1796, %v1794
        %v3057 = vpack.c.bf16 %v1834, %v1832
        %v3058 = vpack.c.bf16 %v1872, %v1870
        %v3059 = vpack.c.bf16 %v1910, %v1908
        %v3060 = vpack.c.bf16 %v1948, %v1946
        %v3061 = vpack.c.bf16 %v1986, %v1984
        %v3062 = vpack.c.bf16 %v2024, %v2022
        %v3063 = vpack.c.bf16 %v1763, %v1761
        %v3064 = vpack.c.bf16 %v1801, %v1799
        %v3065 = vpack.c.bf16 %v1839, %v1837
        %v3066 = vpack.c.bf16 %v1877, %v1875
        %v3067 = vpack.c.bf16 %v1915, %v1913
        %v3068 = vpack.c.bf16 %v1953, %v1951
        %v3069 = vpack.c.bf16 %v1991, %v1989
        %v3070 = vpack.c.bf16 %v2029, %v2027
        %v3071 = vpack.c.bf16 %v2509, %v2501
        %v3072 = vpack.c.bf16 %v2510, %v2502
        %v3073 = vpack.c.bf16 %v2511, %v2503
        %v3074 = vpack.c.bf16 %v2512, %v2504
        %v3075 = vpack.c.bf16 %v2513, %v2505
        %v3076 = vpack.c.bf16 %v2514, %v2506
        %v3077 = vpack.c.bf16 %v2515, %v2507
        %v3078 = vpack.c.bf16 %v2516, %v2508
        %v3079 = vpack.c.bf16 %v2525, %v2517
        %v3080 = vpack.c.bf16 %v2526, %v2518
        %v3081 = vpack.c.bf16 %v2527, %v2519
        %v3082 = vpack.c.bf16 %v2528, %v2520
        %v3083 = vpack.c.bf16 %v2529, %v2521
        %v3084 = vpack.c.bf16 %v2530, %v2522
        %v3085 = vpack.c.bf16 %v2531, %v2523
        %v3086 = vpack.c.bf16 %v2532, %v2524
        %v3091 = vunpack.c.l.b16 %v3035
        %v3092 = vunpack.c.l.b16 %v3036
        %v3093 = vunpack.c.l.b16 %v3037
        %v3094 = vunpack.c.l.b16 %v3038
        %v3095 = vpack.c.b16 %v3092, %v3091
        %v3096 = vpack.c.b16 %v3094, %v3093
        %vm3097 = vcmask 785408
        %v3099 = vsel %vm3097, %v3095, 0
        %v3102 = vsel %vm3097, %v3096, 0
        %3104 = vmatpush.bf16.msra.mxu0 0
        %3105 = vmatpush.bf16.msra.mxu0 0
        %3106 = vmatpush.bf16.msra.mxu0 %v3079
        %3107 = vmatpush.bf16.msra.mxu0 %v3071
        %3108 = vmatpush.bf16.msra.mxu0 %v3063
        %3109 = vmatpush.bf16.msra.mxu0 %v3055
        %3110 = vmatpush.bf16.msra.mxu0 %v3047
        %3111 = vmatpush.bf16.msra.mxu0 %v3039
        %3112 = vmatmul.bf16.gmra.mxu0 %v3099
        %v3113 = vpop.f32.mrf.mxu0
        %v3114 = vadd.f32 0.0, %v3113
        %v3115 = vpop.f32.mrf.mxu0
        %v3116 = vadd.f32 0.0, %v3115
        %3117 = vmatmul.bf16.gmra.mxu0 %v3102
        %v3118 = vpop.f32.mrf.mxu0
        %v3119 = vadd.f32 0.0, %v3118
        %v3120 = vpop.f32.mrf.mxu0
        %v3121 = vadd.f32 0.0, %v3120
        %3122 = vdwg.mxu0
        %3123 = vmatpush.bf16.msra.mxu0 0
        %3124 = vmatpush.bf16.msra.mxu0 0
        %3125 = vmatpush.bf16.msra.mxu0 %v3080
        %3126 = vmatpush.bf16.msra.mxu0 %v3072
        %3127 = vmatpush.bf16.msra.mxu0 %v3064
        %3128 = vmatpush.bf16.msra.mxu0 %v3056
        %3129 = vmatpush.bf16.msra.mxu0 %v3048
        %3130 = vmatpush.bf16.msra.mxu0 %v3040
        %3131 = vmatmul.bf16.gmra.mxu0 %v3099
        %v3132 = vpop.f32.mrf.mxu0
        %v3133 = vadd.f32 0.0, %v3132
        %v3134 = vpop.f32.mrf.mxu0
        %v3135 = vadd.f32 0.0, %v3134
        %3136 = vmatmul.bf16.gmra.mxu0 %v3102
        %v3137 = vpop.f32.mrf.mxu0
        %v3138 = vadd.f32 0.0, %v3137
        %v3139 = vpop.f32.mrf.mxu0
        %v3140 = vadd.f32 0.0, %v3139
        %3141 = vdwg.mxu0
        %3142 = vmatpush.bf16.msra.mxu0 0
        %3143 = vmatpush.bf16.msra.mxu0 0
        %3144 = vmatpush.bf16.msra.mxu0 %v3081
        %3145 = vmatpush.bf16.msra.mxu0 %v3073
        %3146 = vmatpush.bf16.msra.mxu0 %v3065
        %3147 = vmatpush.bf16.msra.mxu0 %v3057
        %3148 = vmatpush.bf16.msra.mxu0 %v3049
        %3149 = vmatpush.bf16.msra.mxu0 %v3041
        %3150 = vmatmul.bf16.gmra.mxu0 %v3099
        %v3151 = vpop.f32.mrf.mxu0
        %v3152 = vadd.f32 0.0, %v3151
        %v3153 = vpop.f32.mrf.mxu0
        %v3154 = vadd.f32 0.0, %v3153
        %3155 = vmatmul.bf16.gmra.mxu0 %v3102
        %v3156 = vpop.f32.mrf.mxu0
        %v3157 = vadd.f32 0.0, %v3156
        %v3158 = vpop.f32.mrf.mxu0
        %v3159 = vadd.f32 0.0, %v3158
        %3160 = vdwg.mxu0
        %3161 = vmatpush.bf16.msra.mxu0 0
        %3162 = vmatpush.bf16.msra.mxu0 0
        %3163 = vmatpush.bf16.msra.mxu0 %v3082
        %3164 = vmatpush.bf16.msra.mxu0 %v3074
        %3165 = vmatpush.bf16.msra.mxu0 %v3066
        %3166 = vmatpush.bf16.msra.mxu0 %v3058
        %3167 = vmatpush.bf16.msra.mxu0 %v3050
        %3168 = vmatpush.bf16.msra.mxu0 %v3042
        %3169 = vmatmul.bf16.gmra.mxu0 %v3099
        %v3170 = vpop.f32.mrf.mxu0
        %v3171 = vadd.f32 0.0, %v3170
        %v3172 = vpop.f32.mrf.mxu0
        %v3173 = vadd.f32 0.0, %v3172
        %3174 = vmatmul.bf16.gmra.mxu0 %v3102
        %v3175 = vpop.f32.mrf.mxu0
        %v3176 = vadd.f32 0.0, %v3175
        %v3177 = vpop.f32.mrf.mxu0
        %v3178 = vadd.f32 0.0, %v3177
        %3179 = vdwg.mxu0
        %3180 = vmatpush.bf16.msra.mxu0 0
        %3181 = vmatpush.bf16.msra.mxu0 0
        %3182 = vmatpush.bf16.msra.mxu0 %v3083
        %3183 = vmatpush.bf16.msra.mxu0 %v3075
        %3184 = vmatpush.bf16.msra.mxu0 %v3067
        %3185 = vmatpush.bf16.msra.mxu0 %v3059
        %3186 = vmatpush.bf16.msra.mxu0 %v3051
        %3187 = vmatpush.bf16.msra.mxu0 %v3043
        %3188 = vmatmul.bf16.gmra.mxu0 %v3099
        %v3189 = vpop.f32.mrf.mxu0
        %v3190 = vadd.f32 0.0, %v3189
        %v3191 = vpop.f32.mrf.mxu0
        %v3192 = vadd.f32 0.0, %v3191
        %3193 = vmatmul.bf16.gmra.mxu0 %v3102
        %v3194 = vpop.f32.mrf.mxu0
        %v3195 = vadd.f32 0.0, %v3194
        %v3196 = vpop.f32.mrf.mxu0
        %v3197 = vadd.f32 0.0, %v3196
        %3198 = vdwg.mxu0
        %3199 = vmatpush.bf16.msra.mxu0 0
        %3200 = vmatpush.bf16.msra.mxu0 0
        %3201 = vmatpush.bf16.msra.mxu0 %v3084
        %3202 = vmatpush.bf16.msra.mxu0 %v3076
        %3203 = vmatpush.bf16.msra.mxu0 %v3068
        %3204 = vmatpush.bf16.msra.mxu0 %v3060
        %3205 = vmatpush.bf16.msra.mxu0 %v3052
        %3206 = vmatpush.bf16.msra.mxu0 %v3044
        %3207 = vmatmul.bf16.gmra.mxu0 %v3099
        %v3208 = vpop.f32.mrf.mxu0
        %v3209 = vadd.f32 0.0, %v3208
        %v3210 = vpop.f32.mrf.mxu0
        %v3211 = vadd.f32 0.0, %v3210
        %3212 = vmatmul.bf16.gmra.mxu0 %v3102
        %v3213 = vpop.f32.mrf.mxu0
        %v3214 = vadd.f32 0.0, %v3213
        %v3215 = vpop.f32.mrf.mxu0
        %v3216 = vadd.f32 0.0, %v3215
        %3217 = vdwg.mxu0
        %3218 = vmatpush.bf16.msra.mxu0 0
        %3219 = vmatpush.bf16.msra.mxu0 0
        %3220 = vmatpush.bf16.msra.mxu0 %v3085
        %3221 = vmatpush.bf16.msra.mxu0 %v3077
        %3222 = vmatpush.bf16.msra.mxu0 %v3069
        %3223 = vmatpush.bf16.msra.mxu0 %v3061
        %3224 = vmatpush.bf16.msra.mxu0 %v3053
        %3225 = vmatpush.bf16.msra.mxu0 %v3045
        %3226 = vmatmul.bf16.gmra.mxu0 %v3099
        %v3227 = vpop.f32.mrf.mxu0
        %v3228 = vadd.f32 0.0, %v3227
        %v3229 = vpop.f32.mrf.mxu0
        %v3230 = vadd.f32 0.0, %v3229
        %3231 = vmatmul.bf16.gmra.mxu0 %v3102
        %v3232 = vpop.f32.mrf.mxu0
        %v3233 = vadd.f32 0.0, %v3232
        %v3234 = vpop.f32.mrf.mxu0
        %v3235 = vadd.f32 0.0, %v3234
        %3236 = vdwg.mxu0
        %3237 = vmatpush.bf16.msra.mxu0 0
        %3238 = vmatpush.bf16.msra.mxu0 0
        %3239 = vmatpush.bf16.msra.mxu0 %v3086
        %3240 = vmatpush.bf16.msra.mxu0 %v3078
        %3241 = vmatpush.bf16.msra.mxu0 %v3070
        %3242 = vmatpush.bf16.msra.mxu0 %v3062
        %3243 = vmatpush.bf16.msra.mxu0 %v3054
        %3244 = vmatpush.bf16.msra.mxu0 %v3046
        %3245 = vmatmul.bf16.gmra.mxu0 %v3099
        %v3246 = vpop.f32.mrf.mxu0
        %v3247 = vadd.f32 0.0, %v3246
        %v3248 = vpop.f32.mrf.mxu0
        %v3249 = vadd.f32 0.0, %v3248
        %3250 = vmatmul.bf16.gmra.mxu0 %v3102
        %v3251 = vpop.f32.mrf.mxu0
        %v3252 = vadd.f32 0.0, %v3251
        %v3253 = vpop.f32.mrf.mxu0
        %v3254 = vadd.f32 0.0, %v3253
        %3255 = vdwg.mxu0
        %v3260 = vunpack.c.l.b16 %v2982
        %v3261 = vunpack.c.l.b16 %v2983
        %v3262 = vunpack.c.l.b16 %v2984
        %v3263 = vunpack.c.l.b16 %v2985
        %v3264 = vpack.c.b16 %v3261, %v3260
        %v3265 = vpack.c.b16 %v3263, %v3262
        %v3267 = vsel %vm3097, %v3264, 0
        %v3270 = vsel %vm3097, %v3265, 0
        %3272 = vmatpush.bf16.msra.mxu0 0
        %3273 = vmatpush.bf16.msra.mxu0 0
        %3274 = vmatpush.bf16.msra.mxu0 %v3026
        %3275 = vmatpush.bf16.msra.mxu0 %v3018
        %3276 = vmatpush.bf16.msra.mxu0 %v3010
        %3277 = vmatpush.bf16.msra.mxu0 %v3002
        %3278 = vmatpush.bf16.msra.mxu0 %v2994
        %3279 = vmatpush.bf16.msra.mxu0 %v2986
        %3280 = vmatmul.bf16.gmra.mxu0 %v3267
        %v3281 = vpop.f32.mrf.mxu0
        %v3282 = vadd.f32 %v3114, %v3281
        %v3283 = vpop.f32.mrf.mxu0
        %v3284 = vadd.f32 %v3116, %v3283
        %3285 = vmatmul.bf16.gmra.mxu0 %v3270
        %v3286 = vpop.f32.mrf.mxu0
        %v3287 = vadd.f32 %v3119, %v3286
        %v3288 = vpop.f32.mrf.mxu0
        %v3289 = vadd.f32 %v3121, %v3288
        %3290 = vdwg.mxu0
        %3291 = vmatpush.bf16.msra.mxu0 0
        %3292 = vmatpush.bf16.msra.mxu0 0
        %3293 = vmatpush.bf16.msra.mxu0 %v3027
        %3294 = vmatpush.bf16.msra.mxu0 %v3019
        %3295 = vmatpush.bf16.msra.mxu0 %v3011
        %3296 = vmatpush.bf16.msra.mxu0 %v3003
        %3297 = vmatpush.bf16.msra.mxu0 %v2995
        %3298 = vmatpush.bf16.msra.mxu0 %v2987
        %3299 = vmatmul.bf16.gmra.mxu0 %v3267
        %v3300 = vpop.f32.mrf.mxu0
        %v3301 = vadd.f32 %v3133, %v3300
        %v3302 = vpop.f32.mrf.mxu0
        %v3303 = vadd.f32 %v3135, %v3302
        %3304 = vmatmul.bf16.gmra.mxu0 %v3270
        %v3305 = vpop.f32.mrf.mxu0
        %v3306 = vadd.f32 %v3138, %v3305
        %v3307 = vpop.f32.mrf.mxu0
        %v3308 = vadd.f32 %v3140, %v3307
        %3309 = vdwg.mxu0
        %3310 = vmatpush.bf16.msra.mxu0 0
        %3311 = vmatpush.bf16.msra.mxu0 0
        %3312 = vmatpush.bf16.msra.mxu0 %v3028
        %3313 = vmatpush.bf16.msra.mxu0 %v3020
        %3314 = vmatpush.bf16.msra.mxu0 %v3012
        %3315 = vmatpush.bf16.msra.mxu0 %v3004
        %3316 = vmatpush.bf16.msra.mxu0 %v2996
        %3317 = vmatpush.bf16.msra.mxu0 %v2988
        %3318 = vmatmul.bf16.gmra.mxu0 %v3267
        %v3319 = vpop.f32.mrf.mxu0
        %v3320 = vadd.f32 %v3152, %v3319
        %v3321 = vpop.f32.mrf.mxu0
        %v3322 = vadd.f32 %v3154, %v3321
        %3323 = vmatmul.bf16.gmra.mxu0 %v3270
        %v3324 = vpop.f32.mrf.mxu0
        %v3325 = vadd.f32 %v3157, %v3324
        %v3326 = vpop.f32.mrf.mxu0
        %v3327 = vadd.f32 %v3159, %v3326
        %3328 = vdwg.mxu0
        %3329 = vmatpush.bf16.msra.mxu0 0
        %3330 = vmatpush.bf16.msra.mxu0 0
        %3331 = vmatpush.bf16.msra.mxu0 %v3029
        %3332 = vmatpush.bf16.msra.mxu0 %v3021
        %3333 = vmatpush.bf16.msra.mxu0 %v3013
        %3334 = vmatpush.bf16.msra.mxu0 %v3005
        %3335 = vmatpush.bf16.msra.mxu0 %v2997
        %3336 = vmatpush.bf16.msra.mxu0 %v2989
        %3337 = vmatmul.bf16.gmra.mxu0 %v3267
        %v3338 = vpop.f32.mrf.mxu0
        %v3339 = vadd.f32 %v3171, %v3338
        %v3340 = vpop.f32.mrf.mxu0
        %v3341 = vadd.f32 %v3173, %v3340
        %3342 = vmatmul.bf16.gmra.mxu0 %v3270
        %v3343 = vpop.f32.mrf.mxu0
        %v3344 = vadd.f32 %v3176, %v3343
        %v3345 = vpop.f32.mrf.mxu0
        %v3346 = vadd.f32 %v3178, %v3345
        %3347 = vdwg.mxu0
        %3348 = vmatpush.bf16.msra.mxu0 0
        %3349 = vmatpush.bf16.msra.mxu0 0
        %3350 = vmatpush.bf16.msra.mxu0 %v3030
        %3351 = vmatpush.bf16.msra.mxu0 %v3022
        %3352 = vmatpush.bf16.msra.mxu0 %v3014
        %3353 = vmatpush.bf16.msra.mxu0 %v3006
        %3354 = vmatpush.bf16.msra.mxu0 %v2998
        %3355 = vmatpush.bf16.msra.mxu0 %v2990
        %3356 = vmatmul.bf16.gmra.mxu0 %v3267
        %v3357 = vpop.f32.mrf.mxu0
        %v3358 = vadd.f32 %v3190, %v3357
        %v3359 = vpop.f32.mrf.mxu0
        %v3360 = vadd.f32 %v3192, %v3359
        %3361 = vmatmul.bf16.gmra.mxu0 %v3270
        %v3362 = vpop.f32.mrf.mxu0
        %v3363 = vadd.f32 %v3195, %v3362
        %v3364 = vpop.f32.mrf.mxu0
        %v3365 = vadd.f32 %v3197, %v3364
        %3366 = vdwg.mxu0
        %3367 = vmatpush.bf16.msra.mxu0 0
        %3368 = vmatpush.bf16.msra.mxu0 0
        %3369 = vmatpush.bf16.msra.mxu0 %v3031
        %3370 = vmatpush.bf16.msra.mxu0 %v3023
        %3371 = vmatpush.bf16.msra.mxu0 %v3015
        %3372 = vmatpush.bf16.msra.mxu0 %v3007
        %3373 = vmatpush.bf16.msra.mxu0 %v2999
        %3374 = vmatpush.bf16.msra.mxu0 %v2991
        %3375 = vmatmul.bf16.gmra.mxu0 %v3267
        %v3376 = vpop.f32.mrf.mxu0
        %v3377 = vadd.f32 %v3209, %v3376
        %v3378 = vpop.f32.mrf.mxu0
        %v3379 = vadd.f32 %v3211, %v3378
        %3380 = vmatmul.bf16.gmra.mxu0 %v3270
        %v3381 = vpop.f32.mrf.mxu0
        %v3382 = vadd.f32 %v3214, %v3381
        %v3383 = vpop.f32.mrf.mxu0
        %v3384 = vadd.f32 %v3216, %v3383
        %3385 = vdwg.mxu0
        %3386 = vmatpush.bf16.msra.mxu0 0
        %3387 = vmatpush.bf16.msra.mxu0 0
        %3388 = vmatpush.bf16.msra.mxu0 %v3032
        %3389 = vmatpush.bf16.msra.mxu0 %v3024
        %3390 = vmatpush.bf16.msra.mxu0 %v3016
        %3391 = vmatpush.bf16.msra.mxu0 %v3008
        %3392 = vmatpush.bf16.msra.mxu0 %v3000
        %3393 = vmatpush.bf16.msra.mxu0 %v2992
        %3394 = vmatmul.bf16.gmra.mxu0 %v3267
        %v3395 = vpop.f32.mrf.mxu0
        %v3396 = vadd.f32 %v3228, %v3395
        %v3397 = vpop.f32.mrf.mxu0
        %v3398 = vadd.f32 %v3230, %v3397
        %3399 = vmatmul.bf16.gmra.mxu0 %v3270
        %v3400 = vpop.f32.mrf.mxu0
        %v3401 = vadd.f32 %v3233, %v3400
        %v3402 = vpop.f32.mrf.mxu0
        %v3403 = vadd.f32 %v3235, %v3402
        %3404 = vdwg.mxu0
        %3405 = vmatpush.bf16.msra.mxu0 0
        %3406 = vmatpush.bf16.msra.mxu0 0
        %3407 = vmatpush.bf16.msra.mxu0 %v3033
        %3408 = vmatpush.bf16.msra.mxu0 %v3025
        %3409 = vmatpush.bf16.msra.mxu0 %v3017
        %3410 = vmatpush.bf16.msra.mxu0 %v3009
        %3411 = vmatpush.bf16.msra.mxu0 %v3001
        %3412 = vmatpush.bf16.msra.mxu0 %v2993
        %3413 = vmatmul.bf16.gmra.mxu0 %v3267
        %v3414 = vpop.f32.mrf.mxu0
        %v3415 = vadd.f32 %v3247, %v3414
        %v3416 = vpop.f32.mrf.mxu0
        %v3417 = vadd.f32 %v3249, %v3416
        %3418 = vmatmul.bf16.gmra.mxu0 %v3270
        %v3419 = vpop.f32.mrf.mxu0
        %v3420 = vadd.f32 %v3252, %v3419
        %v3421 = vpop.f32.mrf.mxu0
        %v3422 = vadd.f32 %v3254, %v3421
        %3423 = vdwg.mxu0
        %3424 = vrot.lane.b32.xlu0 %v2317, 96
        %v3425 = vpop.permute.xlu0 %3424
        %3426 = vrot.lane.b32.xlu0 %v2318, 96
        %v3427 = vpop.permute.xlu0 %3426
        %3428 = vrot.lane.b32.xlu0 %v2319, 96
        %v3429 = vpop.permute.xlu0 %3428
        %3430 = vrot.lane.b32.xlu0 %v2320, 96
        %v3431 = vpop.permute.xlu0 %3430
        %3432 = vrot.lane.b32.xlu0 %v2321, 96
        %v3433 = vpop.permute.xlu0 %3432
        %3434 = vrot.lane.b32.xlu0 %v2322, 96
        %v3435 = vpop.permute.xlu0 %3434
        %3436 = vrot.lane.b32.xlu0 %v2323, 96
        %v3437 = vpop.permute.xlu0 %3436
        %3438 = vrot.lane.b32.xlu0 %v2324, 96
        %v3439 = vpop.permute.xlu0 %3438
        %3440 = vrot.lane.b32.xlu0 %v2325, 96
        %v3441 = vpop.permute.xlu0 %3440
        %3442 = vrot.lane.b32.xlu0 %v2326, 96
        %v3443 = vpop.permute.xlu0 %3442
        %3444 = vrot.lane.b32.xlu0 %v2327, 96
        %v3445 = vpop.permute.xlu0 %3444
        %3446 = vrot.lane.b32.xlu0 %v2328, 96
        %v3447 = vpop.permute.xlu0 %3446
        %3448 = vrot.lane.b32.xlu0 %v2329, 96
        %v3449 = vpop.permute.xlu0 %3448
        %3450 = vrot.lane.b32.xlu0 %v2330, 96
        %v3451 = vpop.permute.xlu0 %3450
        %3452 = vrot.lane.b32.xlu0 %v2331, 96
        %v3453 = vpop.permute.xlu0 %3452
        %3454 = vrot.lane.b32.xlu0 %v2332, 96
        %v3455 = vpop.permute.xlu0 %3454
        %3456 = vrot.lane.b32.xlu0 %v2333, 96
        %v3457 = vpop.permute.xlu0 %3456
        %3458 = vrot.lane.b32.xlu0 %v2334, 96
        %v3459 = vpop.permute.xlu0 %3458
        %3460 = vrot.lane.b32.xlu0 %v2335, 96
        %v3461 = vpop.permute.xlu0 %3460
        %3462 = vrot.lane.b32.xlu0 %v2336, 96
        %v3463 = vpop.permute.xlu0 %3462
        %3464 = vrot.lane.b32.xlu0 %v2337, 96
        %v3465 = vpop.permute.xlu0 %3464
        %3466 = vrot.lane.b32.xlu0 %v2338, 96
        %v3467 = vpop.permute.xlu0 %3466
        %3468 = vrot.lane.b32.xlu0 %v2339, 96
        %v3469 = vpop.permute.xlu0 %3468
        %3470 = vrot.lane.b32.xlu0 %v2340, 96
        %v3471 = vpop.permute.xlu0 %3470
        %3472 = vrot.lane.b32.xlu0 %v2341, 96
        %v3473 = vpop.permute.xlu0 %3472
        %3474 = vrot.lane.b32.xlu0 %v2342, 96
        %v3475 = vpop.permute.xlu0 %3474
        %3476 = vrot.lane.b32.xlu0 %v2343, 96
        %v3477 = vpop.permute.xlu0 %3476
        %3478 = vrot.lane.b32.xlu0 %v2344, 96
        %v3479 = vpop.permute.xlu0 %3478
        %3480 = vrot.lane.b32.xlu0 %v2345, 96
        %v3481 = vpop.permute.xlu0 %3480
        %3482 = vrot.lane.b32.xlu0 %v2346, 96
        %v3483 = vpop.permute.xlu0 %3482
        %3484 = vrot.lane.b32.xlu0 %v2347, 96
        %v3485 = vpop.permute.xlu0 %3484
        %3486 = vrot.lane.b32.xlu0 %v2348, 96
        %v3487 = vpop.permute.xlu0 %3486
        %3488 = vrot.lane.b32.xlu0 %v1756, 96
        %v3489 = vpop.permute.xlu0 %3488
        %3490 = vrot.lane.b32.xlu0 %v1794, 96
        %v3491 = vpop.permute.xlu0 %3490
        %3492 = vrot.lane.b32.xlu0 %v1832, 96
        %v3493 = vpop.permute.xlu0 %3492
        %3494 = vrot.lane.b32.xlu0 %v1870, 96
        %v3495 = vpop.permute.xlu0 %3494
        %3496 = vrot.lane.b32.xlu0 %v1908, 96
        %v3497 = vpop.permute.xlu0 %3496
        %3498 = vrot.lane.b32.xlu0 %v1946, 96
        %v3499 = vpop.permute.xlu0 %3498
        %3500 = vrot.lane.b32.xlu0 %v1984, 96
        %v3501 = vpop.permute.xlu0 %3500
        %3502 = vrot.lane.b32.xlu0 %v2022, 96
        %v3503 = vpop.permute.xlu0 %3502
        %3504 = vrot.lane.b32.xlu0 %v1758, 96
        %v3505 = vpop.permute.xlu0 %3504
        %3506 = vrot.lane.b32.xlu0 %v1796, 96
        %v3507 = vpop.permute.xlu0 %3506
        %3508 = vrot.lane.b32.xlu0 %v1834, 96
        %v3509 = vpop.permute.xlu0 %3508
        %3510 = vrot.lane.b32.xlu0 %v1872, 96
        %v3511 = vpop.permute.xlu0 %3510
        %3512 = vrot.lane.b32.xlu0 %v1910, 96
        %v3513 = vpop.permute.xlu0 %3512
        %3514 = vrot.lane.b32.xlu0 %v1948, 96
        %v3515 = vpop.permute.xlu0 %3514
        %3516 = vrot.lane.b32.xlu0 %v1986, 96
        %v3517 = vpop.permute.xlu0 %3516
        %3518 = vrot.lane.b32.xlu0 %v2024, 96
        %v3519 = vpop.permute.xlu0 %3518
        %3520 = vrot.lane.b32.xlu0 %v1761, 96
        %v3521 = vpop.permute.xlu0 %3520
        %3522 = vrot.lane.b32.xlu0 %v1799, 96
        %v3523 = vpop.permute.xlu0 %3522
        %3524 = vrot.lane.b32.xlu0 %v1837, 96
        %v3525 = vpop.permute.xlu0 %3524
        %3526 = vrot.lane.b32.xlu0 %v1875, 96
        %v3527 = vpop.permute.xlu0 %3526
        %3528 = vrot.lane.b32.xlu0 %v1913, 96
        %v3529 = vpop.permute.xlu0 %3528
        %3530 = vrot.lane.b32.xlu0 %v1951, 96
        %v3531 = vpop.permute.xlu0 %3530
        %3532 = vrot.lane.b32.xlu0 %v1989, 96
        %v3533 = vpop.permute.xlu0 %3532
        %3534 = vrot.lane.b32.xlu0 %v2027, 96
        %v3535 = vpop.permute.xlu0 %3534
        %3536 = vrot.lane.b32.xlu0 %v1763, 96
        %v3537 = vpop.permute.xlu0 %3536
        %3538 = vrot.lane.b32.xlu0 %v1801, 96
        %v3539 = vpop.permute.xlu0 %3538
        %3540 = vrot.lane.b32.xlu0 %v1839, 96
        %v3541 = vpop.permute.xlu0 %3540
        %3542 = vrot.lane.b32.xlu0 %v1877, 96
        %v3543 = vpop.permute.xlu0 %3542
        %3544 = vrot.lane.b32.xlu0 %v1915, 96
        %v3545 = vpop.permute.xlu0 %3544
        %3546 = vrot.lane.b32.xlu0 %v1953, 96
        %v3547 = vpop.permute.xlu0 %3546
        %3548 = vrot.lane.b32.xlu0 %v1991, 96
        %v3549 = vpop.permute.xlu0 %3548
        %3550 = vrot.lane.b32.xlu0 %v2029, 96
        %v3551 = vpop.permute.xlu0 %3550
        %3552 = vrot.lane.b32.xlu0 %v2501, 96
        %v3553 = vpop.permute.xlu0 %3552
        %3554 = vrot.lane.b32.xlu0 %v2502, 96
        %v3555 = vpop.permute.xlu0 %3554
        %3556 = vrot.lane.b32.xlu0 %v2503, 96
        %v3557 = vpop.permute.xlu0 %3556
        %3558 = vrot.lane.b32.xlu0 %v2504, 96
        %v3559 = vpop.permute.xlu0 %3558
        %3560 = vrot.lane.b32.xlu0 %v2505, 96
        %v3561 = vpop.permute.xlu0 %3560
        %3562 = vrot.lane.b32.xlu0 %v2506, 96
        %v3563 = vpop.permute.xlu0 %3562
        %3564 = vrot.lane.b32.xlu0 %v2507, 96
        %v3565 = vpop.permute.xlu0 %3564
        %3566 = vrot.lane.b32.xlu0 %v2508, 96
        %v3567 = vpop.permute.xlu0 %3566
        %3568 = vrot.lane.b32.xlu0 %v2509, 96
        %v3569 = vpop.permute.xlu0 %3568
        %3570 = vrot.lane.b32.xlu0 %v2510, 96
        %v3571 = vpop.permute.xlu0 %3570
        %3572 = vrot.lane.b32.xlu0 %v2511, 96
        %v3573 = vpop.permute.xlu0 %3572
        %3574 = vrot.lane.b32.xlu0 %v2512, 96
        %v3575 = vpop.permute.xlu0 %3574
        %3576 = vrot.lane.b32.xlu0 %v2513, 96
        %v3577 = vpop.permute.xlu0 %3576
        %3578 = vrot.lane.b32.xlu0 %v2514, 96
        %v3579 = vpop.permute.xlu0 %3578
        %3580 = vrot.lane.b32.xlu0 %v2515, 96
        %v3581 = vpop.permute.xlu0 %3580
        %3582 = vrot.lane.b32.xlu0 %v2516, 96
        %v3583 = vpop.permute.xlu0 %3582
        %3584 = vrot.lane.b32.xlu0 %v2517, 96
        %v3585 = vpop.permute.xlu0 %3584
        %3586 = vrot.lane.b32.xlu0 %v2518, 96
        %v3587 = vpop.permute.xlu0 %3586
        %3588 = vrot.lane.b32.xlu0 %v2519, 96
        %v3589 = vpop.permute.xlu0 %3588
        %3590 = vrot.lane.b32.xlu0 %v2520, 96
        %v3591 = vpop.permute.xlu0 %3590
        %3592 = vrot.lane.b32.xlu0 %v2521, 96
        %v3593 = vpop.permute.xlu0 %3592
        %3594 = vrot.lane.b32.xlu0 %v2522, 96
        %v3595 = vpop.permute.xlu0 %3594
        %3596 = vrot.lane.b32.xlu0 %v2523, 96
        %v3597 = vpop.permute.xlu0 %3596
        %3598 = vrot.lane.b32.xlu0 %v2524, 96
        %v3599 = vpop.permute.xlu0 %3598
        %3600 = vrot.lane.b32.xlu0 %v2525, 96
        %v3601 = vpop.permute.xlu0 %3600
        %3602 = vrot.lane.b32.xlu0 %v2526, 96
        %v3603 = vpop.permute.xlu0 %3602
        %3604 = vrot.lane.b32.xlu0 %v2527, 96
        %v3605 = vpop.permute.xlu0 %3604
        %3606 = vrot.lane.b32.xlu0 %v2528, 96
        %v3607 = vpop.permute.xlu0 %3606
        %3608 = vrot.lane.b32.xlu0 %v2529, 96
        %v3609 = vpop.permute.xlu0 %3608
        %3610 = vrot.lane.b32.xlu0 %v2530, 96
        %v3611 = vpop.permute.xlu0 %3610
        %3612 = vrot.lane.b32.xlu0 %v2531, 96
        %v3613 = vpop.permute.xlu0 %3612
        %3614 = vrot.lane.b32.xlu0 %v2532, 96
        %v3615 = vpop.permute.xlu0 %3614
        %v3616 = vsel %vm3097, %v3425, %v3427
        %v3617 = vsel %vm3097, %v3427, %v3429
        %v3618 = vsel %vm3097, %v3429, %v3431
        %v3619 = vsel %vm3097, %v3431, %v3433
        %v3620 = vsel %vm3097, %v3433, %v3435
        %v3621 = vsel %vm3097, %v3435, %v3437
        %v3622 = vsel %vm3097, %v3437, %v3439
        %v3623 = vsel %vm3097, %v3441, %v3443
        %v3624 = vsel %vm3097, %v3443, %v3445
        %v3625 = vsel %vm3097, %v3445, %v3447
        %v3626 = vsel %vm3097, %v3447, %v3449
        %v3627 = vsel %vm3097, %v3449, %v3451
        %v3628 = vsel %vm3097, %v3451, %v3453
        %v3629 = vsel %vm3097, %v3453, %v3455
        %v3630 = vsel %vm3097, %v3457, %v3459
        %v3631 = vsel %vm3097, %v3459, %v3461
        %v3632 = vsel %vm3097, %v3461, %v3463
        %v3633 = vsel %vm3097, %v3463, %v3465
        %v3634 = vsel %vm3097, %v3465, %v3467
        %v3635 = vsel %vm3097, %v3467, %v3469
        %v3636 = vsel %vm3097, %v3469, %v3471
        %v3637 = vsel %vm3097, %v3473, %v3475
        %v3638 = vsel %vm3097, %v3475, %v3477
        %v3639 = vsel %vm3097, %v3477, %v3479
        %v3640 = vsel %vm3097, %v3479, %v3481
        %v3641 = vsel %vm3097, %v3481, %v3483
        %v3642 = vsel %vm3097, %v3483, %v3485
        %v3643 = vsel %vm3097, %v3485, %v3487
        %v3644 = vsel %vm3097, %v3489, %v3491
        %v3645 = vsel %vm3097, %v3491, %v3493
        %v3646 = vsel %vm3097, %v3493, %v3495
        %v3647 = vsel %vm3097, %v3495, %v3497
        %v3648 = vsel %vm3097, %v3497, %v3499
        %v3649 = vsel %vm3097, %v3499, %v3501
        %v3650 = vsel %vm3097, %v3501, %v3503
        %v3651 = vsel %vm3097, %v3505, %v3507
        %v3652 = vsel %vm3097, %v3507, %v3509
        %v3653 = vsel %vm3097, %v3509, %v3511
        %v3654 = vsel %vm3097, %v3511, %v3513
        %v3655 = vsel %vm3097, %v3513, %v3515
        %v3656 = vsel %vm3097, %v3515, %v3517
        %v3657 = vsel %vm3097, %v3517, %v3519
        %v3658 = vsel %vm3097, %v3521, %v3523
        %v3659 = vsel %vm3097, %v3523, %v3525
        %v3660 = vsel %vm3097, %v3525, %v3527
        %v3661 = vsel %vm3097, %v3527, %v3529
        %v3662 = vsel %vm3097, %v3529, %v3531
        %v3663 = vsel %vm3097, %v3531, %v3533
        %v3664 = vsel %vm3097, %v3533, %v3535
        %v3665 = vsel %vm3097, %v3537, %v3539
        %v3666 = vsel %vm3097, %v3539, %v3541
        %v3667 = vsel %vm3097, %v3541, %v3543
        %v3668 = vsel %vm3097, %v3543, %v3545
        %v3669 = vsel %vm3097, %v3545, %v3547
        %v3670 = vsel %vm3097, %v3547, %v3549
        %v3671 = vsel %vm3097, %v3549, %v3551
        %v3672 = vsel %vm3097, %v3553, %v3555
        %v3673 = vsel %vm3097, %v3555, %v3557
        %v3674 = vsel %vm3097, %v3557, %v3559
        %v3675 = vsel %vm3097, %v3559, %v3561
        %v3676 = vsel %vm3097, %v3561, %v3563
        %v3677 = vsel %vm3097, %v3563, %v3565
        %v3678 = vsel %vm3097, %v3565, %v3567
        %v3679 = vsel %vm3097, %v3569, %v3571
        %v3680 = vsel %vm3097, %v3571, %v3573
        %v3681 = vsel %vm3097, %v3573, %v3575
        %v3682 = vsel %vm3097, %v3575, %v3577
        %v3683 = vsel %vm3097, %v3577, %v3579
        %v3684 = vsel %vm3097, %v3579, %v3581
        %v3685 = vsel %vm3097, %v3581, %v3583
        %v3686 = vsel %vm3097, %v3585, %v3587
        %v3687 = vsel %vm3097, %v3587, %v3589
        %v3688 = vsel %vm3097, %v3589, %v3591
        %v3689 = vsel %vm3097, %v3591, %v3593
        %v3690 = vsel %vm3097, %v3593, %v3595
        %v3691 = vsel %vm3097, %v3595, %v3597
        %v3692 = vsel %vm3097, %v3597, %v3599
        %v3693 = vsel %vm3097, %v3601, %v3603
        %v3694 = vsel %vm3097, %v3603, %v3605
        %v3695 = vsel %vm3097, %v3605, %v3607
        %v3696 = vsel %vm3097, %v3607, %v3609
        %v3697 = vsel %vm3097, %v3609, %v3611
        %v3698 = vsel %vm3097, %v3611, %v3613
        %v3699 = vsel %vm3097, %v3613, %v3615
        %v3796 = vsel %vm3097, %v3439, 0.0
        %v3797 = vsel %vm3097, %v3455, 0.0
        %v3798 = vsel %vm3097, %v3471, 0.0
        %v3799 = vsel %vm3097, %v3487, 0.0
        %v3800 = vsel %vm3097, %v3503, 0.0
        %v3801 = vsel %vm3097, %v3519, 0.0
        %v3802 = vsel %vm3097, %v3535, 0.0
        %v3803 = vsel %vm3097, %v3551, 0.0
        %v3804 = vsel %vm3097, %v3567, 0.0
        %v3805 = vsel %vm3097, %v3583, 0.0
        %v3806 = vsel %vm3097, %v3599, 0.0
        %v3807 = vsel %vm3097, %v3615, 0.0
        %s3808 = scalar_lea.vmem %s5, 32
        %v3809 = vld [vmem:[%s3808] sm:$0xf]
        %v3810 = vld [vmem:[%s3808 + $0x4] sm:$0xf]
        %v3811 = vld [vmem:[%s3808 + $0x8] sm:$0xf]
        %v3812 = vld [vmem:[%s3808 + $0xc] sm:$0xf]
        %v3813 = vpack.c.bf16 %v3623, %v3616
        %v3814 = vpack.c.bf16 %v3624, %v3617
        %v3815 = vpack.c.bf16 %v3625, %v3618
        %v3816 = vpack.c.bf16 %v3626, %v3619
        %v3817 = vpack.c.bf16 %v3627, %v3620
        %v3818 = vpack.c.bf16 %v3628, %v3621
        %v3819 = vpack.c.bf16 %v3629, %v3622
        %v3820 = vpack.c.bf16 %v3797, %v3796
        %v3821 = vpack.c.bf16 %v3637, %v3630
        %v3822 = vpack.c.bf16 %v3638, %v3631
        %v3823 = vpack.c.bf16 %v3639, %v3632
        %v3824 = vpack.c.bf16 %v3640, %v3633
        %v3825 = vpack.c.bf16 %v3641, %v3634
        %v3826 = vpack.c.bf16 %v3642, %v3635
        %v3827 = vpack.c.bf16 %v3643, %v3636
        %v3828 = vpack.c.bf16 %v3799, %v3798
        %v3829 = vpack.c.bf16 %v3651, %v3644
        %v3830 = vpack.c.bf16 %v3652, %v3645
        %v3831 = vpack.c.bf16 %v3653, %v3646
        %v3832 = vpack.c.bf16 %v3654, %v3647
        %v3833 = vpack.c.bf16 %v3655, %v3648
        %v3834 = vpack.c.bf16 %v3656, %v3649
        %v3835 = vpack.c.bf16 %v3657, %v3650
        %v3836 = vpack.c.bf16 %v3801, %v3800
        %v3837 = vpack.c.bf16 %v3665, %v3658
        %v3838 = vpack.c.bf16 %v3666, %v3659
        %v3839 = vpack.c.bf16 %v3667, %v3660
        %v3840 = vpack.c.bf16 %v3668, %v3661
        %v3841 = vpack.c.bf16 %v3669, %v3662
        %v3842 = vpack.c.bf16 %v3670, %v3663
        %v3843 = vpack.c.bf16 %v3671, %v3664
        %v3844 = vpack.c.bf16 %v3803, %v3802
        %v3845 = vpack.c.bf16 %v3679, %v3672
        %v3846 = vpack.c.bf16 %v3680, %v3673
        %v3847 = vpack.c.bf16 %v3681, %v3674
        %v3848 = vpack.c.bf16 %v3682, %v3675
        %v3849 = vpack.c.bf16 %v3683, %v3676
        %v3850 = vpack.c.bf16 %v3684, %v3677
        %v3851 = vpack.c.bf16 %v3685, %v3678
        %v3852 = vpack.c.bf16 %v3805, %v3804
        %v3853 = vpack.c.bf16 %v3693, %v3686
        %v3854 = vpack.c.bf16 %v3694, %v3687
        %v3855 = vpack.c.bf16 %v3695, %v3688
        %v3856 = vpack.c.bf16 %v3696, %v3689
        %v3857 = vpack.c.bf16 %v3697, %v3690
        %v3858 = vpack.c.bf16 %v3698, %v3691
        %v3859 = vpack.c.bf16 %v3699, %v3692
        %v3860 = vpack.c.bf16 %v3807, %v3806
        %v3865 = vunpack.c.l.b16 %v3809
        %v3866 = vunpack.c.l.b16 %v3810
        %v3867 = vunpack.c.l.b16 %v3811
        %v3868 = vunpack.c.l.b16 %v3812
        %v3869 = vpack.c.b16 %v3866, %v3865
        %v3870 = vpack.c.b16 %v3868, %v3867
        %v3872 = vsel %vm3097, %v3869, 0
        %v3875 = vsel %vm3097, %v3870, 0
        %3877 = vmatpush.bf16.msra.mxu0 0
        %3878 = vmatpush.bf16.msra.mxu0 0
        %3879 = vmatpush.bf16.msra.mxu0 %v3853
        %3880 = vmatpush.bf16.msra.mxu0 %v3845
        %3881 = vmatpush.bf16.msra.mxu0 %v3837
        %3882 = vmatpush.bf16.msra.mxu0 %v3829
        %3883 = vmatpush.bf16.msra.mxu0 %v3821
        %3884 = vmatpush.bf16.msra.mxu0 %v3813
        %3885 = vmatmul.bf16.gmra.mxu0 %v3872
        %v3886 = vpop.f32.mrf.mxu0
        %v3887 = vadd.f32 0.0, %v3886
        %v3888 = vpop.f32.mrf.mxu0
        %v3889 = vadd.f32 0.0, %v3888
        %3890 = vmatmul.bf16.gmra.mxu0 %v3875
        %v3891 = vpop.f32.mrf.mxu0
        %v3892 = vadd.f32 0.0, %v3891
        %v3893 = vpop.f32.mrf.mxu0
        %v3894 = vadd.f32 0.0, %v3893
        %3895 = vdwg.mxu0
        %3896 = vmatpush.bf16.msra.mxu0 0
        %3897 = vmatpush.bf16.msra.mxu0 0
        %3898 = vmatpush.bf16.msra.mxu0 %v3854
        %3899 = vmatpush.bf16.msra.mxu0 %v3846
        %3900 = vmatpush.bf16.msra.mxu0 %v3838
        %3901 = vmatpush.bf16.msra.mxu0 %v3830
        %3902 = vmatpush.bf16.msra.mxu0 %v3822
        %3903 = vmatpush.bf16.msra.mxu0 %v3814
        %3904 = vmatmul.bf16.gmra.mxu0 %v3872
        %v3905 = vpop.f32.mrf.mxu0
        %v3906 = vadd.f32 0.0, %v3905
        %v3907 = vpop.f32.mrf.mxu0
        %v3908 = vadd.f32 0.0, %v3907
        %3909 = vmatmul.bf16.gmra.mxu0 %v3875
        %v3910 = vpop.f32.mrf.mxu0
        %v3911 = vadd.f32 0.0, %v3910
        %v3912 = vpop.f32.mrf.mxu0
        %v3913 = vadd.f32 0.0, %v3912
        %3914 = vdwg.mxu0
        %3915 = vmatpush.bf16.msra.mxu0 0
        %3916 = vmatpush.bf16.msra.mxu0 0
        %3917 = vmatpush.bf16.msra.mxu0 %v3855
        %3918 = vmatpush.bf16.msra.mxu0 %v3847
        %3919 = vmatpush.bf16.msra.mxu0 %v3839
        %3920 = vmatpush.bf16.msra.mxu0 %v3831
        %3921 = vmatpush.bf16.msra.mxu0 %v3823
        %3922 = vmatpush.bf16.msra.mxu0 %v3815
        %3923 = vmatmul.bf16.gmra.mxu0 %v3872
        %v3924 = vpop.f32.mrf.mxu0
        %v3925 = vadd.f32 0.0, %v3924
        %v3926 = vpop.f32.mrf.mxu0
        %v3927 = vadd.f32 0.0, %v3926
        %3928 = vmatmul.bf16.gmra.mxu0 %v3875
        %v3929 = vpop.f32.mrf.mxu0
        %v3930 = vadd.f32 0.0, %v3929
        %v3931 = vpop.f32.mrf.mxu0
        %v3932 = vadd.f32 0.0, %v3931
        %3933 = vdwg.mxu0
        %3934 = vmatpush.bf16.msra.mxu0 0
        %3935 = vmatpush.bf16.msra.mxu0 0
        %3936 = vmatpush.bf16.msra.mxu0 %v3856
        %3937 = vmatpush.bf16.msra.mxu0 %v3848
        %3938 = vmatpush.bf16.msra.mxu0 %v3840
        %3939 = vmatpush.bf16.msra.mxu0 %v3832
        %3940 = vmatpush.bf16.msra.mxu0 %v3824
        %3941 = vmatpush.bf16.msra.mxu0 %v3816
        %3942 = vmatmul.bf16.gmra.mxu0 %v3872
        %v3943 = vpop.f32.mrf.mxu0
        %v3944 = vadd.f32 0.0, %v3943
        %v3945 = vpop.f32.mrf.mxu0
        %v3946 = vadd.f32 0.0, %v3945
        %3947 = vmatmul.bf16.gmra.mxu0 %v3875
        %v3948 = vpop.f32.mrf.mxu0
        %v3949 = vadd.f32 0.0, %v3948
        %v3950 = vpop.f32.mrf.mxu0
        %v3951 = vadd.f32 0.0, %v3950
        %3952 = vdwg.mxu0
        %3953 = vmatpush.bf16.msra.mxu0 0
        %3954 = vmatpush.bf16.msra.mxu0 0
        %3955 = vmatpush.bf16.msra.mxu0 %v3857
        %3956 = vmatpush.bf16.msra.mxu0 %v3849
        %3957 = vmatpush.bf16.msra.mxu0 %v3841
        %3958 = vmatpush.bf16.msra.mxu0 %v3833
        %3959 = vmatpush.bf16.msra.mxu0 %v3825
        %3960 = vmatpush.bf16.msra.mxu0 %v3817
        %3961 = vmatmul.bf16.gmra.mxu0 %v3872
        %v3962 = vpop.f32.mrf.mxu0
        %v3963 = vadd.f32 0.0, %v3962
        %v3964 = vpop.f32.mrf.mxu0
        %v3965 = vadd.f32 0.0, %v3964
        %3966 = vmatmul.bf16.gmra.mxu0 %v3875
        %v3967 = vpop.f32.mrf.mxu0
        %v3968 = vadd.f32 0.0, %v3967
        %v3969 = vpop.f32.mrf.mxu0
        %v3970 = vadd.f32 0.0, %v3969
        %3971 = vdwg.mxu0
        %3972 = vmatpush.bf16.msra.mxu0 0
        %3973 = vmatpush.bf16.msra.mxu0 0
        %3974 = vmatpush.bf16.msra.mxu0 %v3858
        %3975 = vmatpush.bf16.msra.mxu0 %v3850
        %3976 = vmatpush.bf16.msra.mxu0 %v3842
        %3977 = vmatpush.bf16.msra.mxu0 %v3834
        %3978 = vmatpush.bf16.msra.mxu0 %v3826
        %3979 = vmatpush.bf16.msra.mxu0 %v3818
        %3980 = vmatmul.bf16.gmra.mxu0 %v3872
        %v3981 = vpop.f32.mrf.mxu0
        %v3982 = vadd.f32 0.0, %v3981
        %v3983 = vpop.f32.mrf.mxu0
        %v3984 = vadd.f32 0.0, %v3983
        %3985 = vmatmul.bf16.gmra.mxu0 %v3875
        %v3986 = vpop.f32.mrf.mxu0
        %v3987 = vadd.f32 0.0, %v3986
        %v3988 = vpop.f32.mrf.mxu0
        %v3989 = vadd.f32 0.0, %v3988
        %3990 = vdwg.mxu0
        %3991 = vmatpush.bf16.msra.mxu0 0
        %3992 = vmatpush.bf16.msra.mxu0 0
        %3993 = vmatpush.bf16.msra.mxu0 %v3859
        %3994 = vmatpush.bf16.msra.mxu0 %v3851
        %3995 = vmatpush.bf16.msra.mxu0 %v3843
        %3996 = vmatpush.bf16.msra.mxu0 %v3835
        %3997 = vmatpush.bf16.msra.mxu0 %v3827
        %3998 = vmatpush.bf16.msra.mxu0 %v3819
        %3999 = vmatmul.bf16.gmra.mxu0 %v3872
        %v4000 = vpop.f32.mrf.mxu0
        %v4001 = vadd.f32 0.0, %v4000
        %v4002 = vpop.f32.mrf.mxu0
        %v4003 = vadd.f32 0.0, %v4002
        %4004 = vmatmul.bf16.gmra.mxu0 %v3875
        %v4005 = vpop.f32.mrf.mxu0
        %v4006 = vadd.f32 0.0, %v4005
        %v4007 = vpop.f32.mrf.mxu0
        %v4008 = vadd.f32 0.0, %v4007
        %4009 = vdwg.mxu0
        %4010 = vmatpush.bf16.msra.mxu0 0
        %4011 = vmatpush.bf16.msra.mxu0 0
        %4012 = vmatpush.bf16.msra.mxu0 %v3860
        %4013 = vmatpush.bf16.msra.mxu0 %v3852
        %4014 = vmatpush.bf16.msra.mxu0 %v3844
        %4015 = vmatpush.bf16.msra.mxu0 %v3836
        %4016 = vmatpush.bf16.msra.mxu0 %v3828
        %4017 = vmatpush.bf16.msra.mxu0 %v3820
        %4018 = vmatmul.bf16.gmra.mxu0 %v3872
        %v4019 = vpop.f32.mrf.mxu0
        %v4020 = vadd.f32 0.0, %v4019
        %v4021 = vpop.f32.mrf.mxu0
        %v4022 = vadd.f32 0.0, %v4021
        %4023 = vmatmul.bf16.gmra.mxu0 %v3875
        %v4024 = vpop.f32.mrf.mxu0
        %v4025 = vadd.f32 0.0, %v4024
        %v4026 = vpop.f32.mrf.mxu0
        %v4027 = vadd.f32 0.0, %v4026
        %4028 = vdwg.mxu0
        %v4029 = vadd.f32 %v3282, %v3887
        %v4030 = vadd.f32 %v3301, %v3906
        %v4031 = vadd.f32 %v3320, %v3925
        %v4032 = vadd.f32 %v3339, %v3944
        %v4033 = vadd.f32 %v3358, %v3963
        %v4034 = vadd.f32 %v3377, %v3982
        %v4035 = vadd.f32 %v3396, %v4001
        %v4036 = vadd.f32 %v3415, %v4020
        %v4037 = vadd.f32 %v3284, %v3889
        %v4038 = vadd.f32 %v3303, %v3908
        %v4039 = vadd.f32 %v3322, %v3927
        %v4040 = vadd.f32 %v3341, %v3946
        %v4041 = vadd.f32 %v3360, %v3965
        %v4042 = vadd.f32 %v3379, %v3984
        %v4043 = vadd.f32 %v3398, %v4003
        %v4044 = vadd.f32 %v3417, %v4022
        %v4045 = vadd.f32 %v3287, %v3892
        %v4046 = vadd.f32 %v3306, %v3911
        %v4047 = vadd.f32 %v3325, %v3930
        %v4048 = vadd.f32 %v3344, %v3949
        %v4049 = vadd.f32 %v3363, %v3968
        %v4050 = vadd.f32 %v3382, %v3987
        %v4051 = vadd.f32 %v3401, %v4006
        %v4052 = vadd.f32 %v3420, %v4025
        %v4053 = vadd.f32 %v3289, %v3894
        %v4054 = vadd.f32 %v3308, %v3913
        %v4055 = vadd.f32 %v3327, %v3932
        %v4056 = vadd.f32 %v3346, %v3951
        %v4057 = vadd.f32 %v3365, %v3970
        %v4058 = vadd.f32 %v3384, %v3989
        %v4059 = vadd.f32 %v3403, %v4008
        %v4060 = vadd.f32 %v3422, %v4027
        %v4061 = vld [vmem:[%s6] sm:$0xff]
        %v4062 = vld [vmem:[%s6 + $0x8] sm:$0xff]
        %v4063 = vld [vmem:[%s6 + $0x10] sm:$0xff]
        %v4064 = vld [vmem:[%s6 + $0x18] sm:$0xff]
        %4066 = vset.pattern.permute.xlu0 0
        %4067 = vperm.xlu0 %4066, %v4061
        %v4068 = vpop.permute.xlu0 %4067
        %4071 = vset.pattern.permute.xlu0 0
        %4072 = vperm.xlu0 %4071, %v4062
        %v4073 = vpop.permute.xlu0 %4072
        %4076 = vset.pattern.permute.xlu0 0
        %4077 = vperm.xlu0 %4076, %v4063
        %v4078 = vpop.permute.xlu0 %4077
        %4081 = vset.pattern.permute.xlu0 0
        %4082 = vperm.xlu0 %4081, %v4064
        %v4083 = vpop.permute.xlu0 %4082
        %v4085 = vmul.f32 %v4029, %v4068
        %v4086 = vmul.f32 %v4030, %v4068
        %v4087 = vmul.f32 %v4031, %v4068
        %v4088 = vmul.f32 %v4032, %v4068
        %v4089 = vmul.f32 %v4033, %v4068
        %v4090 = vmul.f32 %v4034, %v4068
        %v4091 = vmul.f32 %v4035, %v4068
        %v4092 = vmul.f32 %v4036, %v4068
        %v4093 = vmul.f32 %v4037, %v4073
        %v4094 = vmul.f32 %v4038, %v4073
        %v4095 = vmul.f32 %v4039, %v4073
        %v4096 = vmul.f32 %v4040, %v4073
        %v4097 = vmul.f32 %v4041, %v4073
        %v4098 = vmul.f32 %v4042, %v4073
        %v4099 = vmul.f32 %v4043, %v4073
        %v4100 = vmul.f32 %v4044, %v4073
        %v4101 = vmul.f32 %v4045, %v4078
        %v4102 = vmul.f32 %v4046, %v4078
        %v4103 = vmul.f32 %v4047, %v4078
        %v4104 = vmul.f32 %v4048, %v4078
        %v4105 = vmul.f32 %v4049, %v4078
        %v4106 = vmul.f32 %v4050, %v4078
        %v4107 = vmul.f32 %v4051, %v4078
        %v4108 = vmul.f32 %v4052, %v4078
        %v4109 = vmul.f32 %v4053, %v4083
        %v4110 = vmul.f32 %v4054, %v4083
        %v4111 = vmul.f32 %v4055, %v4083
        %v4112 = vmul.f32 %v4056, %v4083
        %v4113 = vmul.f32 %v4057, %v4083
        %v4114 = vmul.f32 %v4058, %v4083
        %v4115 = vmul.f32 %v4059, %v4083
        %v4116 = vmul.f32 %v4060, %v4083
        %v4117 = vld [vmem:[%s7] sm:$0xff]
        %v4118 = vld [vmem:[%s7 + $0x8] sm:$0xff]
        %v4119 = vld [vmem:[%s7 + $0x10] sm:$0xff]
        %v4120 = vld [vmem:[%s7 + $0x18] sm:$0xff]
        %4122 = vset.pattern.permute.xlu0 0
        %4123 = vperm.xlu0 %4122, %v4117
        %v4124 = vpop.permute.xlu0 %4123
        %4127 = vset.pattern.permute.xlu0 0
        %4128 = vperm.xlu0 %4127, %v4118
        %v4129 = vpop.permute.xlu0 %4128
        %4132 = vset.pattern.permute.xlu0 0
        %4133 = vperm.xlu0 %4132, %v4119
        %v4134 = vpop.permute.xlu0 %4133
        %4137 = vset.pattern.permute.xlu0 0
        %4138 = vperm.xlu0 %4137, %v4120
        %v4139 = vpop.permute.xlu0 %4138
        %v4141 = vadd.f32 %v4085, %v4124
        %v4142 = vadd.f32 %v4086, %v4124
        %v4143 = vadd.f32 %v4087, %v4124
        %v4144 = vadd.f32 %v4088, %v4124
        %v4145 = vadd.f32 %v4089, %v4124
        %v4146 = vadd.f32 %v4090, %v4124
        %v4147 = vadd.f32 %v4091, %v4124
        %v4148 = vadd.f32 %v4092, %v4124
        %v4149 = vadd.f32 %v4093, %v4129
        %v4150 = vadd.f32 %v4094, %v4129
        %v4151 = vadd.f32 %v4095, %v4129
        %v4152 = vadd.f32 %v4096, %v4129
        %v4153 = vadd.f32 %v4097, %v4129
        %v4154 = vadd.f32 %v4098, %v4129
        %v4155 = vadd.f32 %v4099, %v4129
        %v4156 = vadd.f32 %v4100, %v4129
        %v4157 = vadd.f32 %v4101, %v4134
        %v4158 = vadd.f32 %v4102, %v4134
        %v4159 = vadd.f32 %v4103, %v4134
        %v4160 = vadd.f32 %v4104, %v4134
        %v4161 = vadd.f32 %v4105, %v4134
        %v4162 = vadd.f32 %v4106, %v4134
        %v4163 = vadd.f32 %v4107, %v4134
        %v4164 = vadd.f32 %v4108, %v4134
        %v4165 = vadd.f32 %v4109, %v4139
        %v4166 = vadd.f32 %v4110, %v4139
        %v4167 = vadd.f32 %v4111, %v4139
        %v4168 = vadd.f32 %v4112, %v4139
        %v4169 = vadd.f32 %v4113, %v4139
        %v4170 = vadd.f32 %v4114, %v4139
        %v4171 = vadd.f32 %v4115, %v4139
        %v4172 = vadd.f32 %v4116, %v4139
        %v4173 = vxor.u32 %v4141, 2147483648
        %v4174 = vxor.u32 %v4142, 2147483648
        %v4175 = vxor.u32 %v4143, 2147483648
        %v4176 = vxor.u32 %v4144, 2147483648
        %v4177 = vxor.u32 %v4145, 2147483648
        %v4178 = vxor.u32 %v4146, 2147483648
        %v4179 = vxor.u32 %v4147, 2147483648
        %v4180 = vxor.u32 %v4148, 2147483648
        %v4181 = vxor.u32 %v4149, 2147483648
        %v4182 = vxor.u32 %v4150, 2147483648
        %v4183 = vxor.u32 %v4151, 2147483648
        %v4184 = vxor.u32 %v4152, 2147483648
        %v4185 = vxor.u32 %v4153, 2147483648
        %v4186 = vxor.u32 %v4154, 2147483648
        %v4187 = vxor.u32 %v4155, 2147483648
        %v4188 = vxor.u32 %v4156, 2147483648
        %v4189 = vxor.u32 %v4157, 2147483648
        %v4190 = vxor.u32 %v4158, 2147483648
        %v4191 = vxor.u32 %v4159, 2147483648
        %v4192 = vxor.u32 %v4160, 2147483648
        %v4193 = vxor.u32 %v4161, 2147483648
        %v4194 = vxor.u32 %v4162, 2147483648
        %v4195 = vxor.u32 %v4163, 2147483648
        %v4196 = vxor.u32 %v4164, 2147483648
        %v4197 = vxor.u32 %v4165, 2147483648
        %v4198 = vxor.u32 %v4166, 2147483648
        %v4199 = vxor.u32 %v4167, 2147483648
        %v4200 = vxor.u32 %v4168, 2147483648
        %v4201 = vxor.u32 %v4169, 2147483648
        %v4202 = vxor.u32 %v4170, 2147483648
        %v4203 = vxor.u32 %v4171, 2147483648
        %v4204 = vxor.u32 %v4172, 2147483648
        %v4205 = vmul.f32 %v4173, 1.442695
        %v4206 = vpow.pop %v4205
        %v4207 = vmul.f32 %v4174, 1.442695
        %v4208 = vpow.pop %v4207
        %v4209 = vmul.f32 %v4175, 1.442695
        %v4210 = vpow.pop %v4209
        %v4211 = vmul.f32 %v4176, 1.442695
        %v4212 = vpow.pop %v4211
        %v4213 = vmul.f32 %v4177, 1.442695
        %v4214 = vpow.pop %v4213
        %v4215 = vmul.f32 %v4178, 1.442695
        %v4216 = vpow.pop %v4215
        %v4217 = vmul.f32 %v4179, 1.442695
        %v4218 = vpow.pop %v4217
        %v4219 = vmul.f32 %v4180, 1.442695
        %v4220 = vpow.pop %v4219
        %v4221 = vmul.f32 %v4181, 1.442695
        %v4222 = vpow.pop %v4221
        %v4223 = vmul.f32 %v4182, 1.442695
        %v4224 = vpow.pop %v4223
        %v4225 = vmul.f32 %v4183, 1.442695
        %v4226 = vpow.pop %v4225
        %v4227 = vmul.f32 %v4184, 1.442695
        %v4228 = vpow.pop %v4227
        %v4229 = vmul.f32 %v4185, 1.442695
        %v4230 = vpow.pop %v4229
        %v4231 = vmul.f32 %v4186, 1.442695
        %v4232 = vpow.pop %v4231
        %v4233 = vmul.f32 %v4187, 1.442695
        %v4234 = vpow.pop %v4233
        %v4235 = vmul.f32 %v4188, 1.442695
        %v4236 = vpow.pop %v4235
        %v4237 = vmul.f32 %v4189, 1.442695
        %v4238 = vpow.pop %v4237
        %v4239 = vmul.f32 %v4190, 1.442695
        %v4240 = vpow.pop %v4239
        %v4241 = vmul.f32 %v4191, 1.442695
        %v4242 = vpow.pop %v4241
        %v4243 = vmul.f32 %v4192, 1.442695
        %v4244 = vpow.pop %v4243
        %v4245 = vmul.f32 %v4193, 1.442695
        %v4246 = vpow.pop %v4245
        %v4247 = vmul.f32 %v4194, 1.442695
        %v4248 = vpow.pop %v4247
        %v4249 = vmul.f32 %v4195, 1.442695
        %v4250 = vpow.pop %v4249
        %v4251 = vmul.f32 %v4196, 1.442695
        %v4252 = vpow.pop %v4251
        %v4253 = vmul.f32 %v4197, 1.442695
        %v4254 = vpow.pop %v4253
        %v4255 = vmul.f32 %v4198, 1.442695
        %v4256 = vpow.pop %v4255
        %v4257 = vmul.f32 %v4199, 1.442695
        %v4258 = vpow.pop %v4257
        %v4259 = vmul.f32 %v4200, 1.442695
        %v4260 = vpow.pop %v4259
        %v4261 = vmul.f32 %v4201, 1.442695
        %v4262 = vpow.pop %v4261
        %v4263 = vmul.f32 %v4202, 1.442695
        %v4264 = vpow.pop %v4263
        %v4265 = vmul.f32 %v4203, 1.442695
        %v4266 = vpow.pop %v4265
        %v4267 = vmul.f32 %v4204, 1.442695
        %v4268 = vpow.pop %v4267
        %v4269 = vadd.f32 %v4206, 1.0
        %v4270 = vadd.f32 %v4208, 1.0
        %v4271 = vadd.f32 %v4210, 1.0
        %v4272 = vadd.f32 %v4212, 1.0
        %v4273 = vadd.f32 %v4214, 1.0
        %v4274 = vadd.f32 %v4216, 1.0
        %v4275 = vadd.f32 %v4218, 1.0
        %v4276 = vadd.f32 %v4220, 1.0
        %v4277 = vadd.f32 %v4222, 1.0
        %v4278 = vadd.f32 %v4224, 1.0
        %v4279 = vadd.f32 %v4226, 1.0
        %v4280 = vadd.f32 %v4228, 1.0
        %v4281 = vadd.f32 %v4230, 1.0
        %v4282 = vadd.f32 %v4232, 1.0
        %v4283 = vadd.f32 %v4234, 1.0
        %v4284 = vadd.f32 %v4236, 1.0
        %v4285 = vadd.f32 %v4238, 1.0
        %v4286 = vadd.f32 %v4240, 1.0
        %v4287 = vadd.f32 %v4242, 1.0
        %v4288 = vadd.f32 %v4244, 1.0
        %v4289 = vadd.f32 %v4246, 1.0
        %v4290 = vadd.f32 %v4248, 1.0
        %v4291 = vadd.f32 %v4250, 1.0
        %v4292 = vadd.f32 %v4252, 1.0
        %v4293 = vadd.f32 %v4254, 1.0
        %v4294 = vadd.f32 %v4256, 1.0
        %v4295 = vadd.f32 %v4258, 1.0
        %v4296 = vadd.f32 %v4260, 1.0
        %v4297 = vadd.f32 %v4262, 1.0
        %v4298 = vadd.f32 %v4264, 1.0
        %v4299 = vadd.f32 %v4266, 1.0
        %v4300 = vadd.f32 %v4268, 1.0
        %v4301 = vrcp.pop %v4269
        %v4302 = vmul.f32 %v4269, %v4301
        %v4303 = vsub.f32 1.0, %v4302
        %v4304 = vmul.f32 %v4301, %v4303
        %v4305 = vadd.f32 %v4301, %v4304
        %vm4306 = vweird.f32 %v4269
        %vm4307 = vweird.f32 %v4301
        %vm4308 = vmor %vm4306, %vm4307
        %v4309 = vsel %vm4308, %v4301, %v4305
        %v4310 = vand.u32 2147483647, %v4269
        %vm4311 = vcmp.eq.f32.partialorder %v4310, 8.507059e+37
        %v4312 = vand.u32 %v4269, 2147483648
        %v4313 = vor.u32 1.1754944e-38, %v4312
        %v4314 = vsel %vm4311, %v4313, %v4309
        %v4315 = vmul.f32 1.0, %v4314
        %v4316 = vrcp.pop %v4270
        %v4317 = vmul.f32 %v4270, %v4316
        %v4318 = vsub.f32 1.0, %v4317
        %v4319 = vmul.f32 %v4316, %v4318
        %v4320 = vadd.f32 %v4316, %v4319
        %vm4321 = vweird.f32 %v4270
        %vm4322 = vweird.f32 %v4316
        %vm4323 = vmor %vm4321, %vm4322
        %v4324 = vsel %vm4323, %v4316, %v4320
        %v4325 = vand.u32 2147483647, %v4270
        %vm4326 = vcmp.eq.f32.partialorder %v4325, 8.507059e+37
        %v4327 = vand.u32 %v4270, 2147483648
        %v4328 = vor.u32 1.1754944e-38, %v4327
        %v4329 = vsel %vm4326, %v4328, %v4324
        %v4330 = vmul.f32 1.0, %v4329
        %v4331 = vrcp.pop %v4271
        %v4332 = vmul.f32 %v4271, %v4331
        %v4333 = vsub.f32 1.0, %v4332
        %v4334 = vmul.f32 %v4331, %v4333
        %v4335 = vadd.f32 %v4331, %v4334
        %vm4336 = vweird.f32 %v4271
        %vm4337 = vweird.f32 %v4331
        %vm4338 = vmor %vm4336, %vm4337
        %v4339 = vsel %vm4338, %v4331, %v4335
        %v4340 = vand.u32 2147483647, %v4271
        %vm4341 = vcmp.eq.f32.partialorder %v4340, 8.507059e+37
        %v4342 = vand.u32 %v4271, 2147483648
        %v4343 = vor.u32 1.1754944e-38, %v4342
        %v4344 = vsel %vm4341, %v4343, %v4339
        %v4345 = vmul.f32 1.0, %v4344
        %v4346 = vrcp.pop %v4272
        %v4347 = vmul.f32 %v4272, %v4346
        %v4348 = vsub.f32 1.0, %v4347
        %v4349 = vmul.f32 %v4346, %v4348
        %v4350 = vadd.f32 %v4346, %v4349
        %vm4351 = vweird.f32 %v4272
        %vm4352 = vweird.f32 %v4346
        %vm4353 = vmor %vm4351, %vm4352
        %v4354 = vsel %vm4353, %v4346, %v4350
        %v4355 = vand.u32 2147483647, %v4272
        %vm4356 = vcmp.eq.f32.partialorder %v4355, 8.507059e+37
        %v4357 = vand.u32 %v4272, 2147483648
        %v4358 = vor.u32 1.1754944e-38, %v4357
        %v4359 = vsel %vm4356, %v4358, %v4354
        %v4360 = vmul.f32 1.0, %v4359
        %v4361 = vrcp.pop %v4273
        %v4362 = vmul.f32 %v4273, %v4361
        %v4363 = vsub.f32 1.0, %v4362
        %v4364 = vmul.f32 %v4361, %v4363
        %v4365 = vadd.f32 %v4361, %v4364
        %vm4366 = vweird.f32 %v4273
        %vm4367 = vweird.f32 %v4361
        %vm4368 = vmor %vm4366, %vm4367
        %v4369 = vsel %vm4368, %v4361, %v4365
        %v4370 = vand.u32 2147483647, %v4273
        %vm4371 = vcmp.eq.f32.partialorder %v4370, 8.507059e+37
        %v4372 = vand.u32 %v4273, 2147483648
        %v4373 = vor.u32 1.1754944e-38, %v4372
        %v4374 = vsel %vm4371, %v4373, %v4369
        %v4375 = vmul.f32 1.0, %v4374
        %v4376 = vrcp.pop %v4274
        %v4377 = vmul.f32 %v4274, %v4376
        %v4378 = vsub.f32 1.0, %v4377
        %v4379 = vmul.f32 %v4376, %v4378
        %v4380 = vadd.f32 %v4376, %v4379
        %vm4381 = vweird.f32 %v4274
        %vm4382 = vweird.f32 %v4376
        %vm4383 = vmor %vm4381, %vm4382
        %v4384 = vsel %vm4383, %v4376, %v4380
        %v4385 = vand.u32 2147483647, %v4274
        %vm4386 = vcmp.eq.f32.partialorder %v4385, 8.507059e+37
        %v4387 = vand.u32 %v4274, 2147483648
        %v4388 = vor.u32 1.1754944e-38, %v4387
        %v4389 = vsel %vm4386, %v4388, %v4384
        %v4390 = vmul.f32 1.0, %v4389
        %v4391 = vrcp.pop %v4275
        %v4392 = vmul.f32 %v4275, %v4391
        %v4393 = vsub.f32 1.0, %v4392
        %v4394 = vmul.f32 %v4391, %v4393
        %v4395 = vadd.f32 %v4391, %v4394
        %vm4396 = vweird.f32 %v4275
        %vm4397 = vweird.f32 %v4391
        %vm4398 = vmor %vm4396, %vm4397
        %v4399 = vsel %vm4398, %v4391, %v4395
        %v4400 = vand.u32 2147483647, %v4275
        %vm4401 = vcmp.eq.f32.partialorder %v4400, 8.507059e+37
        %v4402 = vand.u32 %v4275, 2147483648
        %v4403 = vor.u32 1.1754944e-38, %v4402
        %v4404 = vsel %vm4401, %v4403, %v4399
        %v4405 = vmul.f32 1.0, %v4404
        %v4406 = vrcp.pop %v4276
        %v4407 = vmul.f32 %v4276, %v4406
        %v4408 = vsub.f32 1.0, %v4407
        %v4409 = vmul.f32 %v4406, %v4408
        %v4410 = vadd.f32 %v4406, %v4409
        %vm4411 = vweird.f32 %v4276
        %vm4412 = vweird.f32 %v4406
        %vm4413 = vmor %vm4411, %vm4412
        %v4414 = vsel %vm4413, %v4406, %v4410
        %v4415 = vand.u32 2147483647, %v4276
        %vm4416 = vcmp.eq.f32.partialorder %v4415, 8.507059e+37
        %v4417 = vand.u32 %v4276, 2147483648
        %v4418 = vor.u32 1.1754944e-38, %v4417
        %v4419 = vsel %vm4416, %v4418, %v4414
        %v4420 = vmul.f32 1.0, %v4419
        %v4421 = vrcp.pop %v4277
        %v4422 = vmul.f32 %v4277, %v4421
        %v4423 = vsub.f32 1.0, %v4422
        %v4424 = vmul.f32 %v4421, %v4423
        %v4425 = vadd.f32 %v4421, %v4424
        %vm4426 = vweird.f32 %v4277
        %vm4427 = vweird.f32 %v4421
        %vm4428 = vmor %vm4426, %vm4427
        %v4429 = vsel %vm4428, %v4421, %v4425
        %v4430 = vand.u32 2147483647, %v4277
        %vm4431 = vcmp.eq.f32.partialorder %v4430, 8.507059e+37
        %v4432 = vand.u32 %v4277, 2147483648
        %v4433 = vor.u32 1.1754944e-38, %v4432
        %v4434 = vsel %vm4431, %v4433, %v4429
        %v4435 = vmul.f32 1.0, %v4434
        %v4436 = vrcp.pop %v4278
        %v4437 = vmul.f32 %v4278, %v4436
        %v4438 = vsub.f32 1.0, %v4437
        %v4439 = vmul.f32 %v4436, %v4438
        %v4440 = vadd.f32 %v4436, %v4439
        %vm4441 = vweird.f32 %v4278
        %vm4442 = vweird.f32 %v4436
        %vm4443 = vmor %vm4441, %vm4442
        %v4444 = vsel %vm4443, %v4436, %v4440
        %v4445 = vand.u32 2147483647, %v4278
        %vm4446 = vcmp.eq.f32.partialorder %v4445, 8.507059e+37
        %v4447 = vand.u32 %v4278, 2147483648
        %v4448 = vor.u32 1.1754944e-38, %v4447
        %v4449 = vsel %vm4446, %v4448, %v4444
        %v4450 = vmul.f32 1.0, %v4449
        %v4451 = vrcp.pop %v4279
        %v4452 = vmul.f32 %v4279, %v4451
        %v4453 = vsub.f32 1.0, %v4452
        %v4454 = vmul.f32 %v4451, %v4453
        %v4455 = vadd.f32 %v4451, %v4454
        %vm4456 = vweird.f32 %v4279
        %vm4457 = vweird.f32 %v4451
        %vm4458 = vmor %vm4456, %vm4457
        %v4459 = vsel %vm4458, %v4451, %v4455
        %v4460 = vand.u32 2147483647, %v4279
        %vm4461 = vcmp.eq.f32.partialorder %v4460, 8.507059e+37
        %v4462 = vand.u32 %v4279, 2147483648
        %v4463 = vor.u32 1.1754944e-38, %v4462
        %v4464 = vsel %vm4461, %v4463, %v4459
        %v4465 = vmul.f32 1.0, %v4464
        %v4466 = vrcp.pop %v4280
        %v4467 = vmul.f32 %v4280, %v4466
        %v4468 = vsub.f32 1.0, %v4467
        %v4469 = vmul.f32 %v4466, %v4468
        %v4470 = vadd.f32 %v4466, %v4469
        %vm4471 = vweird.f32 %v4280
        %vm4472 = vweird.f32 %v4466
        %vm4473 = vmor %vm4471, %vm4472
        %v4474 = vsel %vm4473, %v4466, %v4470
        %v4475 = vand.u32 2147483647, %v4280
        %vm4476 = vcmp.eq.f32.partialorder %v4475, 8.507059e+37
        %v4477 = vand.u32 %v4280, 2147483648
        %v4478 = vor.u32 1.1754944e-38, %v4477
        %v4479 = vsel %vm4476, %v4478, %v4474
        %v4480 = vmul.f32 1.0, %v4479
        %v4481 = vrcp.pop %v4281
        %v4482 = vmul.f32 %v4281, %v4481
        %v4483 = vsub.f32 1.0, %v4482
        %v4484 = vmul.f32 %v4481, %v4483
        %v4485 = vadd.f32 %v4481, %v4484
        %vm4486 = vweird.f32 %v4281
        %vm4487 = vweird.f32 %v4481
        %vm4488 = vmor %vm4486, %vm4487
        %v4489 = vsel %vm4488, %v4481, %v4485
        %v4490 = vand.u32 2147483647, %v4281
        %vm4491 = vcmp.eq.f32.partialorder %v4490, 8.507059e+37
        %v4492 = vand.u32 %v4281, 2147483648
        %v4493 = vor.u32 1.1754944e-38, %v4492
        %v4494 = vsel %vm4491, %v4493, %v4489
        %v4495 = vmul.f32 1.0, %v4494
        %v4496 = vrcp.pop %v4282
        %v4497 = vmul.f32 %v4282, %v4496
        %v4498 = vsub.f32 1.0, %v4497
        %v4499 = vmul.f32 %v4496, %v4498
        %v4500 = vadd.f32 %v4496, %v4499
        %vm4501 = vweird.f32 %v4282
        %vm4502 = vweird.f32 %v4496
        %vm4503 = vmor %vm4501, %vm4502
        %v4504 = vsel %vm4503, %v4496, %v4500
        %v4505 = vand.u32 2147483647, %v4282
        %vm4506 = vcmp.eq.f32.partialorder %v4505, 8.507059e+37
        %v4507 = vand.u32 %v4282, 2147483648
        %v4508 = vor.u32 1.1754944e-38, %v4507
        %v4509 = vsel %vm4506, %v4508, %v4504
        %v4510 = vmul.f32 1.0, %v4509
        %v4511 = vrcp.pop %v4283
        %v4512 = vmul.f32 %v4283, %v4511
        %v4513 = vsub.f32 1.0, %v4512
        %v4514 = vmul.f32 %v4511, %v4513
        %v4515 = vadd.f32 %v4511, %v4514
        %vm4516 = vweird.f32 %v4283
        %vm4517 = vweird.f32 %v4511
        %vm4518 = vmor %vm4516, %vm4517
        %v4519 = vsel %vm4518, %v4511, %v4515
        %v4520 = vand.u32 2147483647, %v4283
        %vm4521 = vcmp.eq.f32.partialorder %v4520, 8.507059e+37
        %v4522 = vand.u32 %v4283, 2147483648
        %v4523 = vor.u32 1.1754944e-38, %v4522
        %v4524 = vsel %vm4521, %v4523, %v4519
        %v4525 = vmul.f32 1.0, %v4524
        %v4526 = vrcp.pop %v4284
        %v4527 = vmul.f32 %v4284, %v4526
        %v4528 = vsub.f32 1.0, %v4527
        %v4529 = vmul.f32 %v4526, %v4528
        %v4530 = vadd.f32 %v4526, %v4529
        %vm4531 = vweird.f32 %v4284
        %vm4532 = vweird.f32 %v4526
        %vm4533 = vmor %vm4531, %vm4532
        %v4534 = vsel %vm4533, %v4526, %v4530
        %v4535 = vand.u32 2147483647, %v4284
        %vm4536 = vcmp.eq.f32.partialorder %v4535, 8.507059e+37
        %v4537 = vand.u32 %v4284, 2147483648
        %v4538 = vor.u32 1.1754944e-38, %v4537
        %v4539 = vsel %vm4536, %v4538, %v4534
        %v4540 = vmul.f32 1.0, %v4539
        %v4541 = vrcp.pop %v4285
        %v4542 = vmul.f32 %v4285, %v4541
        %v4543 = vsub.f32 1.0, %v4542
        %v4544 = vmul.f32 %v4541, %v4543
        %v4545 = vadd.f32 %v4541, %v4544
        %vm4546 = vweird.f32 %v4285
        %vm4547 = vweird.f32 %v4541
        %vm4548 = vmor %vm4546, %vm4547
        %v4549 = vsel %vm4548, %v4541, %v4545
        %v4550 = vand.u32 2147483647, %v4285
        %vm4551 = vcmp.eq.f32.partialorder %v4550, 8.507059e+37
        %v4552 = vand.u32 %v4285, 2147483648
        %v4553 = vor.u32 1.1754944e-38, %v4552
        %v4554 = vsel %vm4551, %v4553, %v4549
        %v4555 = vmul.f32 1.0, %v4554
        %v4556 = vrcp.pop %v4286
        %v4557 = vmul.f32 %v4286, %v4556
        %v4558 = vsub.f32 1.0, %v4557
        %v4559 = vmul.f32 %v4556, %v4558
        %v4560 = vadd.f32 %v4556, %v4559
        %vm4561 = vweird.f32 %v4286
        %vm4562 = vweird.f32 %v4556
        %vm4563 = vmor %vm4561, %vm4562
        %v4564 = vsel %vm4563, %v4556, %v4560
        %v4565 = vand.u32 2147483647, %v4286
        %vm4566 = vcmp.eq.f32.partialorder %v4565, 8.507059e+37
        %v4567 = vand.u32 %v4286, 2147483648
        %v4568 = vor.u32 1.1754944e-38, %v4567
        %v4569 = vsel %vm4566, %v4568, %v4564
        %v4570 = vmul.f32 1.0, %v4569
        %v4571 = vrcp.pop %v4287
        %v4572 = vmul.f32 %v4287, %v4571
        %v4573 = vsub.f32 1.0, %v4572
        %v4574 = vmul.f32 %v4571, %v4573
        %v4575 = vadd.f32 %v4571, %v4574
        %vm4576 = vweird.f32 %v4287
        %vm4577 = vweird.f32 %v4571
        %vm4578 = vmor %vm4576, %vm4577
        %v4579 = vsel %vm4578, %v4571, %v4575
        %v4580 = vand.u32 2147483647, %v4287
        %vm4581 = vcmp.eq.f32.partialorder %v4580, 8.507059e+37
        %v4582 = vand.u32 %v4287, 2147483648
        %v4583 = vor.u32 1.1754944e-38, %v4582
        %v4584 = vsel %vm4581, %v4583, %v4579
        %v4585 = vmul.f32 1.0, %v4584
        %v4586 = vrcp.pop %v4288
        %v4587 = vmul.f32 %v4288, %v4586
        %v4588 = vsub.f32 1.0, %v4587
        %v4589 = vmul.f32 %v4586, %v4588
        %v4590 = vadd.f32 %v4586, %v4589
        %vm4591 = vweird.f32 %v4288
        %vm4592 = vweird.f32 %v4586
        %vm4593 = vmor %vm4591, %vm4592
        %v4594 = vsel %vm4593, %v4586, %v4590
        %v4595 = vand.u32 2147483647, %v4288
        %vm4596 = vcmp.eq.f32.partialorder %v4595, 8.507059e+37
        %v4597 = vand.u32 %v4288, 2147483648
        %v4598 = vor.u32 1.1754944e-38, %v4597
        %v4599 = vsel %vm4596, %v4598, %v4594
        %v4600 = vmul.f32 1.0, %v4599
        %v4601 = vrcp.pop %v4289
        %v4602 = vmul.f32 %v4289, %v4601
        %v4603 = vsub.f32 1.0, %v4602
        %v4604 = vmul.f32 %v4601, %v4603
        %v4605 = vadd.f32 %v4601, %v4604
        %vm4606 = vweird.f32 %v4289
        %vm4607 = vweird.f32 %v4601
        %vm4608 = vmor %vm4606, %vm4607
        %v4609 = vsel %vm4608, %v4601, %v4605
        %v4610 = vand.u32 2147483647, %v4289
        %vm4611 = vcmp.eq.f32.partialorder %v4610, 8.507059e+37
        %v4612 = vand.u32 %v4289, 2147483648
        %v4613 = vor.u32 1.1754944e-38, %v4612
        %v4614 = vsel %vm4611, %v4613, %v4609
        %v4615 = vmul.f32 1.0, %v4614
        %v4616 = vrcp.pop %v4290
        %v4617 = vmul.f32 %v4290, %v4616
        %v4618 = vsub.f32 1.0, %v4617
        %v4619 = vmul.f32 %v4616, %v4618
        %v4620 = vadd.f32 %v4616, %v4619
        %vm4621 = vweird.f32 %v4290
        %vm4622 = vweird.f32 %v4616
        %vm4623 = vmor %vm4621, %vm4622
        %v4624 = vsel %vm4623, %v4616, %v4620
        %v4625 = vand.u32 2147483647, %v4290
        %vm4626 = vcmp.eq.f32.partialorder %v4625, 8.507059e+37
        %v4627 = vand.u32 %v4290, 2147483648
        %v4628 = vor.u32 1.1754944e-38, %v4627
        %v4629 = vsel %vm4626, %v4628, %v4624
        %v4630 = vmul.f32 1.0, %v4629
        %v4631 = vrcp.pop %v4291
        %v4632 = vmul.f32 %v4291, %v4631
        %v4633 = vsub.f32 1.0, %v4632
        %v4634 = vmul.f32 %v4631, %v4633
        %v4635 = vadd.f32 %v4631, %v4634
        %vm4636 = vweird.f32 %v4291
        %vm4637 = vweird.f32 %v4631
        %vm4638 = vmor %vm4636, %vm4637
        %v4639 = vsel %vm4638, %v4631, %v4635
        %v4640 = vand.u32 2147483647, %v4291
        %vm4641 = vcmp.eq.f32.partialorder %v4640, 8.507059e+37
        %v4642 = vand.u32 %v4291, 2147483648
        %v4643 = vor.u32 1.1754944e-38, %v4642
        %v4644 = vsel %vm4641, %v4643, %v4639
        %v4645 = vmul.f32 1.0, %v4644
        %v4646 = vrcp.pop %v4292
        %v4647 = vmul.f32 %v4292, %v4646
        %v4648 = vsub.f32 1.0, %v4647
        %v4649 = vmul.f32 %v4646, %v4648
        %v4650 = vadd.f32 %v4646, %v4649
        %vm4651 = vweird.f32 %v4292
        %vm4652 = vweird.f32 %v4646
        %vm4653 = vmor %vm4651, %vm4652
        %v4654 = vsel %vm4653, %v4646, %v4650
        %v4655 = vand.u32 2147483647, %v4292
        %vm4656 = vcmp.eq.f32.partialorder %v4655, 8.507059e+37
        %v4657 = vand.u32 %v4292, 2147483648
        %v4658 = vor.u32 1.1754944e-38, %v4657
        %v4659 = vsel %vm4656, %v4658, %v4654
        %v4660 = vmul.f32 1.0, %v4659
        %v4661 = vrcp.pop %v4293
        %v4662 = vmul.f32 %v4293, %v4661
        %v4663 = vsub.f32 1.0, %v4662
        %v4664 = vmul.f32 %v4661, %v4663
        %v4665 = vadd.f32 %v4661, %v4664
        %vm4666 = vweird.f32 %v4293
        %vm4667 = vweird.f32 %v4661
        %vm4668 = vmor %vm4666, %vm4667
        %v4669 = vsel %vm4668, %v4661, %v4665
        %v4670 = vand.u32 2147483647, %v4293
        %vm4671 = vcmp.eq.f32.partialorder %v4670, 8.507059e+37
        %v4672 = vand.u32 %v4293, 2147483648
        %v4673 = vor.u32 1.1754944e-38, %v4672
        %v4674 = vsel %vm4671, %v4673, %v4669
        %v4675 = vmul.f32 1.0, %v4674
        %v4676 = vrcp.pop %v4294
        %v4677 = vmul.f32 %v4294, %v4676
        %v4678 = vsub.f32 1.0, %v4677
        %v4679 = vmul.f32 %v4676, %v4678
        %v4680 = vadd.f32 %v4676, %v4679
        %vm4681 = vweird.f32 %v4294
        %vm4682 = vweird.f32 %v4676
        %vm4683 = vmor %vm4681, %vm4682
        %v4684 = vsel %vm4683, %v4676, %v4680
        %v4685 = vand.u32 2147483647, %v4294
        %vm4686 = vcmp.eq.f32.partialorder %v4685, 8.507059e+37
        %v4687 = vand.u32 %v4294, 2147483648
        %v4688 = vor.u32 1.1754944e-38, %v4687
        %v4689 = vsel %vm4686, %v4688, %v4684
        %v4690 = vmul.f32 1.0, %v4689
        %v4691 = vrcp.pop %v4295
        %v4692 = vmul.f32 %v4295, %v4691
        %v4693 = vsub.f32 1.0, %v4692
        %v4694 = vmul.f32 %v4691, %v4693
        %v4695 = vadd.f32 %v4691, %v4694
        %vm4696 = vweird.f32 %v4295
        %vm4697 = vweird.f32 %v4691
        %vm4698 = vmor %vm4696, %vm4697
        %v4699 = vsel %vm4698, %v4691, %v4695
        %v4700 = vand.u32 2147483647, %v4295
        %vm4701 = vcmp.eq.f32.partialorder %v4700, 8.507059e+37
        %v4702 = vand.u32 %v4295, 2147483648
        %v4703 = vor.u32 1.1754944e-38, %v4702
        %v4704 = vsel %vm4701, %v4703, %v4699
        %v4705 = vmul.f32 1.0, %v4704
        %v4706 = vrcp.pop %v4296
        %v4707 = vmul.f32 %v4296, %v4706
        %v4708 = vsub.f32 1.0, %v4707
        %v4709 = vmul.f32 %v4706, %v4708
        %v4710 = vadd.f32 %v4706, %v4709
        %vm4711 = vweird.f32 %v4296
        %vm4712 = vweird.f32 %v4706
        %vm4713 = vmor %vm4711, %vm4712
        %v4714 = vsel %vm4713, %v4706, %v4710
        %v4715 = vand.u32 2147483647, %v4296
        %vm4716 = vcmp.eq.f32.partialorder %v4715, 8.507059e+37
        %v4717 = vand.u32 %v4296, 2147483648
        %v4718 = vor.u32 1.1754944e-38, %v4717
        %v4719 = vsel %vm4716, %v4718, %v4714
        %v4720 = vmul.f32 1.0, %v4719
        %v4721 = vrcp.pop %v4297
        %v4722 = vmul.f32 %v4297, %v4721
        %v4723 = vsub.f32 1.0, %v4722
        %v4724 = vmul.f32 %v4721, %v4723
        %v4725 = vadd.f32 %v4721, %v4724
        %vm4726 = vweird.f32 %v4297
        %vm4727 = vweird.f32 %v4721
        %vm4728 = vmor %vm4726, %vm4727
        %v4729 = vsel %vm4728, %v4721, %v4725
        %v4730 = vand.u32 2147483647, %v4297
        %vm4731 = vcmp.eq.f32.partialorder %v4730, 8.507059e+37
        %v4732 = vand.u32 %v4297, 2147483648
        %v4733 = vor.u32 1.1754944e-38, %v4732
        %v4734 = vsel %vm4731, %v4733, %v4729
        %v4735 = vmul.f32 1.0, %v4734
        %v4736 = vrcp.pop %v4298
        %v4737 = vmul.f32 %v4298, %v4736
        %v4738 = vsub.f32 1.0, %v4737
        %v4739 = vmul.f32 %v4736, %v4738
        %v4740 = vadd.f32 %v4736, %v4739
        %vm4741 = vweird.f32 %v4298
        %vm4742 = vweird.f32 %v4736
        %vm4743 = vmor %vm4741, %vm4742
        %v4744 = vsel %vm4743, %v4736, %v4740
        %v4745 = vand.u32 2147483647, %v4298
        %vm4746 = vcmp.eq.f32.partialorder %v4745, 8.507059e+37
        %v4747 = vand.u32 %v4298, 2147483648
        %v4748 = vor.u32 1.1754944e-38, %v4747
        %v4749 = vsel %vm4746, %v4748, %v4744
        %v4750 = vmul.f32 1.0, %v4749
        %v4751 = vrcp.pop %v4299
        %v4752 = vmul.f32 %v4299, %v4751
        %v4753 = vsub.f32 1.0, %v4752
        %v4754 = vmul.f32 %v4751, %v4753
        %v4755 = vadd.f32 %v4751, %v4754
        %vm4756 = vweird.f32 %v4299
        %vm4757 = vweird.f32 %v4751
        %vm4758 = vmor %vm4756, %vm4757
        %v4759 = vsel %vm4758, %v4751, %v4755
        %v4760 = vand.u32 2147483647, %v4299
        %vm4761 = vcmp.eq.f32.partialorder %v4760, 8.507059e+37
        %v4762 = vand.u32 %v4299, 2147483648
        %v4763 = vor.u32 1.1754944e-38, %v4762
        %v4764 = vsel %vm4761, %v4763, %v4759
        %v4765 = vmul.f32 1.0, %v4764
        %v4766 = vrcp.pop %v4300
        %v4767 = vmul.f32 %v4300, %v4766
        %v4768 = vsub.f32 1.0, %v4767
        %v4769 = vmul.f32 %v4766, %v4768
        %v4770 = vadd.f32 %v4766, %v4769
        %vm4771 = vweird.f32 %v4300
        %vm4772 = vweird.f32 %v4766
        %vm4773 = vmor %vm4771, %vm4772
        %v4774 = vsel %vm4773, %v4766, %v4770
        %v4775 = vand.u32 2147483647, %v4300
        %vm4776 = vcmp.eq.f32.partialorder %v4775, 8.507059e+37
        %v4777 = vand.u32 %v4300, 2147483648
        %v4778 = vor.u32 1.1754944e-38, %v4777
        %v4779 = vsel %vm4776, %v4778, %v4774
        %v4780 = vmul.f32 1.0, %v4779
        %v4781 = vmul.f32 %v4141, %v4315
        %v4782 = vmul.f32 %v4142, %v4330
        %v4783 = vmul.f32 %v4143, %v4345
        %v4784 = vmul.f32 %v4144, %v4360
        %v4785 = vmul.f32 %v4145, %v4375
        %v4786 = vmul.f32 %v4146, %v4390
        %v4787 = vmul.f32 %v4147, %v4405
        %v4788 = vmul.f32 %v4148, %v4420
        %v4789 = vmul.f32 %v4149, %v4435
        %v4790 = vmul.f32 %v4150, %v4450
        %v4791 = vmul.f32 %v4151, %v4465
        %v4792 = vmul.f32 %v4152, %v4480
        %v4793 = vmul.f32 %v4153, %v4495
        %v4794 = vmul.f32 %v4154, %v4510
        %v4795 = vmul.f32 %v4155, %v4525
        %v4796 = vmul.f32 %v4156, %v4540
        %v4797 = vmul.f32 %v4157, %v4555
        %v4798 = vmul.f32 %v4158, %v4570
        %v4799 = vmul.f32 %v4159, %v4585
        %v4800 = vmul.f32 %v4160, %v4600
        %v4801 = vmul.f32 %v4161, %v4615
        %v4802 = vmul.f32 %v4162, %v4630
        %v4803 = vmul.f32 %v4163, %v4645
        %v4804 = vmul.f32 %v4164, %v4660
        %v4805 = vmul.f32 %v4165, %v4675
        %v4806 = vmul.f32 %v4166, %v4690
        %v4807 = vmul.f32 %v4167, %v4705
        %v4808 = vmul.f32 %v4168, %v4720
        %v4809 = vmul.f32 %v4169, %v4735
        %v4810 = vmul.f32 %v4170, %v4750
        %v4811 = vmul.f32 %v4171, %v4765
        %v4812 = vmul.f32 %v4172, %v4780
        %v4813 = vld [vmem:[%s8] sm:$0xf]
        %v4814 = vld [vmem:[%s8 + $0x4] sm:$0xf]
        %v4815 = vpack.c.bf16 %v4789, %v4781
        %v4816 = vpack.c.bf16 %v4790, %v4782
        %v4817 = vpack.c.bf16 %v4791, %v4783
        %v4818 = vpack.c.bf16 %v4792, %v4784
        %v4819 = vpack.c.bf16 %v4793, %v4785
        %v4820 = vpack.c.bf16 %v4794, %v4786
        %v4821 = vpack.c.bf16 %v4795, %v4787
        %v4822 = vpack.c.bf16 %v4796, %v4788
        %v4823 = vpack.c.bf16 %v4805, %v4797
        %v4824 = vpack.c.bf16 %v4806, %v4798
        %v4825 = vpack.c.bf16 %v4807, %v4799
        %v4826 = vpack.c.bf16 %v4808, %v4800
        %v4827 = vpack.c.bf16 %v4809, %v4801
        %v4828 = vpack.c.bf16 %v4810, %v4802
        %v4829 = vpack.c.bf16 %v4811, %v4803
        %v4830 = vpack.c.bf16 %v4812, %v4804
        %v4833 = vunpack.c.l.b16 %v4813
        %v4834 = vunpack.c.l.b16 %v4814
        %v4835 = vpack.c.b16 %v4834, %v4833
        %v4837 = vsel %vm2789, %v4835, 0
        %4839 = vmatpush.bf16.msra.mxu0 0
        %4840 = vmatpush.bf16.msra.mxu0 0
        %4841 = vmatpush.bf16.msra.mxu0 0
        %4842 = vmatpush.bf16.msra.mxu0 0
        %4843 = vmatpush.bf16.msra.mxu0 0
        %4844 = vmatpush.bf16.msra.mxu0 0
        %4845 = vmatpush.bf16.msra.mxu0 %v4823
        %4846 = vmatpush.bf16.msra.mxu0 %v4815
        %4847 = vmatmul.bf16.gmra.mxu0 %v4837
        %v4848 = vpop.f32.mrf.mxu0
        %v4849 = vadd.f32 0.0, %v4848
        %v4850 = vpop.f32.mrf.mxu0
        %v4851 = vadd.f32 0.0, %v4850
        %4852 = vdwg.mxu0
        %4853 = vmatpush.bf16.msra.mxu0 0
        %4854 = vmatpush.bf16.msra.mxu0 0
        %4855 = vmatpush.bf16.msra.mxu0 0
        %4856 = vmatpush.bf16.msra.mxu0 0
        %4857 = vmatpush.bf16.msra.mxu0 0
        %4858 = vmatpush.bf16.msra.mxu0 0
        %4859 = vmatpush.bf16.msra.mxu0 %v4824
        %4860 = vmatpush.bf16.msra.mxu0 %v4816
        %4861 = vmatmul.bf16.gmra.mxu0 %v4837
        %v4862 = vpop.f32.mrf.mxu0
        %v4863 = vadd.f32 0.0, %v4862
        %v4864 = vpop.f32.mrf.mxu0
        %v4865 = vadd.f32 0.0, %v4864
        %4866 = vdwg.mxu0
        %4867 = vmatpush.bf16.msra.mxu0 0
        %4868 = vmatpush.bf16.msra.mxu0 0
        %4869 = vmatpush.bf16.msra.mxu0 0
        %4870 = vmatpush.bf16.msra.mxu0 0
        %4871 = vmatpush.bf16.msra.mxu0 0
        %4872 = vmatpush.bf16.msra.mxu0 0
        %4873 = vmatpush.bf16.msra.mxu0 %v4825
        %4874 = vmatpush.bf16.msra.mxu0 %v4817
        %4875 = vmatmul.bf16.gmra.mxu0 %v4837
        %v4876 = vpop.f32.mrf.mxu0
        %v4877 = vadd.f32 0.0, %v4876
        %v4878 = vpop.f32.mrf.mxu0
        %v4879 = vadd.f32 0.0, %v4878
        %4880 = vdwg.mxu0
        %4881 = vmatpush.bf16.msra.mxu0 0
        %4882 = vmatpush.bf16.msra.mxu0 0
        %4883 = vmatpush.bf16.msra.mxu0 0
        %4884 = vmatpush.bf16.msra.mxu0 0
        %4885 = vmatpush.bf16.msra.mxu0 0
        %4886 = vmatpush.bf16.msra.mxu0 0
        %4887 = vmatpush.bf16.msra.mxu0 %v4826
        %4888 = vmatpush.bf16.msra.mxu0 %v4818
        %4889 = vmatmul.bf16.gmra.mxu0 %v4837
        %v4890 = vpop.f32.mrf.mxu0
        %v4891 = vadd.f32 0.0, %v4890
        %v4892 = vpop.f32.mrf.mxu0
        %v4893 = vadd.f32 0.0, %v4892
        %4894 = vdwg.mxu0
        %4895 = vmatpush.bf16.msra.mxu0 0
        %4896 = vmatpush.bf16.msra.mxu0 0
        %4897 = vmatpush.bf16.msra.mxu0 0
        %4898 = vmatpush.bf16.msra.mxu0 0
        %4899 = vmatpush.bf16.msra.mxu0 0
        %4900 = vmatpush.bf16.msra.mxu0 0
        %4901 = vmatpush.bf16.msra.mxu0 %v4827
        %4902 = vmatpush.bf16.msra.mxu0 %v4819
        %4903 = vmatmul.bf16.gmra.mxu0 %v4837
        %v4904 = vpop.f32.mrf.mxu0
        %v4905 = vadd.f32 0.0, %v4904
        %v4906 = vpop.f32.mrf.mxu0
        %v4907 = vadd.f32 0.0, %v4906
        %4908 = vdwg.mxu0
        %4909 = vmatpush.bf16.msra.mxu0 0
        %4910 = vmatpush.bf16.msra.mxu0 0
        %4911 = vmatpush.bf16.msra.mxu0 0
        %4912 = vmatpush.bf16.msra.mxu0 0
        %4913 = vmatpush.bf16.msra.mxu0 0
        %4914 = vmatpush.bf16.msra.mxu0 0
        %4915 = vmatpush.bf16.msra.mxu0 %v4828
        %4916 = vmatpush.bf16.msra.mxu0 %v4820
        %4917 = vmatmul.bf16.gmra.mxu0 %v4837
        %v4918 = vpop.f32.mrf.mxu0
        %v4919 = vadd.f32 0.0, %v4918
        %v4920 = vpop.f32.mrf.mxu0
        %v4921 = vadd.f32 0.0, %v4920
        %4922 = vdwg.mxu0
        %4923 = vmatpush.bf16.msra.mxu0 0
        %4924 = vmatpush.bf16.msra.mxu0 0
        %4925 = vmatpush.bf16.msra.mxu0 0
        %4926 = vmatpush.bf16.msra.mxu0 0
        %4927 = vmatpush.bf16.msra.mxu0 0
        %4928 = vmatpush.bf16.msra.mxu0 0
        %4929 = vmatpush.bf16.msra.mxu0 %v4829
        %4930 = vmatpush.bf16.msra.mxu0 %v4821
        %4931 = vmatmul.bf16.gmra.mxu0 %v4837
        %v4932 = vpop.f32.mrf.mxu0
        %v4933 = vadd.f32 0.0, %v4932
        %v4934 = vpop.f32.mrf.mxu0
        %v4935 = vadd.f32 0.0, %v4934
        %4936 = vdwg.mxu0
        %4937 = vmatpush.bf16.msra.mxu0 0
        %4938 = vmatpush.bf16.msra.mxu0 0
        %4939 = vmatpush.bf16.msra.mxu0 0
        %4940 = vmatpush.bf16.msra.mxu0 0
        %4941 = vmatpush.bf16.msra.mxu0 0
        %4942 = vmatpush.bf16.msra.mxu0 0
        %4943 = vmatpush.bf16.msra.mxu0 %v4830
        %4944 = vmatpush.bf16.msra.mxu0 %v4822
        %4945 = vmatmul.bf16.gmra.mxu0 %v4837
        %v4946 = vpop.f32.mrf.mxu0
        %v4947 = vadd.f32 0.0, %v4946
        %v4948 = vpop.f32.mrf.mxu0
        %v4949 = vadd.f32 0.0, %v4948
        %4950 = vdwg.mxu0
        %v4951 = vld [vmem:[%s9] sm:$0xff]
        %v4952 = vld [vmem:[%s9 + $0x8] sm:$0xff]
        %4954 = vset.pattern.permute.xlu0 0
        %4955 = vperm.xlu0 %4954, %v4951
        %v4956 = vpop.permute.xlu0 %4955
        %4959 = vset.pattern.permute.xlu0 0
        %4960 = vperm.xlu0 %4959, %v4952
        %v4961 = vpop.permute.xlu0 %4960
        %v4963 = vmul.f32 %v4849, %v4956
        %v4964 = vmul.f32 %v4863, %v4956
        %v4965 = vmul.f32 %v4877, %v4956
        %v4966 = vmul.f32 %v4891, %v4956
        %v4967 = vmul.f32 %v4905, %v4956
        %v4968 = vmul.f32 %v4919, %v4956
        %v4969 = vmul.f32 %v4933, %v4956
        %v4970 = vmul.f32 %v4947, %v4956
        %v4971 = vmul.f32 %v4851, %v4961
        %v4972 = vmul.f32 %v4865, %v4961
        %v4973 = vmul.f32 %v4879, %v4961
        %v4974 = vmul.f32 %v4893, %v4961
        %v4975 = vmul.f32 %v4907, %v4961
        %v4976 = vmul.f32 %v4921, %v4961
        %v4977 = vmul.f32 %v4935, %v4961
        %v4978 = vmul.f32 %v4949, %v4961
        %v4979 = vld [vmem:[%s10] sm:$0xff]
        %v4980 = vld [vmem:[%s10 + $0x8] sm:$0xff]
        %4982 = vset.pattern.permute.xlu0 0
        %4983 = vperm.xlu0 %4982, %v4979
        %v4984 = vpop.permute.xlu0 %4983
        %4987 = vset.pattern.permute.xlu0 0
        %4988 = vperm.xlu0 %4987, %v4980
        %v4989 = vpop.permute.xlu0 %4988
        %v4991 = vadd.f32 %v4963, %v4984
        %v4992 = vadd.f32 %v4964, %v4984
        %v4993 = vadd.f32 %v4965, %v4984
        %v4994 = vadd.f32 %v4966, %v4984
        %v4995 = vadd.f32 %v4967, %v4984
        %v4996 = vadd.f32 %v4968, %v4984
        %v4997 = vadd.f32 %v4969, %v4984
        %v4998 = vadd.f32 %v4970, %v4984
        %v4999 = vadd.f32 %v4971, %v4989
        %v5000 = vadd.f32 %v4972, %v4989
        %v5001 = vadd.f32 %v4973, %v4989
        %v5002 = vadd.f32 %v4974, %v4989
        %v5003 = vadd.f32 %v4975, %v4989
        %v5004 = vadd.f32 %v4976, %v4989
        %v5005 = vadd.f32 %v4977, %v4989
        %v5006 = vadd.f32 %v4978, %v4989
        %v5007 = vxor.u32 %v4991, 2147483648
        %v5008 = vxor.u32 %v4992, 2147483648
        %v5009 = vxor.u32 %v4993, 2147483648
        %v5010 = vxor.u32 %v4994, 2147483648
        %v5011 = vxor.u32 %v4995, 2147483648
        %v5012 = vxor.u32 %v4996, 2147483648
        %v5013 = vxor.u32 %v4997, 2147483648
        %v5014 = vxor.u32 %v4998, 2147483648
        %v5015 = vxor.u32 %v4999, 2147483648
        %v5016 = vxor.u32 %v5000, 2147483648
        %v5017 = vxor.u32 %v5001, 2147483648
        %v5018 = vxor.u32 %v5002, 2147483648
        %v5019 = vxor.u32 %v5003, 2147483648
        %v5020 = vxor.u32 %v5004, 2147483648
        %v5021 = vxor.u32 %v5005, 2147483648
        %v5022 = vxor.u32 %v5006, 2147483648
        %v5023 = vmul.f32 %v5007, 1.442695
        %v5024 = vpow.pop %v5023
        %v5025 = vmul.f32 %v5008, 1.442695
        %v5026 = vpow.pop %v5025
        %v5027 = vmul.f32 %v5009, 1.442695
        %v5028 = vpow.pop %v5027
        %v5029 = vmul.f32 %v5010, 1.442695
        %v5030 = vpow.pop %v5029
        %v5031 = vmul.f32 %v5011, 1.442695
        %v5032 = vpow.pop %v5031
        %v5033 = vmul.f32 %v5012, 1.442695
        %v5034 = vpow.pop %v5033
        %v5035 = vmul.f32 %v5013, 1.442695
        %v5036 = vpow.pop %v5035
        %v5037 = vmul.f32 %v5014, 1.442695
        %v5038 = vpow.pop %v5037
        %v5039 = vmul.f32 %v5015, 1.442695
        %v5040 = vpow.pop %v5039
        %v5041 = vmul.f32 %v5016, 1.442695
        %v5042 = vpow.pop %v5041
        %v5043 = vmul.f32 %v5017, 1.442695
        %v5044 = vpow.pop %v5043
        %v5045 = vmul.f32 %v5018, 1.442695
        %v5046 = vpow.pop %v5045
        %v5047 = vmul.f32 %v5019, 1.442695
        %v5048 = vpow.pop %v5047
        %v5049 = vmul.f32 %v5020, 1.442695
        %v5050 = vpow.pop %v5049
        %v5051 = vmul.f32 %v5021, 1.442695
        %v5052 = vpow.pop %v5051
        %v5053 = vmul.f32 %v5022, 1.442695
        %v5054 = vpow.pop %v5053
        %v5055 = vadd.f32 %v5024, 1.0
        %v5056 = vadd.f32 %v5026, 1.0
        %v5057 = vadd.f32 %v5028, 1.0
        %v5058 = vadd.f32 %v5030, 1.0
        %v5059 = vadd.f32 %v5032, 1.0
        %v5060 = vadd.f32 %v5034, 1.0
        %v5061 = vadd.f32 %v5036, 1.0
        %v5062 = vadd.f32 %v5038, 1.0
        %v5063 = vadd.f32 %v5040, 1.0
        %v5064 = vadd.f32 %v5042, 1.0
        %v5065 = vadd.f32 %v5044, 1.0
        %v5066 = vadd.f32 %v5046, 1.0
        %v5067 = vadd.f32 %v5048, 1.0
        %v5068 = vadd.f32 %v5050, 1.0
        %v5069 = vadd.f32 %v5052, 1.0
        %v5070 = vadd.f32 %v5054, 1.0
        %v5071 = vrcp.pop %v5055
        %v5072 = vmul.f32 %v5055, %v5071
        %v5073 = vsub.f32 1.0, %v5072
        %v5074 = vmul.f32 %v5071, %v5073
        %v5075 = vadd.f32 %v5071, %v5074
        %vm5076 = vweird.f32 %v5055
        %vm5077 = vweird.f32 %v5071
        %vm5078 = vmor %vm5076, %vm5077
        %v5079 = vsel %vm5078, %v5071, %v5075
        %v5080 = vand.u32 2147483647, %v5055
        %vm5081 = vcmp.eq.f32.partialorder %v5080, 8.507059e+37
        %v5082 = vand.u32 %v5055, 2147483648
        %v5083 = vor.u32 1.1754944e-38, %v5082
        %v5084 = vsel %vm5081, %v5083, %v5079
        %v5085 = vmul.f32 1.0, %v5084
        %v5086 = vrcp.pop %v5056
        %v5087 = vmul.f32 %v5056, %v5086
        %v5088 = vsub.f32 1.0, %v5087
        %v5089 = vmul.f32 %v5086, %v5088
        %v5090 = vadd.f32 %v5086, %v5089
        %vm5091 = vweird.f32 %v5056
        %vm5092 = vweird.f32 %v5086
        %vm5093 = vmor %vm5091, %vm5092
        %v5094 = vsel %vm5093, %v5086, %v5090
        %v5095 = vand.u32 2147483647, %v5056
        %vm5096 = vcmp.eq.f32.partialorder %v5095, 8.507059e+37
        %v5097 = vand.u32 %v5056, 2147483648
        %v5098 = vor.u32 1.1754944e-38, %v5097
        %v5099 = vsel %vm5096, %v5098, %v5094
        %v5100 = vmul.f32 1.0, %v5099
        %v5101 = vrcp.pop %v5057
        %v5102 = vmul.f32 %v5057, %v5101
        %v5103 = vsub.f32 1.0, %v5102
        %v5104 = vmul.f32 %v5101, %v5103
        %v5105 = vadd.f32 %v5101, %v5104
        %vm5106 = vweird.f32 %v5057
        %vm5107 = vweird.f32 %v5101
        %vm5108 = vmor %vm5106, %vm5107
        %v5109 = vsel %vm5108, %v5101, %v5105
        %v5110 = vand.u32 2147483647, %v5057
        %vm5111 = vcmp.eq.f32.partialorder %v5110, 8.507059e+37
        %v5112 = vand.u32 %v5057, 2147483648
        %v5113 = vor.u32 1.1754944e-38, %v5112
        %v5114 = vsel %vm5111, %v5113, %v5109
        %v5115 = vmul.f32 1.0, %v5114
        %v5116 = vrcp.pop %v5058
        %v5117 = vmul.f32 %v5058, %v5116
        %v5118 = vsub.f32 1.0, %v5117
        %v5119 = vmul.f32 %v5116, %v5118
        %v5120 = vadd.f32 %v5116, %v5119
        %vm5121 = vweird.f32 %v5058
        %vm5122 = vweird.f32 %v5116
        %vm5123 = vmor %vm5121, %vm5122
        %v5124 = vsel %vm5123, %v5116, %v5120
        %v5125 = vand.u32 2147483647, %v5058
        %vm5126 = vcmp.eq.f32.partialorder %v5125, 8.507059e+37
        %v5127 = vand.u32 %v5058, 2147483648
        %v5128 = vor.u32 1.1754944e-38, %v5127
        %v5129 = vsel %vm5126, %v5128, %v5124
        %v5130 = vmul.f32 1.0, %v5129
        %v5131 = vrcp.pop %v5059
        %v5132 = vmul.f32 %v5059, %v5131
        %v5133 = vsub.f32 1.0, %v5132
        %v5134 = vmul.f32 %v5131, %v5133
        %v5135 = vadd.f32 %v5131, %v5134
        %vm5136 = vweird.f32 %v5059
        %vm5137 = vweird.f32 %v5131
        %vm5138 = vmor %vm5136, %vm5137
        %v5139 = vsel %vm5138, %v5131, %v5135
        %v5140 = vand.u32 2147483647, %v5059
        %vm5141 = vcmp.eq.f32.partialorder %v5140, 8.507059e+37
        %v5142 = vand.u32 %v5059, 2147483648
        %v5143 = vor.u32 1.1754944e-38, %v5142
        %v5144 = vsel %vm5141, %v5143, %v5139
        %v5145 = vmul.f32 1.0, %v5144
        %v5146 = vrcp.pop %v5060
        %v5147 = vmul.f32 %v5060, %v5146
        %v5148 = vsub.f32 1.0, %v5147
        %v5149 = vmul.f32 %v5146, %v5148
        %v5150 = vadd.f32 %v5146, %v5149
        %vm5151 = vweird.f32 %v5060
        %vm5152 = vweird.f32 %v5146
        %vm5153 = vmor %vm5151, %vm5152
        %v5154 = vsel %vm5153, %v5146, %v5150
        %v5155 = vand.u32 2147483647, %v5060
        %vm5156 = vcmp.eq.f32.partialorder %v5155, 8.507059e+37
        %v5157 = vand.u32 %v5060, 2147483648
        %v5158 = vor.u32 1.1754944e-38, %v5157
        %v5159 = vsel %vm5156, %v5158, %v5154
        %v5160 = vmul.f32 1.0, %v5159
        %v5161 = vrcp.pop %v5061
        %v5162 = vmul.f32 %v5061, %v5161
        %v5163 = vsub.f32 1.0, %v5162
        %v5164 = vmul.f32 %v5161, %v5163
        %v5165 = vadd.f32 %v5161, %v5164
        %vm5166 = vweird.f32 %v5061
        %vm5167 = vweird.f32 %v5161
        %vm5168 = vmor %vm5166, %vm5167
        %v5169 = vsel %vm5168, %v5161, %v5165
        %v5170 = vand.u32 2147483647, %v5061
        %vm5171 = vcmp.eq.f32.partialorder %v5170, 8.507059e+37
        %v5172 = vand.u32 %v5061, 2147483648
        %v5173 = vor.u32 1.1754944e-38, %v5172
        %v5174 = vsel %vm5171, %v5173, %v5169
        %v5175 = vmul.f32 1.0, %v5174
        %v5176 = vrcp.pop %v5062
        %v5177 = vmul.f32 %v5062, %v5176
        %v5178 = vsub.f32 1.0, %v5177
        %v5179 = vmul.f32 %v5176, %v5178
        %v5180 = vadd.f32 %v5176, %v5179
        %vm5181 = vweird.f32 %v5062
        %vm5182 = vweird.f32 %v5176
        %vm5183 = vmor %vm5181, %vm5182
        %v5184 = vsel %vm5183, %v5176, %v5180
        %v5185 = vand.u32 2147483647, %v5062
        %vm5186 = vcmp.eq.f32.partialorder %v5185, 8.507059e+37
        %v5187 = vand.u32 %v5062, 2147483648
        %v5188 = vor.u32 1.1754944e-38, %v5187
        %v5189 = vsel %vm5186, %v5188, %v5184
        %v5190 = vmul.f32 1.0, %v5189
        %v5191 = vrcp.pop %v5063
        %v5192 = vmul.f32 %v5063, %v5191
        %v5193 = vsub.f32 1.0, %v5192
        %v5194 = vmul.f32 %v5191, %v5193
        %v5195 = vadd.f32 %v5191, %v5194
        %vm5196 = vweird.f32 %v5063
        %vm5197 = vweird.f32 %v5191
        %vm5198 = vmor %vm5196, %vm5197
        %v5199 = vsel %vm5198, %v5191, %v5195
        %v5200 = vand.u32 2147483647, %v5063
        %vm5201 = vcmp.eq.f32.partialorder %v5200, 8.507059e+37
        %v5202 = vand.u32 %v5063, 2147483648
        %v5203 = vor.u32 1.1754944e-38, %v5202
        %v5204 = vsel %vm5201, %v5203, %v5199
        %v5205 = vmul.f32 1.0, %v5204
        %v5206 = vrcp.pop %v5064
        %v5207 = vmul.f32 %v5064, %v5206
        %v5208 = vsub.f32 1.0, %v5207
        %v5209 = vmul.f32 %v5206, %v5208
        %v5210 = vadd.f32 %v5206, %v5209
        %vm5211 = vweird.f32 %v5064
        %vm5212 = vweird.f32 %v5206
        %vm5213 = vmor %vm5211, %vm5212
        %v5214 = vsel %vm5213, %v5206, %v5210
        %v5215 = vand.u32 2147483647, %v5064
        %vm5216 = vcmp.eq.f32.partialorder %v5215, 8.507059e+37
        %v5217 = vand.u32 %v5064, 2147483648
        %v5218 = vor.u32 1.1754944e-38, %v5217
        %v5219 = vsel %vm5216, %v5218, %v5214
        %v5220 = vmul.f32 1.0, %v5219
        %v5221 = vrcp.pop %v5065
        %v5222 = vmul.f32 %v5065, %v5221
        %v5223 = vsub.f32 1.0, %v5222
        %v5224 = vmul.f32 %v5221, %v5223
        %v5225 = vadd.f32 %v5221, %v5224
        %vm5226 = vweird.f32 %v5065
        %vm5227 = vweird.f32 %v5221
        %vm5228 = vmor %vm5226, %vm5227
        %v5229 = vsel %vm5228, %v5221, %v5225
        %v5230 = vand.u32 2147483647, %v5065
        %vm5231 = vcmp.eq.f32.partialorder %v5230, 8.507059e+37
        %v5232 = vand.u32 %v5065, 2147483648
        %v5233 = vor.u32 1.1754944e-38, %v5232
        %v5234 = vsel %vm5231, %v5233, %v5229
        %v5235 = vmul.f32 1.0, %v5234
        %v5236 = vrcp.pop %v5066
        %v5237 = vmul.f32 %v5066, %v5236
        %v5238 = vsub.f32 1.0, %v5237
        %v5239 = vmul.f32 %v5236, %v5238
        %v5240 = vadd.f32 %v5236, %v5239
        %vm5241 = vweird.f32 %v5066
        %vm5242 = vweird.f32 %v5236
        %vm5243 = vmor %vm5241, %vm5242
        %v5244 = vsel %vm5243, %v5236, %v5240
        %v5245 = vand.u32 2147483647, %v5066
        %vm5246 = vcmp.eq.f32.partialorder %v5245, 8.507059e+37
        %v5247 = vand.u32 %v5066, 2147483648
        %v5248 = vor.u32 1.1754944e-38, %v5247
        %v5249 = vsel %vm5246, %v5248, %v5244
        %v5250 = vmul.f32 1.0, %v5249
        %v5251 = vrcp.pop %v5067
        %v5252 = vmul.f32 %v5067, %v5251
        %v5253 = vsub.f32 1.0, %v5252
        %v5254 = vmul.f32 %v5251, %v5253
        %v5255 = vadd.f32 %v5251, %v5254
        %vm5256 = vweird.f32 %v5067
        %vm5257 = vweird.f32 %v5251
        %vm5258 = vmor %vm5256, %vm5257
        %v5259 = vsel %vm5258, %v5251, %v5255
        %v5260 = vand.u32 2147483647, %v5067
        %vm5261 = vcmp.eq.f32.partialorder %v5260, 8.507059e+37
        %v5262 = vand.u32 %v5067, 2147483648
        %v5263 = vor.u32 1.1754944e-38, %v5262
        %v5264 = vsel %vm5261, %v5263, %v5259
        %v5265 = vmul.f32 1.0, %v5264
        %v5266 = vrcp.pop %v5068
        %v5267 = vmul.f32 %v5068, %v5266
        %v5268 = vsub.f32 1.0, %v5267
        %v5269 = vmul.f32 %v5266, %v5268
        %v5270 = vadd.f32 %v5266, %v5269
        %vm5271 = vweird.f32 %v5068
        %vm5272 = vweird.f32 %v5266
        %vm5273 = vmor %vm5271, %vm5272
        %v5274 = vsel %vm5273, %v5266, %v5270
        %v5275 = vand.u32 2147483647, %v5068
        %vm5276 = vcmp.eq.f32.partialorder %v5275, 8.507059e+37
        %v5277 = vand.u32 %v5068, 2147483648
        %v5278 = vor.u32 1.1754944e-38, %v5277
        %v5279 = vsel %vm5276, %v5278, %v5274
        %v5280 = vmul.f32 1.0, %v5279
        %v5281 = vrcp.pop %v5069
        %v5282 = vmul.f32 %v5069, %v5281
        %v5283 = vsub.f32 1.0, %v5282
        %v5284 = vmul.f32 %v5281, %v5283
        %v5285 = vadd.f32 %v5281, %v5284
        %vm5286 = vweird.f32 %v5069
        %vm5287 = vweird.f32 %v5281
        %vm5288 = vmor %vm5286, %vm5287
        %v5289 = vsel %vm5288, %v5281, %v5285
        %v5290 = vand.u32 2147483647, %v5069
        %vm5291 = vcmp.eq.f32.partialorder %v5290, 8.507059e+37
        %v5292 = vand.u32 %v5069, 2147483648
        %v5293 = vor.u32 1.1754944e-38, %v5292
        %v5294 = vsel %vm5291, %v5293, %v5289
        %v5295 = vmul.f32 1.0, %v5294
        %v5296 = vrcp.pop %v5070
        %v5297 = vmul.f32 %v5070, %v5296
        %v5298 = vsub.f32 1.0, %v5297
        %v5299 = vmul.f32 %v5296, %v5298
        %v5300 = vadd.f32 %v5296, %v5299
        %vm5301 = vweird.f32 %v5070
        %vm5302 = vweird.f32 %v5296
        %vm5303 = vmor %vm5301, %vm5302
        %v5304 = vsel %vm5303, %v5296, %v5300
        %v5305 = vand.u32 2147483647, %v5070
        %vm5306 = vcmp.eq.f32.partialorder %v5305, 8.507059e+37
        %v5307 = vand.u32 %v5070, 2147483648
        %v5308 = vor.u32 1.1754944e-38, %v5307
        %v5309 = vsel %vm5306, %v5308, %v5304
        %v5310 = vmul.f32 1.0, %v5309
        %v5311 = vmul.f32 %v4991, %v5085
        %v5312 = vmul.f32 %v4992, %v5100
        %v5313 = vmul.f32 %v4993, %v5115
        %v5314 = vmul.f32 %v4994, %v5130
        %v5315 = vmul.f32 %v4995, %v5145
        %v5316 = vmul.f32 %v4996, %v5160
        %v5317 = vmul.f32 %v4997, %v5175
        %v5318 = vmul.f32 %v4998, %v5190
        %v5319 = vmul.f32 %v4999, %v5205
        %v5320 = vmul.f32 %v5000, %v5220
        %v5321 = vmul.f32 %v5001, %v5235
        %v5322 = vmul.f32 %v5002, %v5250
        %v5323 = vmul.f32 %v5003, %v5265
        %v5324 = vmul.f32 %v5004, %v5280
        %v5325 = vmul.f32 %v5005, %v5295
        %v5326 = vmul.f32 %v5006, %v5310
        %5327 = vst [vmem:[%s403] sm:$0xff] %v5311
        %5328 = vst [vmem:[%s403 + $0x8] sm:$0xff] %v5312
        %5329 = vst [vmem:[%s403 + $0x10] sm:$0xff] %v5313
        %5330 = vst [vmem:[%s403 + $0x18] sm:$0xff] %v5314
        %5331 = vst [vmem:[%s403 + $0x20] sm:$0xff] %v5315
        %5332 = vst [vmem:[%s403 + $0x28] sm:$0xff] %v5316
        %5333 = vst [vmem:[%s403 + $0x30] sm:$0xff] %v5317
        %5334 = vst [vmem:[%s403 + $0x38] sm:$0xff] %v5318
        %5335 = vst [vmem:[%s403 + $0x40] sm:$0xff] %v5319
        %5336 = vst [vmem:[%s403 + $0x48] sm:$0xff] %v5320
        %5337 = vst [vmem:[%s403 + $0x50] sm:$0xff] %v5321
        %5338 = vst [vmem:[%s403 + $0x58] sm:$0xff] %v5322
        %5339 = vst [vmem:[%s403 + $0x60] sm:$0xff] %v5323
        %5340 = vst [vmem:[%s403 + $0x68] sm:$0xff] %v5324
        %5341 = vst [vmem:[%s403 + $0x70] sm:$0xff] %v5325
        %5342 = vst [vmem:[%s403 + $0x78] sm:$0xff] %v5326
        %p5343 = scmp.lt.s32.totalorder %s23, 1
        %s5344 = scalar_select %p5343, %s23, 1
        %s5345 = smul.addr %s5344, 16
        %s5346 = smul.addr %s5345, 8
        %s5347 = scalar_lea.vmem %s11, %s5346
        // Predicated region
        $region69: #{proto_forward.1} parent=63 // pred_check
          %p5348 = pneg %p277
        $region70: #{proto_forward.1} parent=63 // pred_check_branch
          %5350 = sbr.rel (%p5348) target = $region72
        $region71: #{proto_forward.1} parent=63 // pred_region
          _
        $region72: #{proto_forward.1} parent=63 // pred_fallthru
          _
      $region64: #{proto_forward.1} parent=5 // pred_fallthru
        _
      %p5351 = scmp.le.s32.totalorder 2, %s18
      // Predicated region
      $region73: #{proto_forward.1} parent=5 // pred_check
        %p5352 = pneg %p5351
      $region74: #{proto_forward.1} parent=5 // pred_check_branch
        %5354 = sbr.rel (%p5352) target = $region76
      $region75: #{proto_forward.1} parent=5 // pred_region
        %s5355 = ssub.s32 %s18, 2
        // Predicated region
        $region77: #{proto_forward.1} parent=75 // pred_check
          %p5356 = pneg %p283
        $region78: #{proto_forward.1} parent=75 // pred_check_branch
          %5358 = sbr.rel (%p5356) target = $region80
        $region79: #{proto_forward.1} parent=75 // pred_region
          %p5359 = scmp.lt.s32.totalorder %s24, 1
          %s5360 = scalar_select %p5359, %s24, 1
          %s5361 = smul.addr %s5360, 16
          %s5362 = smul.addr %s5361, 8
          %s5363 = scalar_lea.vmem %s11, %s5362
        $region80: #{proto_forward.1} parent=75 // pred_fallthru
          _
      $region76: #{proto_forward.1} parent=5 // pred_fallthru
        _
    $region6: #{proto_forward.1} parent=1 // loop_footer
      %s22 = sadd.s32 1, %s18
    $region7: #{proto_forward.1} parent=1 // loop_footer_branch
      %17 = sbr.rel target = $region3
    $region8: #{proto_forward.1} parent=1 // loop_exit
      _
    %5364 = vsyncpa [#allocation3], 1
    %s5365 = scalar_lea.sflag [#allocation3], 1
    %5366 = vsyncpa %s5365, 1

</llo_original>
